<compile_context>
chip_gen: v5e
topology: v5e:2x2
jax: 0.10.0
libtpu: 0.0.40
codegen_flags: <defaults>
</compile_context>

<pallas_src>
import functools

import jax
import jax.numpy as jnp
from jax.experimental import pallas as pl
from jax.experimental.pallas import tpu as pltpu


def _round_up(n, m):
    return ((n + m - 1) // m) * m


def _prox_lstm_kernel(z_ref, c_ref, wz_ref, b_ref, vt_ref, wr_ref, wg_ref, eye_ref,
                      out_ref, *, epsilon, mm_dtype):
    f32 = jnp.float32
    H = c_ref.shape[1]
    D = z_ref.shape[1] - H
    eps = f32(epsilon)

    z = z_ref[...]                       # (Nt, D+H)  = [x, h]
    c_prev = c_ref[...]                  # (Nt, H)

    # ---------------- LSTM gates: one fused 4H(=128)-lane MXU matmul ----------------
    pre = jnp.dot(z.astype(mm_dtype), wz_ref[...],
                  preferred_element_type=f32) + b_ref[...]          # (Nt, 4H)
    i_g = jax.nn.sigmoid(pre[:, 0 * H:1 * H])
    f_g = jax.nn.sigmoid(pre[:, 1 * H:2 * H])
    g_g = jnp.tanh(pre[:, 2 * H:3 * H])
    o_g = jax.nn.sigmoid(pre[:, 3 * H:4 * H])

    c_lstm = f_g * c_prev + i_g * g_g                                # (Nt, H)
    h_new = o_g * jnp.tanh(c_lstm)                                   # (Nt, H)

    # ------- Jacobian coefficients: G[n] = sum_k diag(coeff_k[n]) W_k  (G implicit) -------
    ci = g_g * i_g * (1.0 - i_g)
    cf = c_prev * f_g * (1.0 - f_g)
    cg = i_g * (1.0 - g_g * g_g)

    # ------- M = I + eps*G^T G via ONE lane-dense matmul (eps folded into vt host-side) -------
    # P[n] = [ci*ci, ci*cf, ci*cg, cf*cf, cf*cg, cg*cg]   -> (Nt, 6H)
    P = jnp.concatenate([ci * ci, ci * cf, ci * cg, cf * cf, cf * cg, cg * cg], axis=1)
    Pt = jnp.transpose(P, (1, 0)).astype(mm_dtype)                   # (6H, Nt)
    M = jnp.dot(vt_ref[...], Pt, preferred_element_type=f32) + eye_ref[...]   # (D*D, Nt)

    # ------------------- r = G^T c_lstm via ONE stacked matmul -------------------
    q3 = jnp.concatenate([ci * c_lstm, cf * c_lstm, cg * c_lstm], axis=1)      # (Nt, 3H)
    r = jnp.dot(q3.astype(mm_dtype), wr_ref[...], preferred_element_type=f32)  # (Nt, D)
    rt = jnp.transpose(r, (1, 0))                                              # (D, Nt)

    # ------ solve (I + eps G^T G) y = r : batch on the LANE axis, fully unrolled ------
    # No pivoting needed: pivots (Schur-complement diagonals of I + eps*PSD) are >= 1
    # for eps >= 0, so approx reciprocal + one Newton step is safe.
    def recip(p):
        ip = pl.reciprocal(p, approx=True)
        return ip * (2.0 - p * ip)

    m_rows = [M[k * D:(k + 1) * D, :] for k in range(D)]             # each (D, Nt)
    y_rows = [rt[k:k + 1, :] for k in range(D)]                      # each (1, Nt)

    # Forward elimination with row normalization (unit diagonal afterwards).
    for k in range(D):
        ip = recip(m_rows[k][k:k + 1, :])                            # (1, Nt)
        m_rows[k] = m_rows[k] * ip
        y_rows[k] = y_rows[k] * ip
        for a in range(k + 1, D):
            m = m_rows[a][k:k + 1, :]                                # (1, Nt) multiplier
            m_rows[a] = m_rows[a] - m * m_rows[k]
            y_rows[a] = y_rows[a] - m * y_rows[k]

    # Back substitution (unit diagonal).
    x_rows = [None] * D
    for k in range(D - 1, -1, -1):
        s = y_rows[k]
        for b in range(k + 1, D):
            s = s - m_rows[k][b:b + 1, :] * x_rows[b]
        x_rows[k] = s

    y_bm = jnp.transpose(jnp.concatenate(x_rows, axis=0), (1, 0))    # (Nt, D)

    # ------------------- G @ y via ONE stacked matmul -------------------
    yW = jnp.dot(y_bm.astype(mm_dtype), wg_ref[...], preferred_element_type=f32)  # (Nt, 3H)
    Gy = (ci * yW[:, 0 * H:1 * H]
          + cf * yW[:, 1 * H:2 * H]
          + cg * yW[:, 2 * H:3 * H])

    prox_c = c_lstm - eps * Gy

    # Lane-packed output slab: [h_new | prox_c] -> single (Nt, 2H) store.
    out_ref[...] = jnp.concatenate([h_new, prox_c], axis=1)


def prox_lstm_cell(x, hx, cx, w_ih, w_hh, b_ih, b_hh, epsilon, *,
                   n_tile=512, matmul_dtype=jnp.float32):
    """Forward of ProximalLSTMCell (G_final=False). Returns (h_new, prox_c).

    Set matmul_dtype=jnp.bfloat16 on v6e/v7x for higher MXU throughput (the Jacobian
    coefficients and the Woodbury solve stay f32 regardless).
    """
    if epsilon < 0:
        raise ValueError("epsilon must be >= 0 (pivot-free solve relies on I + eps*PSD).")

    N, D = x.shape
    H = hx.shape[1]
    f32 = jnp.float32

    # ---------------- host-side weight preparation (pure glue) ----------------
    w_ih = w_ih.astype(f32)                                  # (4H, D), gate order i,f,g,o
    w_hh = w_hh.astype(f32)                                  # (4H, H)
    bias = (b_ih.astype(f32) + b_hh.astype(f32)).reshape(1, 4 * H)

    # fused gate weight: gates = [x, h] @ w_z + bias
    w_z = jnp.concatenate([w_ih, w_hh], axis=1).T.astype(matmul_dtype)       # (D+H, 4H)

    w_ih_t = jnp.transpose(w_ih.reshape(4, H, D), (0, 2, 1))                 # (4, D, H)
    wi, wf, wg = w_ih_t[0], w_ih_t[1], w_ih_t[2]                             # each (D, H)

    # r = G^T c : (Nt, 3H) @ (3H, D);   G y : (Nt, D) @ (D, 3H)
    w_r = jnp.concatenate([wi.T, wf.T, wg.T], axis=0).astype(matmul_dtype)   # (3H, D)
    w_g3 = jnp.concatenate([wi, wf, wg], axis=1).astype(matmul_dtype)        # (D, 3H)

    # pairwise weight products so M = I + eps*G^T G is a single matmul; eps folded in
    blocks = []
    for wa, wb in ((wi, wi), (wi, wf), (wi, wg), (wf, wf), (wf, wg), (wg, wg)):
        blk = jnp.einsum('dh,eh->hde', wa, wb)
        if wa is not wb:
            blk = blk + jnp.einsum('dh,eh->hde', wb, wa)
        blocks.append(blk.reshape(H, D * D))
    v_t = (float(epsilon) * jnp.concatenate(blocks, axis=0).T).astype(matmul_dtype)  # (D*D, 6H)

    eye_col = jnp.eye(D, dtype=f32).reshape(D * D, 1)                        # identity column

    # ---------------- batch tiling ----------------
    n_tile = max(8, min(int(n_tile), _round_up(N, 8)))
    n_tile = _round_up(n_tile, 8)
    n_pad = _round_up(N, n_tile)
    # keep >= 2 grid steps when the batch allows it, so the "parallel" axis can shard
    # across v7x's two TensorCores (measured-neutral on v5e/v6e)
    if n_pad // n_tile < 2 and n_pad >= 16:
        n_tile = _round_up((n_pad + 1) // 2, 8)
        n_pad = _round_up(N, n_tile)
    grid = (n_pad // n_tile,)

    def pad_rows(arr):
        arr = arr.astype(f32)
        if arr.shape[0] == n_pad:
            return arr
        return jnp.pad(arr, ((0, n_pad - arr.shape[0]), (0, 0)))

    zp = pad_rows(jnp.concatenate([x, hx], axis=1))          # (n_pad, D+H)
    cp = pad_rows(cx)                                        # (n_pad, H)

    # ---------------- specs ----------------
    spec_z = pl.BlockSpec((n_tile, D + H), lambda i: (i, 0))
    spec_c = pl.BlockSpec((n_tile, H), lambda i: (i, 0))
    # weights / bias / identity stay VMEM-resident across all batch tiles
    spec_wz = pl.BlockSpec((D + H, 4 * H), lambda i: (0, 0))
    spec_b = pl.BlockSpec((1, 4 * H), lambda i: (0, 0))
    spec_vt = pl.BlockSpec((D * D, 6 * H), lambda i: (0, 0))
    spec_wr = pl.BlockSpec((3 * H, D), lambda i: (0, 0))
    spec_wg = pl.BlockSpec((D, 3 * H), lambda i: (0, 0))
    spec_eye = pl.BlockSpec((D * D, 1), lambda i: (0, 0))
    spec_out = pl.BlockSpec((n_tile, 2 * H), lambda i: (i, 0))

    # ---------------- VMEM budget (actual per-tile working set, with headroom) ----------------
    weight_elems = ((D + H) * 4 * H + 4 * H + 3 * H * D + D * 3 * H + D * D * 6 * H + D * D)
    io_bytes_per_row = 4 * ((D + H) + H + 2 * H)
    scratch_bytes_per_row = 8 * (D * D + 12 * H + 8 * D)       # in-kernel temporaries, x2
    vmem_est = (2 * n_tile * io_bytes_per_row + 2 * 4 * weight_elems
                + n_tile * scratch_bytes_per_row)
    vmem_limit = int(min(64 * 2 ** 20, max(16 * 2 ** 20, 2 * vmem_est)))

    # ---------------- cost estimate (re-derived for the matmul-based formulation) ----------------
    flops_per_row = (2 * (D + H) * 4 * H          # fused gate matmul
                     + 2 * 6 * H * D * D          # M = V^T @ P^T
                     + 4 * 3 * H * D              # r and G@y matmuls
                     + 2 * D * D * D // 3 + 4 * D * D   # triangular solve
                     + 40 * H + 8 * D)            # elementwise
    cost = pl.CostEstimate(
        flops=int(n_pad * flops_per_row),
        transcendentals=int(n_pad * (5 * H + 2 * D)),
        bytes_accessed=int(4 * (n_pad * ((D + H) + H + 2 * H) + weight_elems)))

    kernel = functools.partial(_prox_lstm_kernel, epsilon=float(epsilon),
                               mm_dtype=matmul_dtype)

    hc = pl.pallas_call(
        kernel,
        grid=grid,
        out_shape=jax.ShapeDtypeStruct((n_pad, 2 * H), f32),
        in_specs=[spec_z, spec_c, spec_wz, spec_b, spec_vt, spec_wr, spec_wg, spec_eye],
        out_specs=spec_out,
        compiler_params=pltpu.CompilerParams(
            dimension_semantics=("parallel",),
            vmem_limit_bytes=vmem_limit),
        cost_estimate=cost,
    )(zp, cp, w_z, bias, v_t, w_r, w_g3, eye_col)

    return hc[:N, :H], hc[:N, H:]


def _reference(x, hx, cx, w_ih, w_hh, b_ih, b_hh, epsilon):
    """Pure-JAX reference mirroring the PyTorch module (explicit HxH inverse)."""
    H = hx.shape[1]
    gates = x @ w_ih.T + hx @ w_hh.T + b_ih + b_hh
    i_g = jax.nn.sigmoid(gates[:, 0:H])
    f_g = jax.nn.sigmoid(gates[:, H:2 * H])
    g_g = jnp.tanh(gates[:, 2 * H:3 * H])
    o_g = jax.nn.sigmoid(gates[:, 3 * H:4 * H])
    c_lstm = f_g * cx + i_g * g_g
    h_new = o_g * jnp.tanh(c_lstm)
    w_ii, w_if, w_ig = w_ih[:H], w_ih[H:2 * H], w_ih[2 * H:3 * H]
    G = ((g_g * i_g * (1 - i_g))[:, :, None] * w_ii[None]
         + (cx * f_g * (1 - f_g))[:, :, None] * w_if[None]
         + (i_g * (1 - g_g ** 2))[:, :, None] * w_ig[None])
    A = jnp.eye(H)[None] + epsilon * jnp.einsum('nhd,nkd->nhk', G, G)
    prox_c = jnp.matmul(jnp.linalg.inv(A), c_lstm[:, :, None])[..., 0]
    return h_new, prox_c


if __name__ == "__main__":
    N, D_IN, H = 2, 16, 32
    EPSILON = 1.0

    key = jax.random.PRNGKey(0)
    k_x, k_h, k_c, k_wi, k_wh, k_bi, k_bh = jax.random.split(key, 7)

    # PyTorch LSTMCell default init: U(-1/sqrt(H), 1/sqrt(H))
    bound = 1.0 / (H ** 0.5)
    w_ih = jax.random.uniform(k_wi, (4 * H, D_IN), jnp.float32, -bound, bound)
    w_hh = jax.random.uniform(k_wh, (4 * H, H), jnp.float32, -bound, bound)
    b_ih = jax.random.uniform(k_bi, (4 * H,), jnp.float32, -bound, bound)
    b_hh = jax.random.uniform(k_bh, (4 * H,), jnp.float32, -bound, bound)

    x = jax.random.normal(k_x, (N, D_IN), jnp.float32)
    hx = jax.random.normal(k_h, (N, H), jnp.float32)
    cx = jax.random.normal(k_c, (N, H), jnp.float32)

    h_out, c_out = prox_lstm_cell(x, hx, cx, w_ih, w_hh, b_ih, b_hh, EPSILON)
    jax.block_until_ready((h_out, c_out))

    h_ref, c_ref = _reference(x, hx, cx, w_ih, w_hh, b_ih, b_hh, EPSILON)
    assert jnp.allclose(h_out, h_ref, rtol=1e-3, atol=1e-3), "h mismatch"
    assert jnp.allclose(c_out, c_ref, rtol=1e-3, atol=1e-3), "prox_c mismatch"

    # TODO(synk): ProximalMapping.backward (custom autograd) is not part of this forward kernel.
    print("KERNEL_OK")
</pallas_src>

<mosaic_0001>
module attributes {stable_mosaic.version = 11 : i64} {
  func.func @_prox_lstm_kernel(%arg0: i32, %arg1: memref<8x48xf32, #tpu.memory_space<vmem>>, %arg2: memref<8x32xf32, #tpu.memory_space<vmem>>, %arg3: memref<48x128xf32, #tpu.memory_space<vmem>>, %arg4: memref<1x128xf32, #tpu.memory_space<vmem>>, %arg5: memref<256x192xf32, #tpu.memory_space<vmem>>, %arg6: memref<96x16xf32, #tpu.memory_space<vmem>>, %arg7: memref<16x96xf32, #tpu.memory_space<vmem>>, %arg8: memref<256x1xf32, #tpu.memory_space<vmem>>, %arg9: memref<8x64xf32, #tpu.memory_space<vmem>>) attributes {dimension_semantics = [#tpu.dimension_semantics<parallel>], iteration_bounds = array<i64: 1>, scalar_prefetch = 0 : i64, scratch_operands = 0 : i64, tpu.core_type = #tpu.core_type<tc>, window_params = [{transform_indices = @transform_0, window_bounds = array<i64: 8, 48>}, {transform_indices = @transform_1, window_bounds = array<i64: 8, 32>}, {pipeline_mode = #tpu.pipeline_mode<synchronous>, transform_indices = @transform_2, window_bounds = array<i64: 48, 128>}, {pipeline_mode = #tpu.pipeline_mode<synchronous>, transform_indices = @transform_3, window_bounds = array<i64: 1, 128>}, {pipeline_mode = #tpu.pipeline_mode<synchronous>, transform_indices = @transform_4, window_bounds = array<i64: 256, 192>}, {pipeline_mode = #tpu.pipeline_mode<synchronous>, transform_indices = @transform_5, window_bounds = array<i64: 96, 16>}, {pipeline_mode = #tpu.pipeline_mode<synchronous>, transform_indices = @transform_6, window_bounds = array<i64: 16, 96>}, {pipeline_mode = #tpu.pipeline_mode<synchronous>, transform_indices = @transform_7, window_bounds = array<i64: 256, 1>}, {transform_indices = @transform_8, window_bounds = array<i64: 8, 64>}]} {
    %c0 = arith.constant 0 : index
    %c0_0 = arith.constant 0 : index
    %0 = vector.load %arg1[%c0, %c0_0] : memref<8x48xf32, #tpu.memory_space<vmem>>, vector<8x48xf32>
    %c0_1 = arith.constant 0 : index
    %c0_2 = arith.constant 0 : index
    %1 = vector.load %arg2[%c0_1, %c0_2] : memref<8x32xf32, #tpu.memory_space<vmem>>, vector<8x32xf32>
    %c0_3 = arith.constant 0 : index
    %c0_4 = arith.constant 0 : index
    %2 = vector.load %arg3[%c0_3, %c0_4] : memref<48x128xf32, #tpu.memory_space<vmem>>, vector<48x128xf32>
    %cst = arith.constant dense<0.000000e+00> : vector<8x128xf32>
    %3 = tpu.matmul %0, %2, %cst {dimension_numbers = #tpu.dot_dimension_numbers<[1], [0], [0], [1], [0, 0, 1, 1], [], []>} : vector<8x48xf32>, vector<48x128xf32>, vector<8x128xf32> -> vector<8x128xf32>
    %c0_5 = arith.constant 0 : index
    %c0_6 = arith.constant 0 : index
    %4 = vector.load %arg4[%c0_5, %c0_6] : memref<1x128xf32, #tpu.memory_space<vmem>>, vector<1x128xf32>
    %5 = vector.broadcast %4 : vector<1x128xf32> to vector<8x128xf32>
    %6 = arith.addf %3, %5 : vector<8x128xf32>
    %7 = vector.extract_strided_slice %6 {offsets = [0, 0], sizes = [8, 32], strides = [1, 1]} : vector<8x128xf32> to vector<8x32xf32>
    %8 = arith.negf %7 : vector<8x32xf32>
    %9 = math.exp %8 : vector<8x32xf32>
    %cst_7 = arith.constant 1.000000e+00 : f32
    %10 = vector.broadcast %cst_7 : f32 to vector<8x32xf32>
    %11 = arith.addf %10, %9 : vector<8x32xf32>
    %12 = arith.divf %10, %11 : vector<8x32xf32>
    %13 = vector.extract_strided_slice %6 {offsets = [0, 32], sizes = [8, 32], strides = [1, 1]} : vector<8x128xf32> to vector<8x32xf32>
    %14 = arith.negf %13 : vector<8x32xf32>
    %15 = math.exp %14 : vector<8x32xf32>
    %cst_8 = arith.constant 1.000000e+00 : f32
    %16 = vector.broadcast %cst_8 : f32 to vector<8x32xf32>
    %17 = arith.addf %16, %15 : vector<8x32xf32>
    %18 = arith.divf %16, %17 : vector<8x32xf32>
    %19 = vector.extract_strided_slice %6 {offsets = [0, 64], sizes = [8, 32], strides = [1, 1]} : vector<8x128xf32> to vector<8x32xf32>
    %20 = math.tanh %19 : vector<8x32xf32>
    %21 = vector.extract_strided_slice %6 {offsets = [0, 96], sizes = [8, 32], strides = [1, 1]} : vector<8x128xf32> to vector<8x32xf32>
    %22 = arith.negf %21 : vector<8x32xf32>
    %23 = math.exp %22 : vector<8x32xf32>
    %cst_9 = arith.constant 1.000000e+00 : f32
    %24 = vector.broadcast %cst_9 : f32 to vector<8x32xf32>
    %25 = arith.addf %24, %23 : vector<8x32xf32>
    %26 = arith.divf %24, %25 : vector<8x32xf32>
    %27 = arith.mulf %18, %1 : vector<8x32xf32>
    %28 = arith.mulf %12, %20 : vector<8x32xf32>
    %29 = arith.addf %27, %28 : vector<8x32xf32>
    %30 = math.tanh %29 : vector<8x32xf32>
    %31 = arith.mulf %26, %30 : vector<8x32xf32>
    %32 = arith.mulf %20, %12 : vector<8x32xf32>
    %cst_10 = arith.constant 1.000000e+00 : f32
    %33 = vector.broadcast %cst_10 : f32 to vector<8x32xf32>
    %34 = arith.subf %33, %12 : vector<8x32xf32>
    %35 = arith.mulf %32, %34 : vector<8x32xf32>
    %36 = arith.mulf %1, %18 : vector<8x32xf32>
    %cst_11 = arith.constant 1.000000e+00 : f32
    %37 = vector.broadcast %cst_11 : f32 to vector<8x32xf32>
    %38 = arith.subf %37, %18 : vector<8x32xf32>
    %39 = arith.mulf %36, %38 : vector<8x32xf32>
    %40 = arith.mulf %20, %20 : vector<8x32xf32>
    %cst_12 = arith.constant 1.000000e+00 : f32
    %41 = vector.broadcast %cst_12 : f32 to vector<8x32xf32>
    %42 = arith.subf %41, %40 : vector<8x32xf32>
    %43 = arith.mulf %12, %42 : vector<8x32xf32>
    %44 = arith.mulf %35, %35 : vector<8x32xf32>
    %45 = arith.mulf %35, %39 : vector<8x32xf32>
    %46 = arith.mulf %35, %43 : vector<8x32xf32>
    %47 = arith.mulf %39, %39 : vector<8x32xf32>
    %48 = arith.mulf %39, %43 : vector<8x32xf32>
    %49 = arith.mulf %43, %43 : vector<8x32xf32>
    %50 = tpu.concatenate %44, %45, %46, %47, %48, %49 in 1 : vector<8x32xf32>, vector<8x32xf32>, vector<8x32xf32>, vector<8x32xf32>, vector<8x32xf32>, vector<8x32xf32> -> vector<8x192xf32>
    %51 = tpu.transpose %50, [1, 0] : vector<8x192xf32> -> vector<192x8xf32>
    %c0_13 = arith.constant 0 : index
    %c0_14 = arith.constant 0 : index
    %52 = vector.load %arg5[%c0_13, %c0_14] : memref<256x192xf32, #tpu.memory_space<vmem>>, vector<256x192xf32>
    %cst_15 = arith.constant dense<0.000000e+00> : vector<256x8xf32>
    %53 = tpu.matmul %52, %51, %cst_15 {dimension_numbers = #tpu.dot_dimension_numbers<[1], [0], [0], [1], [0, 0, 1, 1], [], []>} : vector<256x192xf32>, vector<192x8xf32>, vector<256x8xf32> -> vector<256x8xf32>
    %c0_16 = arith.constant 0 : index
    %c0_17 = arith.constant 0 : index
    %54 = vector.load %arg8[%c0_16, %c0_17] : memref<256x1xf32, #tpu.memory_space<vmem>>, vector<256x1xf32>
    %55 = vector.broadcast %54 : vector<256x1xf32> to vector<256x8xf32>
    %56 = arith.addf %53, %55 : vector<256x8xf32>
    %57 = arith.mulf %35, %29 : vector<8x32xf32>
    %58 = arith.mulf %39, %29 : vector<8x32xf32>
    %59 = arith.mulf %43, %29 : vector<8x32xf32>
    %60 = tpu.concatenate %57, %58, %59 in 1 : vector<8x32xf32>, vector<8x32xf32>, vector<8x32xf32> -> vector<8x96xf32>
    %c0_18 = arith.constant 0 : index
    %c0_19 = arith.constant 0 : index
    %61 = vector.load %arg6[%c0_18, %c0_19] : memref<96x16xf32, #tpu.memory_space<vmem>>, vector<96x16xf32>
    %cst_20 = arith.constant dense<0.000000e+00> : vector<8x16xf32>
    %62 = tpu.matmul %60, %61, %cst_20 {dimension_numbers = #tpu.dot_dimension_numbers<[1], [0], [0], [1], [0, 0, 1, 1], [], []>} : vector<8x96xf32>, vector<96x16xf32>, vector<8x16xf32> -> vector<8x16xf32>
    %63 = tpu.transpose %62, [1, 0] : vector<8x16xf32> -> vector<16x8xf32>
    %64 = vector.extract_strided_slice %56 {offsets = [0, 0], sizes = [16, 8], strides = [1, 1]} : vector<256x8xf32> to vector<16x8xf32>
    %65 = vector.extract_strided_slice %56 {offsets = [16, 0], sizes = [16, 8], strides = [1, 1]} : vector<256x8xf32> to vector<16x8xf32>
    %66 = vector.extract_strided_slice %56 {offsets = [32, 0], sizes = [16, 8], strides = [1, 1]} : vector<256x8xf32> to vector<16x8xf32>
    %67 = vector.extract_strided_slice %56 {offsets = [48, 0], sizes = [16, 8], strides = [1, 1]} : vector<256x8xf32> to vector<16x8xf32>
    %68 = vector.extract_strided_slice %56 {offsets = [64, 0], sizes = [16, 8], strides = [1, 1]} : vector<256x8xf32> to vector<16x8xf32>
    %69 = vector.extract_strided_slice %56 {offsets = [80, 0], sizes = [16, 8], strides = [1, 1]} : vector<256x8xf32> to vector<16x8xf32>
    %70 = vector.extract_strided_slice %56 {offsets = [96, 0], sizes = [16, 8], strides = [1, 1]} : vector<256x8xf32> to vector<16x8xf32>
    %71 = vector.extract_strided_slice %56 {offsets = [112, 0], sizes = [16, 8], strides = [1, 1]} : vector<256x8xf32> to vector<16x8xf32>
    %72 = vector.extract_strided_slice %56 {offsets = [128, 0], sizes = [16, 8], strides = [1, 1]} : vector<256x8xf32> to vector<16x8xf32>
    %73 = vector.extract_strided_slice %56 {offsets = [144, 0], sizes = [16, 8], strides = [1, 1]} : vector<256x8xf32> to vector<16x8xf32>
    %74 = vector.extract_strided_slice %56 {offsets = [160, 0], sizes = [16, 8], strides = [1, 1]} : vector<256x8xf32> to vector<16x8xf32>
    %75 = vector.extract_strided_slice %56 {offsets = [176, 0], sizes = [16, 8], strides = [1, 1]} : vector<256x8xf32> to vector<16x8xf32>
    %76 = vector.extract_strided_slice %56 {offsets = [192, 0], sizes = [16, 8], strides = [1, 1]} : vector<256x8xf32> to vector<16x8xf32>
    %77 = vector.extract_strided_slice %56 {offsets = [208, 0], sizes = [16, 8], strides = [1, 1]} : vector<256x8xf32> to vector<16x8xf32>
    %78 = vector.extract_strided_slice %56 {offsets = [224, 0], sizes = [16, 8], strides = [1, 1]} : vector<256x8xf32> to vector<16x8xf32>
    %79 = vector.extract_strided_slice %56 {offsets = [240, 0], sizes = [16, 8], strides = [1, 1]} : vector<256x8xf32> to vector<16x8xf32>
    %80 = vector.extract_strided_slice %63 {offsets = [0, 0], sizes = [1, 8], strides = [1, 1]} : vector<16x8xf32> to vector<1x8xf32>
    %81 = vector.extract_strided_slice %63 {offsets = [1, 0], sizes = [1, 8], strides = [1, 1]} : vector<16x8xf32> to vector<1x8xf32>
    %82 = vector.extract_strided_slice %63 {offsets = [2, 0], sizes = [1, 8], strides = [1, 1]} : vector<16x8xf32> to vector<1x8xf32>
    %83 = vector.extract_strided_slice %63 {offsets = [3, 0], sizes = [1, 8], strides = [1, 1]} : vector<16x8xf32> to vector<1x8xf32>
    %84 = vector.extract_strided_slice %63 {offsets = [4, 0], sizes = [1, 8], strides = [1, 1]} : vector<16x8xf32> to vector<1x8xf32>
    %85 = vector.extract_strided_slice %63 {offsets = [5, 0], sizes = [1, 8], strides = [1, 1]} : vector<16x8xf32> to vector<1x8xf32>
    %86 = vector.extract_strided_slice %63 {offsets = [6, 0], sizes = [1, 8], strides = [1, 1]} : vector<16x8xf32> to vector<1x8xf32>
    %87 = vector.extract_strided_slice %63 {offsets = [7, 0], sizes = [1, 8], strides = [1, 1]} : vector<16x8xf32> to vector<1x8xf32>
    %88 = vector.extract_strided_slice %63 {offsets = [8, 0], sizes = [1, 8], strides = [1, 1]} : vector<16x8xf32> to vector<1x8xf32>
    %89 = vector.extract_strided_slice %63 {offsets = [9, 0], sizes = [1, 8], strides = [1, 1]} : vector<16x8xf32> to vector<1x8xf32>
    %90 = vector.extract_strided_slice %63 {offsets = [10, 0], sizes = [1, 8], strides = [1, 1]} : vector<16x8xf32> to vector<1x8xf32>
    %91 = vector.extract_strided_slice %63 {offsets = [11, 0], sizes = [1, 8], strides = [1, 1]} : vector<16x8xf32> to vector<1x8xf32>
    %92 = vector.extract_strided_slice %63 {offsets = [12, 0], sizes = [1, 8], strides = [1, 1]} : vector<16x8xf32> to vector<1x8xf32>
    %93 = vector.extract_strided_slice %63 {offsets = [13, 0], sizes = [1, 8], strides = [1, 1]} : vector<16x8xf32> to vector<1x8xf32>
    %94 = vector.extract_strided_slice %63 {offsets = [14, 0], sizes = [1, 8], strides = [1, 1]} : vector<16x8xf32> to vector<1x8xf32>
    %95 = vector.extract_strided_slice %63 {offsets = [15, 0], sizes = [1, 8], strides = [1, 1]} : vector<16x8xf32> to vector<1x8xf32>
    %96 = vector.extract_strided_slice %64 {offsets = [0, 0], sizes = [1, 8], strides = [1, 1]} : vector<16x8xf32> to vector<1x8xf32>
    %97 = tpu.reciprocal %96 {approx = true} : vector<1x8xf32> -> vector<1x8xf32>
    %98 = arith.mulf %96, %97 : vector<1x8xf32>
    %cst_21 = arith.constant 2.000000e+00 : f32
    %99 = vector.broadcast %cst_21 : f32 to vector<1x8xf32>
    %100 = arith.subf %99, %98 : vector<1x8xf32>
    %101 = arith.mulf %97, %100 : vector<1x8xf32>
    %102 = vector.broadcast %101 : vector<1x8xf32> to vector<16x8xf32>
    %103 = arith.mulf %64, %102 : vector<16x8xf32>
    %104 = arith.mulf %80, %101 : vector<1x8xf32>
    %105 = vector.extract_strided_slice %65 {offsets = [0, 0], sizes = [1, 8], strides = [1, 1]} : vector<16x8xf32> to vector<1x8xf32>
    %106 = vector.broadcast %105 : vector<1x8xf32> to vector<16x8xf32>
    %107 = arith.mulf %106, %103 : vector<16x8xf32>
    %108 = arith.subf %65, %107 : vector<16x8xf32>
    %109 = arith.mulf %105, %104 : vector<1x8xf32>
    %110 = arith.subf %81, %109 : vector<1x8xf32>
    %111 = vector.extract_strided_slice %66 {offsets = [0, 0], sizes = [1, 8], strides = [1, 1]} : vector<16x8xf32> to vector<1x8xf32>
    %112 = vector.broadcast %111 : vector<1x8xf32> to vector<16x8xf32>
    %113 = arith.mulf %112, %103 : vector<16x8xf32>
    %114 = arith.subf %66, %113 : vector<16x8xf32>
    %115 = arith.mulf %111, %104 : vector<1x8xf32>
    %116 = arith.subf %82, %115 : vector<1x8xf32>
    %117 = vector.extract_strided_slice %67 {offsets = [0, 0], sizes = [1, 8], strides = [1, 1]} : vector<16x8xf32> to vector<1x8xf32>
    %118 = vector.broadcast %117 : vector<1x8xf32> to vector<16x8xf32>
    %119 = arith.mulf %118, %103 : vector<16x8xf32>
    %120 = arith.subf %67, %119 : vector<16x8xf32>
    %121 = arith.mulf %117, %104 : vector<1x8xf32>
    %122 = arith.subf %83, %121 : vector<1x8xf32>
    %123 = vector.extract_strided_slice %68 {offsets = [0, 0], sizes = [1, 8], strides = [1, 1]} : vector<16x8xf32> to vector<1x8xf32>
    %124 = vector.broadcast %123 : vector<1x8xf32> to vector<16x8xf32>
    %125 = arith.mulf %124, %103 : vector<16x8xf32>
    %126 = arith.subf %68, %125 : vector<16x8xf32>
    %127 = arith.mulf %123, %104 : vector<1x8xf32>
    %128 = arith.subf %84, %127 : vector<1x8xf32>
    %129 = vector.extract_strided_slice %69 {offsets = [0, 0], sizes = [1, 8], strides = [1, 1]} : vector<16x8xf32> to vector<1x8xf32>
    %130 = vector.broadcast %129 : vector<1x8xf32> to vector<16x8xf32>
    %131 = arith.mulf %130, %103 : vector<16x8xf32>
    %132 = arith.subf %69, %131 : vector<16x8xf32>
    %133 = arith.mulf %129, %104 : vector<1x8xf32>
    %134 = arith.subf %85, %133 : vector<1x8xf32>
    %135 = vector.extract_strided_slice %70 {offsets = [0, 0], sizes = [1, 8], strides = [1, 1]} : vector<16x8xf32> to vector<1x8xf32>
    %136 = vector.broadcast %135 : vector<1x8xf32> to vector<16x8xf32>
    %137 = arith.mulf %136, %103 : vector<16x8xf32>
    %138 = arith.subf %70, %137 : vector<16x8xf32>
    %139 = arith.mulf %135, %104 : vector<1x8xf32>
    %140 = arith.subf %86, %139 : vector<1x8xf32>
    %141 = vector.extract_strided_slice %71 {offsets = [0, 0], sizes = [1, 8], strides = [1, 1]} : vector<16x8xf32> to vector<1x8xf32>
    %142 = vector.broadcast %141 : vector<1x8xf32> to vector<16x8xf32>
    %143 = arith.mulf %142, %103 : vector<16x8xf32>
    %144 = arith.subf %71, %143 : vector<16x8xf32>
    %145 = arith.mulf %141, %104 : vector<1x8xf32>
    %146 = arith.subf %87, %145 : vector<1x8xf32>
    %147 = vector.extract_strided_slice %72 {offsets = [0, 0], sizes = [1, 8], strides = [1, 1]} : vector<16x8xf32> to vector<1x8xf32>
    %148 = vector.broadcast %147 : vector<1x8xf32> to vector<16x8xf32>
    %149 = arith.mulf %148, %103 : vector<16x8xf32>
    %150 = arith.subf %72, %149 : vector<16x8xf32>
    %151 = arith.mulf %147, %104 : vector<1x8xf32>
    %152 = arith.subf %88, %151 : vector<1x8xf32>
    %153 = vector.extract_strided_slice %73 {offsets = [0, 0], sizes = [1, 8], strides = [1, 1]} : vector<16x8xf32> to vector<1x8xf32>
    %154 = vector.broadcast %153 : vector<1x8xf32> to vector<16x8xf32>
    %155 = arith.mulf %154, %103 : vector<16x8xf32>
    %156 = arith.subf %73, %155 : vector<16x8xf32>
    %157 = arith.mulf %153, %104 : vector<1x8xf32>
    %158 = arith.subf %89, %157 : vector<1x8xf32>
    %159 = vector.extract_strided_slice %74 {offsets = [0, 0], sizes = [1, 8], strides = [1, 1]} : vector<16x8xf32> to vector<1x8xf32>
    %160 = vector.broadcast %159 : vector<1x8xf32> to vector<16x8xf32>
    %161 = arith.mulf %160, %103 : vector<16x8xf32>
    %162 = arith.subf %74, %161 : vector<16x8xf32>
    %163 = arith.mulf %159, %104 : vector<1x8xf32>
    %164 = arith.subf %90, %163 : vector<1x8xf32>
    %165 = vector.extract_strided_slice %75 {offsets = [0, 0], sizes = [1, 8], strides = [1, 1]} : vector<16x8xf32> to vector<1x8xf32>
    %166 = vector.broadcast %165 : vector<1x8xf32> to vector<16x8xf32>
    %167 = arith.mulf %166, %103 : vector<16x8xf32>
    %168 = arith.subf %75, %167 : vector<16x8xf32>
    %169 = arith.mulf %165, %104 : vector<1x8xf32>
    %170 = arith.subf %91, %169 : vector<1x8xf32>
    %171 = vector.extract_strided_slice %76 {offsets = [0, 0], sizes = [1, 8], strides = [1, 1]} : vector<16x8xf32> to vector<1x8xf32>
    %172 = vector.broadcast %171 : vector<1x8xf32> to vector<16x8xf32>
    %173 = arith.mulf %172, %103 : vector<16x8xf32>
    %174 = arith.subf %76, %173 : vector<16x8xf32>
    %175 = arith.mulf %171, %104 : vector<1x8xf32>
    %176 = arith.subf %92, %175 : vector<1x8xf32>
    %177 = vector.extract_strided_slice %77 {offsets = [0, 0], sizes = [1, 8], strides = [1, 1]} : vector<16x8xf32> to vector<1x8xf32>
    %178 = vector.broadcast %177 : vector<1x8xf32> to vector<16x8xf32>
    %179 = arith.mulf %178, %103 : vector<16x8xf32>
    %180 = arith.subf %77, %179 : vector<16x8xf32>
    %181 = arith.mulf %177, %104 : vector<1x8xf32>
    %182 = arith.subf %93, %181 : vector<1x8xf32>
    %183 = vector.extract_strided_slice %78 {offsets = [0, 0], sizes = [1, 8], strides = [1, 1]} : vector<16x8xf32> to vector<1x8xf32>
    %184 = vector.broadcast %183 : vector<1x8xf32> to vector<16x8xf32>
    %185 = arith.mulf %184, %103 : vector<16x8xf32>
    %186 = arith.subf %78, %185 : vector<16x8xf32>
    %187 = arith.mulf %183, %104 : vector<1x8xf32>
    %188 = arith.subf %94, %187 : vector<1x8xf32>
    %189 = vector.extract_strided_slice %79 {offsets = [0, 0], sizes = [1, 8], strides = [1, 1]} : vector<16x8xf32> to vector<1x8xf32>
    %190 = vector.broadcast %189 : vector<1x8xf32> to vector<16x8xf32>
    %191 = arith.mulf %190, %103 : vector<16x8xf32>
    %192 = arith.subf %79, %191 : vector<16x8xf32>
    %193 = arith.mulf %189, %104 : vector<1x8xf32>
    %194 = arith.subf %95, %193 : vector<1x8xf32>
    %195 = vector.extract_strided_slice %108 {offsets = [1, 0], sizes = [1, 8], strides = [1, 1]} : vector<16x8xf32> to vector<1x8xf32>
    %196 = tpu.reciprocal %195 {approx = true} : vector<1x8xf32> -> vector<1x8xf32>
    %197 = arith.mulf %195, %196 : vector<1x8xf32>
    %cst_22 = arith.constant 2.000000e+00 : f32
    %198 = vector.broadcast %cst_22 : f32 to vector<1x8xf32>
    %199 = arith.subf %198, %197 : vector<1x8xf32>
    %200 = arith.mulf %196, %199 : vector<1x8xf32>
    %201 = vector.broadcast %200 : vector<1x8xf32> to vector<16x8xf32>
    %202 = arith.mulf %108, %201 : vector<16x8xf32>
    %203 = arith.mulf %110, %200 : vector<1x8xf32>
    %204 = vector.extract_strided_slice %114 {offsets = [1, 0], sizes = [1, 8], strides = [1, 1]} : vector<16x8xf32> to vector<1x8xf32>
    %205 = vector.broadcast %204 : vector<1x8xf32> to vector<16x8xf32>
    %206 = arith.mulf %205, %202 : vector<16x8xf32>
    %207 = arith.subf %114, %206 : vector<16x8xf32>
    %208 = arith.mulf %204, %203 : vector<1x8xf32>
    %209 = arith.subf %116, %208 : vector<1x8xf32>
    %210 = vector.extract_strided_slice %120 {offsets = [1, 0], sizes = [1, 8], strides = [1, 1]} : vector<16x8xf32> to vector<1x8xf32>
    %211 = vector.broadcast %210 : vector<1x8xf32> to vector<16x8xf32>
    %212 = arith.mulf %211, %202 : vector<16x8xf32>
    %213 = arith.subf %120, %212 : vector<16x8xf32>
    %214 = arith.mulf %210, %203 : vector<1x8xf32>
    %215 = arith.subf %122, %214 : vector<1x8xf32>
    %216 = vector.extract_strided_slice %126 {offsets = [1, 0], sizes = [1, 8], strides = [1, 1]} : vector<16x8xf32> to vector<1x8xf32>
    %217 = vector.broadcast %216 : vector<1x8xf32> to vector<16x8xf32>
    %218 = arith.mulf %217, %202 : vector<16x8xf32>
    %219 = arith.subf %126, %218 : vector<16x8xf32>
    %220 = arith.mulf %216, %203 : vector<1x8xf32>
    %221 = arith.subf %128, %220 : vector<1x8xf32>
    %222 = vector.extract_strided_slice %132 {offsets = [1, 0], sizes = [1, 8], strides = [1, 1]} : vector<16x8xf32> to vector<1x8xf32>
    %223 = vector.broadcast %222 : vector<1x8xf32> to vector<16x8xf32>
    %224 = arith.mulf %223, %202 : vector<16x8xf32>
    %225 = arith.subf %132, %224 : vector<16x8xf32>
    %226 = arith.mulf %222, %203 : vector<1x8xf32>
    %227 = arith.subf %134, %226 : vector<1x8xf32>
    %228 = vector.extract_strided_slice %138 {offsets = [1, 0], sizes = [1, 8], strides = [1, 1]} : vector<16x8xf32> to vector<1x8xf32>
    %229 = vector.broadcast %228 : vector<1x8xf32> to vector<16x8xf32>
    %230 = arith.mulf %229, %202 : vector<16x8xf32>
    %231 = arith.subf %138, %230 : vector<16x8xf32>
    %232 = arith.mulf %228, %203 : vector<1x8xf32>
    %233 = arith.subf %140, %232 : vector<1x8xf32>
    %234 = vector.extract_strided_slice %144 {offsets = [1, 0], sizes = [1, 8], strides = [1, 1]} : vector<16x8xf32> to vector<1x8xf32>
    %235 = vector.broadcast %234 : vector<1x8xf32> to vector<16x8xf32>
    %236 = arith.mulf %235, %202 : vector<16x8xf32>
    %237 = arith.subf %144, %236 : vector<16x8xf32>
    %238 = arith.mulf %234, %203 : vector<1x8xf32>
    %239 = arith.subf %146, %238 : vector<1x8xf32>
    %240 = vector.extract_strided_slice %150 {offsets = [1, 0], sizes = [1, 8], strides = [1, 1]} : vector<16x8xf32> to vector<1x8xf32>
    %241 = vector.broadcast %240 : vector<1x8xf32> to vector<16x8xf32>
    %242 = arith.mulf %241, %202 : vector<16x8xf32>
    %243 = arith.subf %150, %242 : vector<16x8xf32>
    %244 = arith.mulf %240, %203 : vector<1x8xf32>
    %245 = arith.subf %152, %244 : vector<1x8xf32>
    %246 = vector.extract_strided_slice %156 {offsets = [1, 0], sizes = [1, 8], strides = [1, 1]} : vector<16x8xf32> to vector<1x8xf32>
    %247 = vector.broadcast %246 : vector<1x8xf32> to vector<16x8xf32>
    %248 = arith.mulf %247, %202 : vector<16x8xf32>
    %249 = arith.subf %156, %248 : vector<16x8xf32>
    %250 = arith.mulf %246, %203 : vector<1x8xf32>
    %251 = arith.subf %158, %250 : vector<1x8xf32>
    %252 = vector.extract_strided_slice %162 {offsets = [1, 0], sizes = [1, 8], strides = [1, 1]} : vector<16x8xf32> to vector<1x8xf32>
    %253 = vector.broadcast %252 : vector<1x8xf32> to vector<16x8xf32>
    %254 = arith.mulf %253, %202 : vector<16x8xf32>
    %255 = arith.subf %162, %254 : vector<16x8xf32>
    %256 = arith.mulf %252, %203 : vector<1x8xf32>
    %257 = arith.subf %164, %256 : vector<1x8xf32>
    %258 = vector.extract_strided_slice %168 {offsets = [1, 0], sizes = [1, 8], strides = [1, 1]} : vector<16x8xf32> to vector<1x8xf32>
    %259 = vector.broadcast %258 : vector<1x8xf32> to vector<16x8xf32>
    %260 = arith.mulf %259, %202 : vector<16x8xf32>
    %261 = arith.subf %168, %260 : vector<16x8xf32>
    %262 = arith.mulf %258, %203 : vector<1x8xf32>
    %263 = arith.subf %170, %262 : vector<1x8xf32>
    %264 = vector.extract_strided_slice %174 {offsets = [1, 0], sizes = [1, 8], strides = [1, 1]} : vector<16x8xf32> to vector<1x8xf32>
    %265 = vector.broadcast %264 : vector<1x8xf32> to vector<16x8xf32>
    %266 = arith.mulf %265, %202 : vector<16x8xf32>
    %267 = arith.subf %174, %266 : vector<16x8xf32>
    %268 = arith.mulf %264, %203 : vector<1x8xf32>
    %269 = arith.subf %176, %268 : vector<1x8xf32>
    %270 = vector.extract_strided_slice %180 {offsets = [1, 0], sizes = [1, 8], strides = [1, 1]} : vector<16x8xf32> to vector<1x8xf32>
    %271 = vector.broadcast %270 : vector<1x8xf32> to vector<16x8xf32>
    %272 = arith.mulf %271, %202 : vector<16x8xf32>
    %273 = arith.subf %180, %272 : vector<16x8xf32>
    %274 = arith.mulf %270, %203 : vector<1x8xf32>
    %275 = arith.subf %182, %274 : vector<1x8xf32>
    %276 = vector.extract_strided_slice %186 {offsets = [1, 0], sizes = [1, 8], strides = [1, 1]} : vector<16x8xf32> to vector<1x8xf32>
    %277 = vector.broadcast %276 : vector<1x8xf32> to vector<16x8xf32>
    %278 = arith.mulf %277, %202 : vector<16x8xf32>
    %279 = arith.subf %186, %278 : vector<16x8xf32>
    %280 = arith.mulf %276, %203 : vector<1x8xf32>
    %281 = arith.subf %188, %280 : vector<1x8xf32>
    %282 = vector.extract_strided_slice %192 {offsets = [1, 0], sizes = [1, 8], strides = [1, 1]} : vector<16x8xf32> to vector<1x8xf32>
    %283 = vector.broadcast %282 : vector<1x8xf32> to vector<16x8xf32>
    %284 = arith.mulf %283, %202 : vector<16x8xf32>
    %285 = arith.subf %192, %284 : vector<16x8xf32>
    %286 = arith.mulf %282, %203 : vector<1x8xf32>
    %287 = arith.subf %194, %286 : vector<1x8xf32>
    %288 = vector.extract_strided_slice %207 {offsets = [2, 0], sizes = [1, 8], strides = [1, 1]} : vector<16x8xf32> to vector<1x8xf32>
    %289 = tpu.reciprocal %288 {approx = true} : vector<1x8xf32> -> vector<1x8xf32>
    %290 = arith.mulf %288, %289 : vector<1x8xf32>
    %cst_23 = arith.constant 2.000000e+00 : f32
    %291 = vector.broadcast %cst_23 : f32 to vector<1x8xf32>
    %292 = arith.subf %291, %290 : vector<1x8xf32>
    %293 = arith.mulf %289, %292 : vector<1x8xf32>
    %294 = vector.broadcast %293 : vector<1x8xf32> to vector<16x8xf32>
    %295 = arith.mulf %207, %294 : vector<16x8xf32>
    %296 = arith.mulf %209, %293 : vector<1x8xf32>
    %297 = vector.extract_strided_slice %213 {offsets = [2, 0], sizes = [1, 8], strides = [1, 1]} : vector<16x8xf32> to vector<1x8xf32>
    %298 = vector.broadcast %297 : vector<1x8xf32> to vector<16x8xf32>
    %299 = arith.mulf %298, %295 : vector<16x8xf32>
    %300 = arith.subf %213, %299 : vector<16x8xf32>
    %301 = arith.mulf %297, %296 : vector<1x8xf32>
    %302 = arith.subf %215, %301 : vector<1x8xf32>
    %303 = vector.extract_strided_slice %219 {offsets = [2, 0], sizes = [1, 8], strides = [1, 1]} : vector<16x8xf32> to vector<1x8xf32>
    %304 = vector.broadcast %303 : vector<1x8xf32> to vector<16x8xf32>
    %305 = arith.mulf %304, %295 : vector<16x8xf32>
    %306 = arith.subf %219, %305 : vector<16x8xf32>
    %307 = arith.mulf %303, %296 : vector<1x8xf32>
    %308 = arith.subf %221, %307 : vector<1x8xf32>
    %309 = vector.extract_strided_slice %225 {offsets = [2, 0], sizes = [1, 8], strides = [1, 1]} : vector<16x8xf32> to vector<1x8xf32>
    %310 = vector.broadcast %309 : vector<1x8xf32> to vector<16x8xf32>
    %311 = arith.mulf %310, %295 : vector<16x8xf32>
    %312 = arith.subf %225, %311 : vector<16x8xf32>
    %313 = arith.mulf %309, %296 : vector<1x8xf32>
    %314 = arith.subf %227, %313 : vector<1x8xf32>
    %315 = vector.extract_strided_slice %231 {offsets = [2, 0], sizes = [1, 8], strides = [1, 1]} : vector<16x8xf32> to vector<1x8xf32>
    %316 = vector.broadcast %315 : vector<1x8xf32> to vector<16x8xf32>
    %317 = arith.mulf %316, %295 : vector<16x8xf32>
    %318 = arith.subf %231, %317 : vector<16x8xf32>
    %319 = arith.mulf %315, %296 : vector<1x8xf32>
    %320 = arith.subf %233, %319 : vector<1x8xf32>
    %321 = vector.extract_strided_slice %237 {offsets = [2, 0], sizes = [1, 8], strides = [1, 1]} : vector<16x8xf32> to vector<1x8xf32>
    %322 = vector.broadcast %321 : vector<1x8xf32> to vector<16x8xf32>
    %323 = arith.mulf %322, %295 : vector<16x8xf32>
    %324 = arith.subf %237, %323 : vector<16x8xf32>
    %325 = arith.mulf %321, %296 : vector<1x8xf32>
    %326 = arith.subf %239, %325 : vector<1x8xf32>
    %327 = vector.extract_strided_slice %243 {offsets = [2, 0], sizes = [1, 8], strides = [1, 1]} : vector<16x8xf32> to vector<1x8xf32>
    %328 = vector.broadcast %327 : vector<1x8xf32> to vector<16x8xf32>
    %329 = arith.mulf %328, %295 : vector<16x8xf32>
    %330 = arith.subf %243, %329 : vector<16x8xf32>
    %331 = arith.mulf %327, %296 : vector<1x8xf32>
    %332 = arith.subf %245, %331 : vector<1x8xf32>
    %333 = vector.extract_strided_slice %249 {offsets = [2, 0], sizes = [1, 8], strides = [1, 1]} : vector<16x8xf32> to vector<1x8xf32>
    %334 = vector.broadcast %333 : vector<1x8xf32> to vector<16x8xf32>
    %335 = arith.mulf %334, %295 : vector<16x8xf32>
    %336 = arith.subf %249, %335 : vector<16x8xf32>
    %337 = arith.mulf %333, %296 : vector<1x8xf32>
    %338 = arith.subf %251, %337 : vector<1x8xf32>
    %339 = vector.extract_strided_slice %255 {offsets = [2, 0], sizes = [1, 8], strides = [1, 1]} : vector<16x8xf32> to vector<1x8xf32>
    %340 = vector.broadcast %339 : vector<1x8xf32> to vector<16x8xf32>
    %341 = arith.mulf %340, %295 : vector<16x8xf32>
    %342 = arith.subf %255, %341 : vector<16x8xf32>
    %343 = arith.mulf %339, %296 : vector<1x8xf32>
    %344 = arith.subf %257, %343 : vector<1x8xf32>
    %345 = vector.extract_strided_slice %261 {offsets = [2, 0], sizes = [1, 8], strides = [1, 1]} : vector<16x8xf32> to vector<1x8xf32>
    %346 = vector.broadcast %345 : vector<1x8xf32> to vector<16x8xf32>
    %347 = arith.mulf %346, %295 : vector<16x8xf32>
    %348 = arith.subf %261, %347 : vector<16x8xf32>
    %349 = arith.mulf %345, %296 : vector<1x8xf32>
    %350 = arith.subf %263, %349 : vector<1x8xf32>
    %351 = vector.extract_strided_slice %267 {offsets = [2, 0], sizes = [1, 8], strides = [1, 1]} : vector<16x8xf32> to vector<1x8xf32>
    %352 = vector.broadcast %351 : vector<1x8xf32> to vector<16x8xf32>
    %353 = arith.mulf %352, %295 : vector<16x8xf32>
    %354 = arith.subf %267, %353 : vector<16x8xf32>
    %355 = arith.mulf %351, %296 : vector<1x8xf32>
    %356 = arith.subf %269, %355 : vector<1x8xf32>
    %357 = vector.extract_strided_slice %273 {offsets = [2, 0], sizes = [1, 8], strides = [1, 1]} : vector<16x8xf32> to vector<1x8xf32>
    %358 = vector.broadcast %357 : vector<1x8xf32> to vector<16x8xf32>
    %359 = arith.mulf %358, %295 : vector<16x8xf32>
    %360 = arith.subf %273, %359 : vector<16x8xf32>
    %361 = arith.mulf %357, %296 : vector<1x8xf32>
    %362 = arith.subf %275, %361 : vector<1x8xf32>
    %363 = vector.extract_strided_slice %279 {offsets = [2, 0], sizes = [1, 8], strides = [1, 1]} : vector<16x8xf32> to vector<1x8xf32>
    %364 = vector.broadcast %363 : vector<1x8xf32> to vector<16x8xf32>
    %365 = arith.mulf %364, %295 : vector<16x8xf32>
    %366 = arith.subf %279, %365 : vector<16x8xf32>
    %367 = arith.mulf %363, %296 : vector<1x8xf32>
    %368 = arith.subf %281, %367 : vector<1x8xf32>
    %369 = vector.extract_strided_slice %285 {offsets = [2, 0], sizes = [1, 8], strides = [1, 1]} : vector<16x8xf32> to vector<1x8xf32>
    %370 = vector.broadcast %369 : vector<1x8xf32> to vector<16x8xf32>
    %371 = arith.mulf %370, %295 : vector<16x8xf32>
    %372 = arith.subf %285, %371 : vector<16x8xf32>
    %373 = arith.mulf %369, %296 : vector<1x8xf32>
    %374 = arith.subf %287, %373 : vector<1x8xf32>
    %375 = vector.extract_strided_slice %300 {offsets = [3, 0], sizes = [1, 8], strides = [1, 1]} : vector<16x8xf32> to vector<1x8xf32>
    %376 = tpu.reciprocal %375 {approx = true} : vector<1x8xf32> -> vector<1x8xf32>
    %377 = arith.mulf %375, %376 : vector<1x8xf32>
    %cst_24 = arith.constant 2.000000e+00 : f32
    %378 = vector.broadcast %cst_24 : f32 to vector<1x8xf32>
    %379 = arith.subf %378, %377 : vector<1x8xf32>
    %380 = arith.mulf %376, %379 : vector<1x8xf32>
    %381 = vector.broadcast %380 : vector<1x8xf32> to vector<16x8xf32>
    %382 = arith.mulf %300, %381 : vector<16x8xf32>
    %383 = arith.mulf %302, %380 : vector<1x8xf32>
    %384 = vector.extract_strided_slice %306 {offsets = [3, 0], sizes = [1, 8], strides = [1, 1]} : vector<16x8xf32> to vector<1x8xf32>
    %385 = vector.broadcast %384 : vector<1x8xf32> to vector<16x8xf32>
    %386 = arith.mulf %385, %382 : vector<16x8xf32>
    %387 = arith.subf %306, %386 : vector<16x8xf32>
    %388 = arith.mulf %384, %383 : vector<1x8xf32>
    %389 = arith.subf %308, %388 : vector<1x8xf32>
    %390 = vector.extract_strided_slice %312 {offsets = [3, 0], sizes = [1, 8], strides = [1, 1]} : vector<16x8xf32> to vector<1x8xf32>
    %391 = vector.broadcast %390 : vector<1x8xf32> to vector<16x8xf32>
    %392 = arith.mulf %391, %382 : vector<16x8xf32>
    %393 = arith.subf %312, %392 : vector<16x8xf32>
    %394 = arith.mulf %390, %383 : vector<1x8xf32>
    %395 = arith.subf %314, %394 : vector<1x8xf32>
    %396 = vector.extract_strided_slice %318 {offsets = [3, 0], sizes = [1, 8], strides = [1, 1]} : vector<16x8xf32> to vector<1x8xf32>
    %397 = vector.broadcast %396 : vector<1x8xf32> to vector<16x8xf32>
    %398 = arith.mulf %397, %382 : vector<16x8xf32>
    %399 = arith.subf %318, %398 : vector<16x8xf32>
    %400 = arith.mulf %396, %383 : vector<1x8xf32>
    %401 = arith.subf %320, %400 : vector<1x8xf32>
    %402 = vector.extract_strided_slice %324 {offsets = [3, 0], sizes = [1, 8], strides = [1, 1]} : vector<16x8xf32> to vector<1x8xf32>
    %403 = vector.broadcast %402 : vector<1x8xf32> to vector<16x8xf32>
    %404 = arith.mulf %403, %382 : vector<16x8xf32>
    %405 = arith.subf %324, %404 : vector<16x8xf32>
    %406 = arith.mulf %402, %383 : vector<1x8xf32>
    %407 = arith.subf %326, %406 : vector<1x8xf32>
    %408 = vector.extract_strided_slice %330 {offsets = [3, 0], sizes = [1, 8], strides = [1, 1]} : vector<16x8xf32> to vector<1x8xf32>
    %409 = vector.broadcast %408 : vector<1x8xf32> to vector<16x8xf32>
    %410 = arith.mulf %409, %382 : vector<16x8xf32>
    %411 = arith.subf %330, %410 : vector<16x8xf32>
    %412 = arith.mulf %408, %383 : vector<1x8xf32>
    %413 = arith.subf %332, %412 : vector<1x8xf32>
    %414 = vector.extract_strided_slice %336 {offsets = [3, 0], sizes = [1, 8], strides = [1, 1]} : vector<16x8xf32> to vector<1x8xf32>
    %415 = vector.broadcast %414 : vector<1x8xf32> to vector<16x8xf32>
    %416 = arith.mulf %415, %382 : vector<16x8xf32>
    %417 = arith.subf %336, %416 : vector<16x8xf32>
    %418 = arith.mulf %414, %383 : vector<1x8xf32>
    %419 = arith.subf %338, %418 : vector<1x8xf32>
    %420 = vector.extract_strided_slice %342 {offsets = [3, 0], sizes = [1, 8], strides = [1, 1]} : vector<16x8xf32> to vector<1x8xf32>
    %421 = vector.broadcast %420 : vector<1x8xf32> to vector<16x8xf32>
    %422 = arith.mulf %421, %382 : vector<16x8xf32>
    %423 = arith.subf %342, %422 : vector<16x8xf32>
    %424 = arith.mulf %420, %383 : vector<1x8xf32>
    %425 = arith.subf %344, %424 : vector<1x8xf32>
    %426 = vector.extract_strided_slice %348 {offsets = [3, 0], sizes = [1, 8], strides = [1, 1]} : vector<16x8xf32> to vector<1x8xf32>
    %427 = vector.broadcast %426 : vector<1x8xf32> to vector<16x8xf32>
    %428 = arith.mulf %427, %382 : vector<16x8xf32>
    %429 = arith.subf %348, %428 : vector<16x8xf32>
    %430 = arith.mulf %426, %383 : vector<1x8xf32>
    %431 = arith.subf %350, %430 : vector<1x8xf32>
    %432 = vector.extract_strided_slice %354 {offsets = [3, 0], sizes = [1, 8], strides = [1, 1]} : vector<16x8xf32> to vector<1x8xf32>
    %433 = vector.broadcast %432 : vector<1x8xf32> to vector<16x8xf32>
    %434 = arith.mulf %433, %382 : vector<16x8xf32>
    %435 = arith.subf %354, %434 : vector<16x8xf32>
    %436 = arith.mulf %432, %383 : vector<1x8xf32>
    %437 = arith.subf %356, %436 : vector<1x8xf32>
    %438 = vector.extract_strided_slice %360 {offsets = [3, 0], sizes = [1, 8], strides = [1, 1]} : vector<16x8xf32> to vector<1x8xf32>
    %439 = vector.broadcast %438 : vector<1x8xf32> to vector<16x8xf32>
    %440 = arith.mulf %439, %382 : vector<16x8xf32>
    %441 = arith.subf %360, %440 : vector<16x8xf32>
    %442 = arith.mulf %438, %383 : vector<1x8xf32>
    %443 = arith.subf %362, %442 : vector<1x8xf32>
    %444 = vector.extract_strided_slice %366 {offsets = [3, 0], sizes = [1, 8], strides = [1, 1]} : vector<16x8xf32> to vector<1x8xf32>
    %445 = vector.broadcast %444 : vector<1x8xf32> to vector<16x8xf32>
    %446 = arith.mulf %445, %382 : vector<16x8xf32>
    %447 = arith.subf %366, %446 : vector<16x8xf32>
    %448 = arith.mulf %444, %383 : vector<1x8xf32>
    %449 = arith.subf %368, %448 : vector<1x8xf32>
    %450 = vector.extract_strided_slice %372 {offsets = [3, 0], sizes = [1, 8], strides = [1, 1]} : vector<16x8xf32> to vector<1x8xf32>
    %451 = vector.broadcast %450 : vector<1x8xf32> to vector<16x8xf32>
    %452 = arith.mulf %451, %382 : vector<16x8xf32>
    %453 = arith.subf %372, %452 : vector<16x8xf32>
    %454 = arith.mulf %450, %383 : vector<1x8xf32>
    %455 = arith.subf %374, %454 : vector<1x8xf32>
    %456 = vector.extract_strided_slice %387 {offsets = [4, 0], sizes = [1, 8], strides = [1, 1]} : vector<16x8xf32> to vector<1x8xf32>
    %457 = tpu.reciprocal %456 {approx = true} : vector<1x8xf32> -> vector<1x8xf32>
    %458 = arith.mulf %456, %457 : vector<1x8xf32>
    %cst_25 = arith.constant 2.000000e+00 : f32
    %459 = vector.broadcast %cst_25 : f32 to vector<1x8xf32>
    %460 = arith.subf %459, %458 : vector<1x8xf32>
    %461 = arith.mulf %457, %460 : vector<1x8xf32>
    %462 = vector.broadcast %461 : vector<1x8xf32> to vector<16x8xf32>
    %463 = arith.mulf %387, %462 : vector<16x8xf32>
    %464 = arith.mulf %389, %461 : vector<1x8xf32>
    %465 = vector.extract_strided_slice %393 {offsets = [4, 0], sizes = [1, 8], strides = [1, 1]} : vector<16x8xf32> to vector<1x8xf32>
    %466 = vector.broadcast %465 : vector<1x8xf32> to vector<16x8xf32>
    %467 = arith.mulf %466, %463 : vector<16x8xf32>
    %468 = arith.subf %393, %467 : vector<16x8xf32>
    %469 = arith.mulf %465, %464 : vector<1x8xf32>
    %470 = arith.subf %395, %469 : vector<1x8xf32>
    %471 = vector.extract_strided_slice %399 {offsets = [4, 0], sizes = [1, 8], strides = [1, 1]} : vector<16x8xf32> to vector<1x8xf32>
    %472 = vector.broadcast %471 : vector<1x8xf32> to vector<16x8xf32>
    %473 = arith.mulf %472, %463 : vector<16x8xf32>
    %474 = arith.subf %399, %473 : vector<16x8xf32>
    %475 = arith.mulf %471, %464 : vector<1x8xf32>
    %476 = arith.subf %401, %475 : vector<1x8xf32>
    %477 = vector.extract_strided_slice %405 {offsets = [4, 0], sizes = [1, 8], strides = [1, 1]} : vector<16x8xf32> to vector<1x8xf32>
    %478 = vector.broadcast %477 : vector<1x8xf32> to vector<16x8xf32>
    %479 = arith.mulf %478, %463 : vector<16x8xf32>
    %480 = arith.subf %405, %479 : vector<16x8xf32>
    %481 = arith.mulf %477, %464 : vector<1x8xf32>
    %482 = arith.subf %407, %481 : vector<1x8xf32>
    %483 = vector.extract_strided_slice %411 {offsets = [4, 0], sizes = [1, 8], strides = [1, 1]} : vector<16x8xf32> to vector<1x8xf32>
    %484 = vector.broadcast %483 : vector<1x8xf32> to vector<16x8xf32>
    %485 = arith.mulf %484, %463 : vector<16x8xf32>
    %486 = arith.subf %411, %485 : vector<16x8xf32>
    %487 = arith.mulf %483, %464 : vector<1x8xf32>
    %488 = arith.subf %413, %487 : vector<1x8xf32>
    %489 = vector.extract_strided_slice %417 {offsets = [4, 0], sizes = [1, 8], strides = [1, 1]} : vector<16x8xf32> to vector<1x8xf32>
    %490 = vector.broadcast %489 : vector<1x8xf32> to vector<16x8xf32>
    %491 = arith.mulf %490, %463 : vector<16x8xf32>
    %492 = arith.subf %417, %491 : vector<16x8xf32>
    %493 = arith.mulf %489, %464 : vector<1x8xf32>
    %494 = arith.subf %419, %493 : vector<1x8xf32>
    %495 = vector.extract_strided_slice %423 {offsets = [4, 0], sizes = [1, 8], strides = [1, 1]} : vector<16x8xf32> to vector<1x8xf32>
    %496 = vector.broadcast %495 : vector<1x8xf32> to vector<16x8xf32>
    %497 = arith.mulf %496, %463 : vector<16x8xf32>
    %498 = arith.subf %423, %497 : vector<16x8xf32>
    %499 = arith.mulf %495, %464 : vector<1x8xf32>
    %500 = arith.subf %425, %499 : vector<1x8xf32>
    %501 = vector.extract_strided_slice %429 {offsets = [4, 0], sizes = [1, 8], strides = [1, 1]} : vector<16x8xf32> to vector<1x8xf32>
    %502 = vector.broadcast %501 : vector<1x8xf32> to vector<16x8xf32>
    %503 = arith.mulf %502, %463 : vector<16x8xf32>
    %504 = arith.subf %429, %503 : vector<16x8xf32>
    %505 = arith.mulf %501, %464 : vector<1x8xf32>
    %506 = arith.subf %431, %505 : vector<1x8xf32>
    %507 = vector.extract_strided_slice %435 {offsets = [4, 0], sizes = [1, 8], strides = [1, 1]} : vector<16x8xf32> to vector<1x8xf32>
    %508 = vector.broadcast %507 : vector<1x8xf32> to vector<16x8xf32>
    %509 = arith.mulf %508, %463 : vector<16x8xf32>
    %510 = arith.subf %435, %509 : vector<16x8xf32>
    %511 = arith.mulf %507, %464 : vector<1x8xf32>
    %512 = arith.subf %437, %511 : vector<1x8xf32>
    %513 = vector.extract_strided_slice %441 {offsets = [4, 0], sizes = [1, 8], strides = [1, 1]} : vector<16x8xf32> to vector<1x8xf32>
    %514 = vector.broadcast %513 : vector<1x8xf32> to vector<16x8xf32>
    %515 = arith.mulf %514, %463 : vector<16x8xf32>
    %516 = arith.subf %441, %515 : vector<16x8xf32>
    %517 = arith.mulf %513, %464 : vector<1x8xf32>
    %518 = arith.subf %443, %517 : vector<1x8xf32>
    %519 = vector.extract_strided_slice %447 {offsets = [4, 0], sizes = [1, 8], strides = [1, 1]} : vector<16x8xf32> to vector<1x8xf32>
    %520 = vector.broadcast %519 : vector<1x8xf32> to vector<16x8xf32>
    %521 = arith.mulf %520, %463 : vector<16x8xf32>
    %522 = arith.subf %447, %521 : vector<16x8xf32>
    %523 = arith.mulf %519, %464 : vector<1x8xf32>
    %524 = arith.subf %449, %523 : vector<1x8xf32>
    %525 = vector.extract_strided_slice %453 {offsets = [4, 0], sizes = [1, 8], strides = [1, 1]} : vector<16x8xf32> to vector<1x8xf32>
    %526 = vector.broadcast %525 : vector<1x8xf32> to vector<16x8xf32>
    %527 = arith.mulf %526, %463 : vector<16x8xf32>
    %528 = arith.subf %453, %527 : vector<16x8xf32>
    %529 = arith.mulf %525, %464 : vector<1x8xf32>
    %530 = arith.subf %455, %529 : vector<1x8xf32>
    %531 = vector.extract_strided_slice %468 {offsets = [5, 0], sizes = [1, 8], strides = [1, 1]} : vector<16x8xf32> to vector<1x8xf32>
    %532 = tpu.reciprocal %531 {approx = true} : vector<1x8xf32> -> vector<1x8xf32>
    %533 = arith.mulf %531, %532 : vector<1x8xf32>
    %cst_26 = arith.constant 2.000000e+00 : f32
    %534 = vector.broadcast %cst_26 : f32 to vector<1x8xf32>
    %535 = arith.subf %534, %533 : vector<1x8xf32>
    %536 = arith.mulf %532, %535 : vector<1x8xf32>
    %537 = vector.broadcast %536 : vector<1x8xf32> to vector<16x8xf32>
    %538 = arith.mulf %468, %537 : vector<16x8xf32>
    %539 = arith.mulf %470, %536 : vector<1x8xf32>
    %540 = vector.extract_strided_slice %474 {offsets = [5, 0], sizes = [1, 8], strides = [1, 1]} : vector<16x8xf32> to vector<1x8xf32>
    %541 = vector.broadcast %540 : vector<1x8xf32> to vector<16x8xf32>
    %542 = arith.mulf %541, %538 : vector<16x8xf32>
    %543 = arith.subf %474, %542 : vector<16x8xf32>
    %544 = arith.mulf %540, %539 : vector<1x8xf32>
    %545 = arith.subf %476, %544 : vector<1x8xf32>
    %546 = vector.extract_strided_slice %480 {offsets = [5, 0], sizes = [1, 8], strides = [1, 1]} : vector<16x8xf32> to vector<1x8xf32>
    %547 = vector.broadcast %546 : vector<1x8xf32> to vector<16x8xf32>
    %548 = arith.mulf %547, %538 : vector<16x8xf32>
    %549 = arith.subf %480, %548 : vector<16x8xf32>
    %550 = arith.mulf %546, %539 : vector<1x8xf32>
    %551 = arith.subf %482, %550 : vector<1x8xf32>
    %552 = vector.extract_strided_slice %486 {offsets = [5, 0], sizes = [1, 8], strides = [1, 1]} : vector<16x8xf32> to vector<1x8xf32>
    %553 = vector.broadcast %552 : vector<1x8xf32> to vector<16x8xf32>
    %554 = arith.mulf %553, %538 : vector<16x8xf32>
    %555 = arith.subf %486, %554 : vector<16x8xf32>
    %556 = arith.mulf %552, %539 : vector<1x8xf32>
    %557 = arith.subf %488, %556 : vector<1x8xf32>
    %558 = vector.extract_strided_slice %492 {offsets = [5, 0], sizes = [1, 8], strides = [1, 1]} : vector<16x8xf32> to vector<1x8xf32>
    %559 = vector.broadcast %558 : vector<1x8xf32> to vector<16x8xf32>
    %560 = arith.mulf %559, %538 : vector<16x8xf32>
    %561 = arith.subf %492, %560 : vector<16x8xf32>
    %562 = arith.mulf %558, %539 : vector<1x8xf32>
    %563 = arith.subf %494, %562 : vector<1x8xf32>
    %564 = vector.extract_strided_slice %498 {offsets = [5, 0], sizes = [1, 8], strides = [1, 1]} : vector<16x8xf32> to vector<1x8xf32>
    %565 = vector.broadcast %564 : vector<1x8xf32> to vector<16x8xf32>
    %566 = arith.mulf %565, %538 : vector<16x8xf32>
    %567 = arith.subf %498, %566 : vector<16x8xf32>
    %568 = arith.mulf %564, %539 : vector<1x8xf32>
    %569 = arith.subf %500, %568 : vector<1x8xf32>
    %570 = vector.extract_strided_slice %504 {offsets = [5, 0], sizes = [1, 8], strides = [1, 1]} : vector<16x8xf32> to vector<1x8xf32>
    %571 = vector.broadcast %570 : vector<1x8xf32> to vector<16x8xf32>
    %572 = arith.mulf %571, %538 : vector<16x8xf32>
    %573 = arith.subf %504, %572 : vector<16x8xf32>
    %574 = arith.mulf %570, %539 : vector<1x8xf32>
    %575 = arith.subf %506, %574 : vector<1x8xf32>
    %576 = vector.extract_strided_slice %510 {offsets = [5, 0], sizes = [1, 8], strides = [1, 1]} : vector<16x8xf32> to vector<1x8xf32>
    %577 = vector.broadcast %576 : vector<1x8xf32> to vector<16x8xf32>
    %578 = arith.mulf %577, %538 : vector<16x8xf32>
    %579 = arith.subf %510, %578 : vector<16x8xf32>
    %580 = arith.mulf %576, %539 : vector<1x8xf32>
    %581 = arith.subf %512, %580 : vector<1x8xf32>
    %582 = vector.extract_strided_slice %516 {offsets = [5, 0], sizes = [1, 8], strides = [1, 1]} : vector<16x8xf32> to vector<1x8xf32>
    %583 = vector.broadcast %582 : vector<1x8xf32> to vector<16x8xf32>
    %584 = arith.mulf %583, %538 : vector<16x8xf32>
    %585 = arith.subf %516, %584 : vector<16x8xf32>
    %586 = arith.mulf %582, %539 : vector<1x8xf32>
    %587 = arith.subf %518, %586 : vector<1x8xf32>
    %588 = vector.extract_strided_slice %522 {offsets = [5, 0], sizes = [1, 8], strides = [1, 1]} : vector<16x8xf32> to vector<1x8xf32>
    %589 = vector.broadcast %588 : vector<1x8xf32> to vector<16x8xf32>
    %590 = arith.mulf %589, %538 : vector<16x8xf32>
    %591 = arith.subf %522, %590 : vector<16x8xf32>
    %592 = arith.mulf %588, %539 : vector<1x8xf32>
    %593 = arith.subf %524, %592 : vector<1x8xf32>
    %594 = vector.extract_strided_slice %528 {offsets = [5, 0], sizes = [1, 8], strides = [1, 1]} : vector<16x8xf32> to vector<1x8xf32>
    %595 = vector.broadcast %594 : vector<1x8xf32> to vector<16x8xf32>
    %596 = arith.mulf %595, %538 : vector<16x8xf32>
    %597 = arith.subf %528, %596 : vector<16x8xf32>
    %598 = arith.mulf %594, %539 : vector<1x8xf32>
    %599 = arith.subf %530, %598 : vector<1x8xf32>
    %600 = vector.extract_strided_slice %543 {offsets = [6, 0], sizes = [1, 8], strides = [1, 1]} : vector<16x8xf32> to vector<1x8xf32>
    %601 = tpu.reciprocal %600 {approx = true} : vector<1x8xf32> -> vector<1x8xf32>
    %602 = arith.mulf %600, %601 : vector<1x8xf32>
    %cst_27 = arith.constant 2.000000e+00 : f32
    %603 = vector.broadcast %cst_27 : f32 to vector<1x8xf32>
    %604 = arith.subf %603, %602 : vector<1x8xf32>
    %605 = arith.mulf %601, %604 : vector<1x8xf32>
    %606 = vector.broadcast %605 : vector<1x8xf32> to vector<16x8xf32>
    %607 = arith.mulf %543, %606 : vector<16x8xf32>
    %608 = arith.mulf %545, %605 : vector<1x8xf32>
    %609 = vector.extract_strided_slice %549 {offsets = [6, 0], sizes = [1, 8], strides = [1, 1]} : vector<16x8xf32> to vector<1x8xf32>
    %610 = vector.broadcast %609 : vector<1x8xf32> to vector<16x8xf32>
    %611 = arith.mulf %610, %607 : vector<16x8xf32>
    %612 = arith.subf %549, %611 : vector<16x8xf32>
    %613 = arith.mulf %609, %608 : vector<1x8xf32>
    %614 = arith.subf %551, %613 : vector<1x8xf32>
    %615 = vector.extract_strided_slice %555 {offsets = [6, 0], sizes = [1, 8], strides = [1, 1]} : vector<16x8xf32> to vector<1x8xf32>
    %616 = vector.broadcast %615 : vector<1x8xf32> to vector<16x8xf32>
    %617 = arith.mulf %616, %607 : vector<16x8xf32>
    %618 = arith.subf %555, %617 : vector<16x8xf32>
    %619 = arith.mulf %615, %608 : vector<1x8xf32>
    %620 = arith.subf %557, %619 : vector<1x8xf32>
    %621 = vector.extract_strided_slice %561 {offsets = [6, 0], sizes = [1, 8], strides = [1, 1]} : vector<16x8xf32> to vector<1x8xf32>
    %622 = vector.broadcast %621 : vector<1x8xf32> to vector<16x8xf32>
    %623 = arith.mulf %622, %607 : vector<16x8xf32>
    %624 = arith.subf %561, %623 : vector<16x8xf32>
    %625 = arith.mulf %621, %608 : vector<1x8xf32>
    %626 = arith.subf %563, %625 : vector<1x8xf32>
    %627 = vector.extract_strided_slice %567 {offsets = [6, 0], sizes = [1, 8], strides = [1, 1]} : vector<16x8xf32> to vector<1x8xf32>
    %628 = vector.broadcast %627 : vector<1x8xf32> to vector<16x8xf32>
    %629 = arith.mulf %628, %607 : vector<16x8xf32>
    %630 = arith.subf %567, %629 : vector<16x8xf32>
    %631 = arith.mulf %627, %608 : vector<1x8xf32>
    %632 = arith.subf %569, %631 : vector<1x8xf32>
    %633 = vector.extract_strided_slice %573 {offsets = [6, 0], sizes = [1, 8], strides = [1, 1]} : vector<16x8xf32> to vector<1x8xf32>
    %634 = vector.broadcast %633 : vector<1x8xf32> to vector<16x8xf32>
    %635 = arith.mulf %634, %607 : vector<16x8xf32>
    %636 = arith.subf %573, %635 : vector<16x8xf32>
    %637 = arith.mulf %633, %608 : vector<1x8xf32>
    %638 = arith.subf %575, %637 : vector<1x8xf32>
    %639 = vector.extract_strided_slice %579 {offsets = [6, 0], sizes = [1, 8], strides = [1, 1]} : vector<16x8xf32> to vector<1x8xf32>
    %640 = vector.broadcast %639 : vector<1x8xf32> to vector<16x8xf32>
    %641 = arith.mulf %640, %607 : vector<16x8xf32>
    %642 = arith.subf %579, %641 : vector<16x8xf32>
    %643 = arith.mulf %639, %608 : vector<1x8xf32>
    %644 = arith.subf %581, %643 : vector<1x8xf32>
    %645 = vector.extract_strided_slice %585 {offsets = [6, 0], sizes = [1, 8], strides = [1, 1]} : vector<16x8xf32> to vector<1x8xf32>
    %646 = vector.broadcast %645 : vector<1x8xf32> to vector<16x8xf32>
    %647 = arith.mulf %646, %607 : vector<16x8xf32>
    %648 = arith.subf %585, %647 : vector<16x8xf32>
    %649 = arith.mulf %645, %608 : vector<1x8xf32>
    %650 = arith.subf %587, %649 : vector<1x8xf32>
    %651 = vector.extract_strided_slice %591 {offsets = [6, 0], sizes = [1, 8], strides = [1, 1]} : vector<16x8xf32> to vector<1x8xf32>
    %652 = vector.broadcast %651 : vector<1x8xf32> to vector<16x8xf32>
    %653 = arith.mulf %652, %607 : vector<16x8xf32>
    %654 = arith.subf %591, %653 : vector<16x8xf32>
    %655 = arith.mulf %651, %608 : vector<1x8xf32>
    %656 = arith.subf %593, %655 : vector<1x8xf32>
    %657 = vector.extract_strided_slice %597 {offsets = [6, 0], sizes = [1, 8], strides = [1, 1]} : vector<16x8xf32> to vector<1x8xf32>
    %658 = vector.broadcast %657 : vector<1x8xf32> to vector<16x8xf32>
    %659 = arith.mulf %658, %607 : vector<16x8xf32>
    %660 = arith.subf %597, %659 : vector<16x8xf32>
    %661 = arith.mulf %657, %608 : vector<1x8xf32>
    %662 = arith.subf %599, %661 : vector<1x8xf32>
    %663 = vector.extract_strided_slice %612 {offsets = [7, 0], sizes = [1, 8], strides = [1, 1]} : vector<16x8xf32> to vector<1x8xf32>
    %664 = tpu.reciprocal %663 {approx = true} : vector<1x8xf32> -> vector<1x8xf32>
    %665 = arith.mulf %663, %664 : vector<1x8xf32>
    %cst_28 = arith.constant 2.000000e+00 : f32
    %666 = vector.broadcast %cst_28 : f32 to vector<1x8xf32>
    %667 = arith.subf %666, %665 : vector<1x8xf32>
    %668 = arith.mulf %664, %667 : vector<1x8xf32>
    %669 = vector.broadcast %668 : vector<1x8xf32> to vector<16x8xf32>
    %670 = arith.mulf %612, %669 : vector<16x8xf32>
    %671 = arith.mulf %614, %668 : vector<1x8xf32>
    %672 = vector.extract_strided_slice %618 {offsets = [7, 0], sizes = [1, 8], strides = [1, 1]} : vector<16x8xf32> to vector<1x8xf32>
    %673 = vector.broadcast %672 : vector<1x8xf32> to vector<16x8xf32>
    %674 = arith.mulf %673, %670 : vector<16x8xf32>
    %675 = arith.subf %618, %674 : vector<16x8xf32>
    %676 = arith.mulf %672, %671 : vector<1x8xf32>
    %677 = arith.subf %620, %676 : vector<1x8xf32>
    %678 = vector.extract_strided_slice %624 {offsets = [7, 0], sizes = [1, 8], strides = [1, 1]} : vector<16x8xf32> to vector<1x8xf32>
    %679 = vector.broadcast %678 : vector<1x8xf32> to vector<16x8xf32>
    %680 = arith.mulf %679, %670 : vector<16x8xf32>
    %681 = arith.subf %624, %680 : vector<16x8xf32>
    %682 = arith.mulf %678, %671 : vector<1x8xf32>
    %683 = arith.subf %626, %682 : vector<1x8xf32>
    %684 = vector.extract_strided_slice %630 {offsets = [7, 0], sizes = [1, 8], strides = [1, 1]} : vector<16x8xf32> to vector<1x8xf32>
    %685 = vector.broadcast %684 : vector<1x8xf32> to vector<16x8xf32>
    %686 = arith.mulf %685, %670 : vector<16x8xf32>
    %687 = arith.subf %630, %686 : vector<16x8xf32>
    %688 = arith.mulf %684, %671 : vector<1x8xf32>
    %689 = arith.subf %632, %688 : vector<1x8xf32>
    %690 = vector.extract_strided_slice %636 {offsets = [7, 0], sizes = [1, 8], strides = [1, 1]} : vector<16x8xf32> to vector<1x8xf32>
    %691 = vector.broadcast %690 : vector<1x8xf32> to vector<16x8xf32>
    %692 = arith.mulf %691, %670 : vector<16x8xf32>
    %693 = arith.subf %636, %692 : vector<16x8xf32>
    %694 = arith.mulf %690, %671 : vector<1x8xf32>
    %695 = arith.subf %638, %694 : vector<1x8xf32>
    %696 = vector.extract_strided_slice %642 {offsets = [7, 0], sizes = [1, 8], strides = [1, 1]} : vector<16x8xf32> to vector<1x8xf32>
    %697 = vector.broadcast %696 : vector<1x8xf32> to vector<16x8xf32>
    %698 = arith.mulf %697, %670 : vector<16x8xf32>
    %699 = arith.subf %642, %698 : vector<16x8xf32>
    %700 = arith.mulf %696, %671 : vector<1x8xf32>
    %701 = arith.subf %644, %700 : vector<1x8xf32>
    %702 = vector.extract_strided_slice %648 {offsets = [7, 0], sizes = [1, 8], strides = [1, 1]} : vector<16x8xf32> to vector<1x8xf32>
    %703 = vector.broadcast %702 : vector<1x8xf32> to vector<16x8xf32>
    %704 = arith.mulf %703, %670 : vector<16x8xf32>
    %705 = arith.subf %648, %704 : vector<16x8xf32>
    %706 = arith.mulf %702, %671 : vector<1x8xf32>
    %707 = arith.subf %650, %706 : vector<1x8xf32>
    %708 = vector.extract_strided_slice %654 {offsets = [7, 0], sizes = [1, 8], strides = [1, 1]} : vector<16x8xf32> to vector<1x8xf32>
    %709 = vector.broadcast %708 : vector<1x8xf32> to vector<16x8xf32>
    %710 = arith.mulf %709, %670 : vector<16x8xf32>
    %711 = arith.subf %654, %710 : vector<16x8xf32>
    %712 = arith.mulf %708, %671 : vector<1x8xf32>
    %713 = arith.subf %656, %712 : vector<1x8xf32>
    %714 = vector.extract_strided_slice %660 {offsets = [7, 0], sizes = [1, 8], strides = [1, 1]} : vector<16x8xf32> to vector<1x8xf32>
    %715 = vector.broadcast %714 : vector<1x8xf32> to vector<16x8xf32>
    %716 = arith.mulf %715, %670 : vector<16x8xf32>
    %717 = arith.subf %660, %716 : vector<16x8xf32>
    %718 = arith.mulf %714, %671 : vector<1x8xf32>
    %719 = arith.subf %662, %718 : vector<1x8xf32>
    %720 = vector.extract_strided_slice %675 {offsets = [8, 0], sizes = [1, 8], strides = [1, 1]} : vector<16x8xf32> to vector<1x8xf32>
    %721 = tpu.reciprocal %720 {approx = true} : vector<1x8xf32> -> vector<1x8xf32>
    %722 = arith.mulf %720, %721 : vector<1x8xf32>
    %cst_29 = arith.constant 2.000000e+00 : f32
    %723 = vector.broadcast %cst_29 : f32 to vector<1x8xf32>
    %724 = arith.subf %723, %722 : vector<1x8xf32>
    %725 = arith.mulf %721, %724 : vector<1x8xf32>
    %726 = vector.broadcast %725 : vector<1x8xf32> to vector<16x8xf32>
    %727 = arith.mulf %675, %726 : vector<16x8xf32>
    %728 = arith.mulf %677, %725 : vector<1x8xf32>
    %729 = vector.extract_strided_slice %681 {offsets = [8, 0], sizes = [1, 8], strides = [1, 1]} : vector<16x8xf32> to vector<1x8xf32>
    %730 = vector.broadcast %729 : vector<1x8xf32> to vector<16x8xf32>
    %731 = arith.mulf %730, %727 : vector<16x8xf32>
    %732 = arith.subf %681, %731 : vector<16x8xf32>
    %733 = arith.mulf %729, %728 : vector<1x8xf32>
    %734 = arith.subf %683, %733 : vector<1x8xf32>
    %735 = vector.extract_strided_slice %687 {offsets = [8, 0], sizes = [1, 8], strides = [1, 1]} : vector<16x8xf32> to vector<1x8xf32>
    %736 = vector.broadcast %735 : vector<1x8xf32> to vector<16x8xf32>
    %737 = arith.mulf %736, %727 : vector<16x8xf32>
    %738 = arith.subf %687, %737 : vector<16x8xf32>
    %739 = arith.mulf %735, %728 : vector<1x8xf32>
    %740 = arith.subf %689, %739 : vector<1x8xf32>
    %741 = vector.extract_strided_slice %693 {offsets = [8, 0], sizes = [1, 8], strides = [1, 1]} : vector<16x8xf32> to vector<1x8xf32>
    %742 = vector.broadcast %741 : vector<1x8xf32> to vector<16x8xf32>
    %743 = arith.mulf %742, %727 : vector<16x8xf32>
    %744 = arith.subf %693, %743 : vector<16x8xf32>
    %745 = arith.mulf %741, %728 : vector<1x8xf32>
    %746 = arith.subf %695, %745 : vector<1x8xf32>
    %747 = vector.extract_strided_slice %699 {offsets = [8, 0], sizes = [1, 8], strides = [1, 1]} : vector<16x8xf32> to vector<1x8xf32>
    %748 = vector.broadcast %747 : vector<1x8xf32> to vector<16x8xf32>
    %749 = arith.mulf %748, %727 : vector<16x8xf32>
    %750 = arith.subf %699, %749 : vector<16x8xf32>
    %751 = arith.mulf %747, %728 : vector<1x8xf32>
    %752 = arith.subf %701, %751 : vector<1x8xf32>
    %753 = vector.extract_strided_slice %705 {offsets = [8, 0], sizes = [1, 8], strides = [1, 1]} : vector<16x8xf32> to vector<1x8xf32>
    %754 = vector.broadcast %753 : vector<1x8xf32> to vector<16x8xf32>
    %755 = arith.mulf %754, %727 : vector<16x8xf32>
    %756 = arith.subf %705, %755 : vector<16x8xf32>
    %757 = arith.mulf %753, %728 : vector<1x8xf32>
    %758 = arith.subf %707, %757 : vector<1x8xf32>
    %759 = vector.extract_strided_slice %711 {offsets = [8, 0], sizes = [1, 8], strides = [1, 1]} : vector<16x8xf32> to vector<1x8xf32>
    %760 = vector.broadcast %759 : vector<1x8xf32> to vector<16x8xf32>
    %761 = arith.mulf %760, %727 : vector<16x8xf32>
    %762 = arith.subf %711, %761 : vector<16x8xf32>
    %763 = arith.mulf %759, %728 : vector<1x8xf32>
    %764 = arith.subf %713, %763 : vector<1x8xf32>
    %765 = vector.extract_strided_slice %717 {offsets = [8, 0], sizes = [1, 8], strides = [1, 1]} : vector<16x8xf32> to vector<1x8xf32>
    %766 = vector.broadcast %765 : vector<1x8xf32> to vector<16x8xf32>
    %767 = arith.mulf %766, %727 : vector<16x8xf32>
    %768 = arith.subf %717, %767 : vector<16x8xf32>
    %769 = arith.mulf %765, %728 : vector<1x8xf32>
    %770 = arith.subf %719, %769 : vector<1x8xf32>
    %771 = vector.extract_strided_slice %732 {offsets = [9, 0], sizes = [1, 8], strides = [1, 1]} : vector<16x8xf32> to vector<1x8xf32>
    %772 = tpu.reciprocal %771 {approx = true} : vector<1x8xf32> -> vector<1x8xf32>
    %773 = arith.mulf %771, %772 : vector<1x8xf32>
    %cst_30 = arith.constant 2.000000e+00 : f32
    %774 = vector.broadcast %cst_30 : f32 to vector<1x8xf32>
    %775 = arith.subf %774, %773 : vector<1x8xf32>
    %776 = arith.mulf %772, %775 : vector<1x8xf32>
    %777 = vector.broadcast %776 : vector<1x8xf32> to vector<16x8xf32>
    %778 = arith.mulf %732, %777 : vector<16x8xf32>
    %779 = arith.mulf %734, %776 : vector<1x8xf32>
    %780 = vector.extract_strided_slice %738 {offsets = [9, 0], sizes = [1, 8], strides = [1, 1]} : vector<16x8xf32> to vector<1x8xf32>
    %781 = vector.broadcast %780 : vector<1x8xf32> to vector<16x8xf32>
    %782 = arith.mulf %781, %778 : vector<16x8xf32>
    %783 = arith.subf %738, %782 : vector<16x8xf32>
    %784 = arith.mulf %780, %779 : vector<1x8xf32>
    %785 = arith.subf %740, %784 : vector<1x8xf32>
    %786 = vector.extract_strided_slice %744 {offsets = [9, 0], sizes = [1, 8], strides = [1, 1]} : vector<16x8xf32> to vector<1x8xf32>
    %787 = vector.broadcast %786 : vector<1x8xf32> to vector<16x8xf32>
    %788 = arith.mulf %787, %778 : vector<16x8xf32>
    %789 = arith.subf %744, %788 : vector<16x8xf32>
    %790 = arith.mulf %786, %779 : vector<1x8xf32>
    %791 = arith.subf %746, %790 : vector<1x8xf32>
    %792 = vector.extract_strided_slice %750 {offsets = [9, 0], sizes = [1, 8], strides = [1, 1]} : vector<16x8xf32> to vector<1x8xf32>
    %793 = vector.broadcast %792 : vector<1x8xf32> to vector<16x8xf32>
    %794 = arith.mulf %793, %778 : vector<16x8xf32>
    %795 = arith.subf %750, %794 : vector<16x8xf32>
    %796 = arith.mulf %792, %779 : vector<1x8xf32>
    %797 = arith.subf %752, %796 : vector<1x8xf32>
    %798 = vector.extract_strided_slice %756 {offsets = [9, 0], sizes = [1, 8], strides = [1, 1]} : vector<16x8xf32> to vector<1x8xf32>
    %799 = vector.broadcast %798 : vector<1x8xf32> to vector<16x8xf32>
    %800 = arith.mulf %799, %778 : vector<16x8xf32>
    %801 = arith.subf %756, %800 : vector<16x8xf32>
    %802 = arith.mulf %798, %779 : vector<1x8xf32>
    %803 = arith.subf %758, %802 : vector<1x8xf32>
    %804 = vector.extract_strided_slice %762 {offsets = [9, 0], sizes = [1, 8], strides = [1, 1]} : vector<16x8xf32> to vector<1x8xf32>
    %805 = vector.broadcast %804 : vector<1x8xf32> to vector<16x8xf32>
    %806 = arith.mulf %805, %778 : vector<16x8xf32>
    %807 = arith.subf %762, %806 : vector<16x8xf32>
    %808 = arith.mulf %804, %779 : vector<1x8xf32>
    %809 = arith.subf %764, %808 : vector<1x8xf32>
    %810 = vector.extract_strided_slice %768 {offsets = [9, 0], sizes = [1, 8], strides = [1, 1]} : vector<16x8xf32> to vector<1x8xf32>
    %811 = vector.broadcast %810 : vector<1x8xf32> to vector<16x8xf32>
    %812 = arith.mulf %811, %778 : vector<16x8xf32>
    %813 = arith.subf %768, %812 : vector<16x8xf32>
    %814 = arith.mulf %810, %779 : vector<1x8xf32>
    %815 = arith.subf %770, %814 : vector<1x8xf32>
    %816 = vector.extract_strided_slice %783 {offsets = [10, 0], sizes = [1, 8], strides = [1, 1]} : vector<16x8xf32> to vector<1x8xf32>
    %817 = tpu.reciprocal %816 {approx = true} : vector<1x8xf32> -> vector<1x8xf32>
    %818 = arith.mulf %816, %817 : vector<1x8xf32>
    %cst_31 = arith.constant 2.000000e+00 : f32
    %819 = vector.broadcast %cst_31 : f32 to vector<1x8xf32>
    %820 = arith.subf %819, %818 : vector<1x8xf32>
    %821 = arith.mulf %817, %820 : vector<1x8xf32>
    %822 = vector.broadcast %821 : vector<1x8xf32> to vector<16x8xf32>
    %823 = arith.mulf %783, %822 : vector<16x8xf32>
    %824 = arith.mulf %785, %821 : vector<1x8xf32>
    %825 = vector.extract_strided_slice %789 {offsets = [10, 0], sizes = [1, 8], strides = [1, 1]} : vector<16x8xf32> to vector<1x8xf32>
    %826 = vector.broadcast %825 : vector<1x8xf32> to vector<16x8xf32>
    %827 = arith.mulf %826, %823 : vector<16x8xf32>
    %828 = arith.subf %789, %827 : vector<16x8xf32>
    %829 = arith.mulf %825, %824 : vector<1x8xf32>
    %830 = arith.subf %791, %829 : vector<1x8xf32>
    %831 = vector.extract_strided_slice %795 {offsets = [10, 0], sizes = [1, 8], strides = [1, 1]} : vector<16x8xf32> to vector<1x8xf32>
    %832 = vector.broadcast %831 : vector<1x8xf32> to vector<16x8xf32>
    %833 = arith.mulf %832, %823 : vector<16x8xf32>
    %834 = arith.subf %795, %833 : vector<16x8xf32>
    %835 = arith.mulf %831, %824 : vector<1x8xf32>
    %836 = arith.subf %797, %835 : vector<1x8xf32>
    %837 = vector.extract_strided_slice %801 {offsets = [10, 0], sizes = [1, 8], strides = [1, 1]} : vector<16x8xf32> to vector<1x8xf32>
    %838 = vector.broadcast %837 : vector<1x8xf32> to vector<16x8xf32>
    %839 = arith.mulf %838, %823 : vector<16x8xf32>
    %840 = arith.subf %801, %839 : vector<16x8xf32>
    %841 = arith.mulf %837, %824 : vector<1x8xf32>
    %842 = arith.subf %803, %841 : vector<1x8xf32>
    %843 = vector.extract_strided_slice %807 {offsets = [10, 0], sizes = [1, 8], strides = [1, 1]} : vector<16x8xf32> to vector<1x8xf32>
    %844 = vector.broadcast %843 : vector<1x8xf32> to vector<16x8xf32>
    %845 = arith.mulf %844, %823 : vector<16x8xf32>
    %846 = arith.subf %807, %845 : vector<16x8xf32>
    %847 = arith.mulf %843, %824 : vector<1x8xf32>
    %848 = arith.subf %809, %847 : vector<1x8xf32>
    %849 = vector.extract_strided_slice %813 {offsets = [10, 0], sizes = [1, 8], strides = [1, 1]} : vector<16x8xf32> to vector<1x8xf32>
    %850 = vector.broadcast %849 : vector<1x8xf32> to vector<16x8xf32>
    %851 = arith.mulf %850, %823 : vector<16x8xf32>
    %852 = arith.subf %813, %851 : vector<16x8xf32>
    %853 = arith.mulf %849, %824 : vector<1x8xf32>
    %854 = arith.subf %815, %853 : vector<1x8xf32>
    %855 = vector.extract_strided_slice %828 {offsets = [11, 0], sizes = [1, 8], strides = [1, 1]} : vector<16x8xf32> to vector<1x8xf32>
    %856 = tpu.reciprocal %855 {approx = true} : vector<1x8xf32> -> vector<1x8xf32>
    %857 = arith.mulf %855, %856 : vector<1x8xf32>
    %cst_32 = arith.constant 2.000000e+00 : f32
    %858 = vector.broadcast %cst_32 : f32 to vector<1x8xf32>
    %859 = arith.subf %858, %857 : vector<1x8xf32>
    %860 = arith.mulf %856, %859 : vector<1x8xf32>
    %861 = vector.broadcast %860 : vector<1x8xf32> to vector<16x8xf32>
    %862 = arith.mulf %828, %861 : vector<16x8xf32>
    %863 = arith.mulf %830, %860 : vector<1x8xf32>
    %864 = vector.extract_strided_slice %834 {offsets = [11, 0], sizes = [1, 8], strides = [1, 1]} : vector<16x8xf32> to vector<1x8xf32>
    %865 = vector.broadcast %864 : vector<1x8xf32> to vector<16x8xf32>
    %866 = arith.mulf %865, %862 : vector<16x8xf32>
    %867 = arith.subf %834, %866 : vector<16x8xf32>
    %868 = arith.mulf %864, %863 : vector<1x8xf32>
    %869 = arith.subf %836, %868 : vector<1x8xf32>
    %870 = vector.extract_strided_slice %840 {offsets = [11, 0], sizes = [1, 8], strides = [1, 1]} : vector<16x8xf32> to vector<1x8xf32>
    %871 = vector.broadcast %870 : vector<1x8xf32> to vector<16x8xf32>
    %872 = arith.mulf %871, %862 : vector<16x8xf32>
    %873 = arith.subf %840, %872 : vector<16x8xf32>
    %874 = arith.mulf %870, %863 : vector<1x8xf32>
    %875 = arith.subf %842, %874 : vector<1x8xf32>
    %876 = vector.extract_strided_slice %846 {offsets = [11, 0], sizes = [1, 8], strides = [1, 1]} : vector<16x8xf32> to vector<1x8xf32>
    %877 = vector.broadcast %876 : vector<1x8xf32> to vector<16x8xf32>
    %878 = arith.mulf %877, %862 : vector<16x8xf32>
    %879 = arith.subf %846, %878 : vector<16x8xf32>
    %880 = arith.mulf %876, %863 : vector<1x8xf32>
    %881 = arith.subf %848, %880 : vector<1x8xf32>
    %882 = vector.extract_strided_slice %852 {offsets = [11, 0], sizes = [1, 8], strides = [1, 1]} : vector<16x8xf32> to vector<1x8xf32>
    %883 = vector.broadcast %882 : vector<1x8xf32> to vector<16x8xf32>
    %884 = arith.mulf %883, %862 : vector<16x8xf32>
    %885 = arith.subf %852, %884 : vector<16x8xf32>
    %886 = arith.mulf %882, %863 : vector<1x8xf32>
    %887 = arith.subf %854, %886 : vector<1x8xf32>
    %888 = vector.extract_strided_slice %867 {offsets = [12, 0], sizes = [1, 8], strides = [1, 1]} : vector<16x8xf32> to vector<1x8xf32>
    %889 = tpu.reciprocal %888 {approx = true} : vector<1x8xf32> -> vector<1x8xf32>
    %890 = arith.mulf %888, %889 : vector<1x8xf32>
    %cst_33 = arith.constant 2.000000e+00 : f32
    %891 = vector.broadcast %cst_33 : f32 to vector<1x8xf32>
    %892 = arith.subf %891, %890 : vector<1x8xf32>
    %893 = arith.mulf %889, %892 : vector<1x8xf32>
    %894 = vector.broadcast %893 : vector<1x8xf32> to vector<16x8xf32>
    %895 = arith.mulf %867, %894 : vector<16x8xf32>
    %896 = arith.mulf %869, %893 : vector<1x8xf32>
    %897 = vector.extract_strided_slice %873 {offsets = [12, 0], sizes = [1, 8], strides = [1, 1]} : vector<16x8xf32> to vector<1x8xf32>
    %898 = vector.broadcast %897 : vector<1x8xf32> to vector<16x8xf32>
    %899 = arith.mulf %898, %895 : vector<16x8xf32>
    %900 = arith.subf %873, %899 : vector<16x8xf32>
    %901 = arith.mulf %897, %896 : vector<1x8xf32>
    %902 = arith.subf %875, %901 : vector<1x8xf32>
    %903 = vector.extract_strided_slice %879 {offsets = [12, 0], sizes = [1, 8], strides = [1, 1]} : vector<16x8xf32> to vector<1x8xf32>
    %904 = vector.broadcast %903 : vector<1x8xf32> to vector<16x8xf32>
    %905 = arith.mulf %904, %895 : vector<16x8xf32>
    %906 = arith.subf %879, %905 : vector<16x8xf32>
    %907 = arith.mulf %903, %896 : vector<1x8xf32>
    %908 = arith.subf %881, %907 : vector<1x8xf32>
    %909 = vector.extract_strided_slice %885 {offsets = [12, 0], sizes = [1, 8], strides = [1, 1]} : vector<16x8xf32> to vector<1x8xf32>
    %910 = vector.broadcast %909 : vector<1x8xf32> to vector<16x8xf32>
    %911 = arith.mulf %910, %895 : vector<16x8xf32>
    %912 = arith.subf %885, %911 : vector<16x8xf32>
    %913 = arith.mulf %909, %896 : vector<1x8xf32>
    %914 = arith.subf %887, %913 : vector<1x8xf32>
    %915 = vector.extract_strided_slice %900 {offsets = [13, 0], sizes = [1, 8], strides = [1, 1]} : vector<16x8xf32> to vector<1x8xf32>
    %916 = tpu.reciprocal %915 {approx = true} : vector<1x8xf32> -> vector<1x8xf32>
    %917 = arith.mulf %915, %916 : vector<1x8xf32>
    %cst_34 = arith.constant 2.000000e+00 : f32
    %918 = vector.broadcast %cst_34 : f32 to vector<1x8xf32>
    %919 = arith.subf %918, %917 : vector<1x8xf32>
    %920 = arith.mulf %916, %919 : vector<1x8xf32>
    %921 = vector.broadcast %920 : vector<1x8xf32> to vector<16x8xf32>
    %922 = arith.mulf %900, %921 : vector<16x8xf32>
    %923 = arith.mulf %902, %920 : vector<1x8xf32>
    %924 = vector.extract_strided_slice %906 {offsets = [13, 0], sizes = [1, 8], strides = [1, 1]} : vector<16x8xf32> to vector<1x8xf32>
    %925 = vector.broadcast %924 : vector<1x8xf32> to vector<16x8xf32>
    %926 = arith.mulf %925, %922 : vector<16x8xf32>
    %927 = arith.subf %906, %926 : vector<16x8xf32>
    %928 = arith.mulf %924, %923 : vector<1x8xf32>
    %929 = arith.subf %908, %928 : vector<1x8xf32>
    %930 = vector.extract_strided_slice %912 {offsets = [13, 0], sizes = [1, 8], strides = [1, 1]} : vector<16x8xf32> to vector<1x8xf32>
    %931 = vector.broadcast %930 : vector<1x8xf32> to vector<16x8xf32>
    %932 = arith.mulf %931, %922 : vector<16x8xf32>
    %933 = arith.subf %912, %932 : vector<16x8xf32>
    %934 = arith.mulf %930, %923 : vector<1x8xf32>
    %935 = arith.subf %914, %934 : vector<1x8xf32>
    %936 = vector.extract_strided_slice %927 {offsets = [14, 0], sizes = [1, 8], strides = [1, 1]} : vector<16x8xf32> to vector<1x8xf32>
    %937 = tpu.reciprocal %936 {approx = true} : vector<1x8xf32> -> vector<1x8xf32>
    %938 = arith.mulf %936, %937 : vector<1x8xf32>
    %cst_35 = arith.constant 2.000000e+00 : f32
    %939 = vector.broadcast %cst_35 : f32 to vector<1x8xf32>
    %940 = arith.subf %939, %938 : vector<1x8xf32>
    %941 = arith.mulf %937, %940 : vector<1x8xf32>
    %942 = vector.broadcast %941 : vector<1x8xf32> to vector<16x8xf32>
    %943 = arith.mulf %927, %942 : vector<16x8xf32>
    %944 = arith.mulf %929, %941 : vector<1x8xf32>
    %945 = vector.extract_strided_slice %933 {offsets = [14, 0], sizes = [1, 8], strides = [1, 1]} : vector<16x8xf32> to vector<1x8xf32>
    %946 = vector.broadcast %945 : vector<1x8xf32> to vector<16x8xf32>
    %947 = arith.mulf %946, %943 : vector<16x8xf32>
    %948 = arith.subf %933, %947 : vector<16x8xf32>
    %949 = arith.mulf %945, %944 : vector<1x8xf32>
    %950 = arith.subf %935, %949 : vector<1x8xf32>
    %951 = vector.extract_strided_slice %948 {offsets = [15, 0], sizes = [1, 8], strides = [1, 1]} : vector<16x8xf32> to vector<1x8xf32>
    %952 = tpu.reciprocal %951 {approx = true} : vector<1x8xf32> -> vector<1x8xf32>
    %953 = arith.mulf %951, %952 : vector<1x8xf32>
    %cst_36 = arith.constant 2.000000e+00 : f32
    %954 = vector.broadcast %cst_36 : f32 to vector<1x8xf32>
    %955 = arith.subf %954, %953 : vector<1x8xf32>
    %956 = arith.mulf %952, %955 : vector<1x8xf32>
    %957 = arith.mulf %950, %956 : vector<1x8xf32>
    %958 = vector.extract_strided_slice %943 {offsets = [15, 0], sizes = [1, 8], strides = [1, 1]} : vector<16x8xf32> to vector<1x8xf32>
    %959 = arith.mulf %958, %957 : vector<1x8xf32>
    %960 = arith.subf %944, %959 : vector<1x8xf32>
    %961 = vector.extract_strided_slice %922 {offsets = [14, 0], sizes = [1, 8], strides = [1, 1]} : vector<16x8xf32> to vector<1x8xf32>
    %962 = arith.mulf %961, %960 : vector<1x8xf32>
    %963 = arith.subf %923, %962 : vector<1x8xf32>
    %964 = vector.extract_strided_slice %922 {offsets = [15, 0], sizes = [1, 8], strides = [1, 1]} : vector<16x8xf32> to vector<1x8xf32>
    %965 = arith.mulf %964, %957 : vector<1x8xf32>
    %966 = arith.subf %963, %965 : vector<1x8xf32>
    %967 = vector.extract_strided_slice %895 {offsets = [13, 0], sizes = [1, 8], strides = [1, 1]} : vector<16x8xf32> to vector<1x8xf32>
    %968 = arith.mulf %967, %966 : vector<1x8xf32>
    %969 = arith.subf %896, %968 : vector<1x8xf32>
    %970 = vector.extract_strided_slice %895 {offsets = [14, 0], sizes = [1, 8], strides = [1, 1]} : vector<16x8xf32> to vector<1x8xf32>
    %971 = arith.mulf %970, %960 : vector<1x8xf32>
    %972 = arith.subf %969, %971 : vector<1x8xf32>
    %973 = vector.extract_strided_slice %895 {offsets = [15, 0], sizes = [1, 8], strides = [1, 1]} : vector<16x8xf32> to vector<1x8xf32>
    %974 = arith.mulf %973, %957 : vector<1x8xf32>
    %975 = arith.subf %972, %974 : vector<1x8xf32>
    %976 = vector.extract_strided_slice %862 {offsets = [12, 0], sizes = [1, 8], strides = [1, 1]} : vector<16x8xf32> to vector<1x8xf32>
    %977 = arith.mulf %976, %975 : vector<1x8xf32>
    %978 = arith.subf %863, %977 : vector<1x8xf32>
    %979 = vector.extract_strided_slice %862 {offsets = [13, 0], sizes = [1, 8], strides = [1, 1]} : vector<16x8xf32> to vector<1x8xf32>
    %980 = arith.mulf %979, %966 : vector<1x8xf32>
    %981 = arith.subf %978, %980 : vector<1x8xf32>
    %982 = vector.extract_strided_slice %862 {offsets = [14, 0], sizes = [1, 8], strides = [1, 1]} : vector<16x8xf32> to vector<1x8xf32>
    %983 = arith.mulf %982, %960 : vector<1x8xf32>
    %984 = arith.subf %981, %983 : vector<1x8xf32>
    %985 = vector.extract_strided_slice %862 {offsets = [15, 0], sizes = [1, 8], strides = [1, 1]} : vector<16x8xf32> to vector<1x8xf32>
    %986 = arith.mulf %985, %957 : vector<1x8xf32>
    %987 = arith.subf %984, %986 : vector<1x8xf32>
    %988 = vector.extract_strided_slice %823 {offsets = [11, 0], sizes = [1, 8], strides = [1, 1]} : vector<16x8xf32> to vector<1x8xf32>
    %989 = arith.mulf %988, %987 : vector<1x8xf32>
    %990 = arith.subf %824, %989 : vector<1x8xf32>
    %991 = vector.extract_strided_slice %823 {offsets = [12, 0], sizes = [1, 8], strides = [1, 1]} : vector<16x8xf32> to vector<1x8xf32>
    %992 = arith.mulf %991, %975 : vector<1x8xf32>
    %993 = arith.subf %990, %992 : vector<1x8xf32>
    %994 = vector.extract_strided_slice %823 {offsets = [13, 0], sizes = [1, 8], strides = [1, 1]} : vector<16x8xf32> to vector<1x8xf32>
    %995 = arith.mulf %994, %966 : vector<1x8xf32>
    %996 = arith.subf %993, %995 : vector<1x8xf32>
    %997 = vector.extract_strided_slice %823 {offsets = [14, 0], sizes = [1, 8], strides = [1, 1]} : vector<16x8xf32> to vector<1x8xf32>
    %998 = arith.mulf %997, %960 : vector<1x8xf32>
    %999 = arith.subf %996, %998 : vector<1x8xf32>
    %1000 = vector.extract_strided_slice %823 {offsets = [15, 0], sizes = [1, 8], strides = [1, 1]} : vector<16x8xf32> to vector<1x8xf32>
    %1001 = arith.mulf %1000, %957 : vector<1x8xf32>
    %1002 = arith.subf %999, %1001 : vector<1x8xf32>
    %1003 = vector.extract_strided_slice %778 {offsets = [10, 0], sizes = [1, 8], strides = [1, 1]} : vector<16x8xf32> to vector<1x8xf32>
    %1004 = arith.mulf %1003, %1002 : vector<1x8xf32>
    %1005 = arith.subf %779, %1004 : vector<1x8xf32>
    %1006 = vector.extract_strided_slice %778 {offsets = [11, 0], sizes = [1, 8], strides = [1, 1]} : vector<16x8xf32> to vector<1x8xf32>
    %1007 = arith.mulf %1006, %987 : vector<1x8xf32>
    %1008 = arith.subf %1005, %1007 : vector<1x8xf32>
    %1009 = vector.extract_strided_slice %778 {offsets = [12, 0], sizes = [1, 8], strides = [1, 1]} : vector<16x8xf32> to vector<1x8xf32>
    %1010 = arith.mulf %1009, %975 : vector<1x8xf32>
    %1011 = arith.subf %1008, %1010 : vector<1x8xf32>
    %1012 = vector.extract_strided_slice %778 {offsets = [13, 0], sizes = [1, 8], strides = [1, 1]} : vector<16x8xf32> to vector<1x8xf32>
    %1013 = arith.mulf %1012, %966 : vector<1x8xf32>
    %1014 = arith.subf %1011, %1013 : vector<1x8xf32>
    %1015 = vector.extract_strided_slice %778 {offsets = [14, 0], sizes = [1, 8], strides = [1, 1]} : vector<16x8xf32> to vector<1x8xf32>
    %1016 = arith.mulf %1015, %960 : vector<1x8xf32>
    %1017 = arith.subf %1014, %1016 : vector<1x8xf32>
    %1018 = vector.extract_strided_slice %778 {offsets = [15, 0], sizes = [1, 8], strides = [1, 1]} : vector<16x8xf32> to vector<1x8xf32>
    %1019 = arith.mulf %1018, %957 : vector<1x8xf32>
    %1020 = arith.subf %1017, %1019 : vector<1x8xf32>
    %1021 = vector.extract_strided_slice %727 {offsets = [9, 0], sizes = [1, 8], strides = [1, 1]} : vector<16x8xf32> to vector<1x8xf32>
    %1022 = arith.mulf %1021, %1020 : vector<1x8xf32>
    %1023 = arith.subf %728, %1022 : vector<1x8xf32>
    %1024 = vector.extract_strided_slice %727 {offsets = [10, 0], sizes = [1, 8], strides = [1, 1]} : vector<16x8xf32> to vector<1x8xf32>
    %1025 = arith.mulf %1024, %1002 : vector<1x8xf32>
    %1026 = arith.subf %1023, %1025 : vector<1x8xf32>
    %1027 = vector.extract_strided_slice %727 {offsets = [11, 0], sizes = [1, 8], strides = [1, 1]} : vector<16x8xf32> to vector<1x8xf32>
    %1028 = arith.mulf %1027, %987 : vector<1x8xf32>
    %1029 = arith.subf %1026, %1028 : vector<1x8xf32>
    %1030 = vector.extract_strided_slice %727 {offsets = [12, 0], sizes = [1, 8], strides = [1, 1]} : vector<16x8xf32> to vector<1x8xf32>
    %1031 = arith.mulf %1030, %975 : vector<1x8xf32>
    %1032 = arith.subf %1029, %1031 : vector<1x8xf32>
    %1033 = vector.extract_strided_slice %727 {offsets = [13, 0], sizes = [1, 8], strides = [1, 1]} : vector<16x8xf32> to vector<1x8xf32>
    %1034 = arith.mulf %1033, %966 : vector<1x8xf32>
    %1035 = arith.subf %1032, %1034 : vector<1x8xf32>
    %1036 = vector.extract_strided_slice %727 {offsets = [14, 0], sizes = [1, 8], strides = [1, 1]} : vector<16x8xf32> to vector<1x8xf32>
    %1037 = arith.mulf %1036, %960 : vector<1x8xf32>
    %1038 = arith.subf %1035, %1037 : vector<1x8xf32>
    %1039 = vector.extract_strided_slice %727 {offsets = [15, 0], sizes = [1, 8], strides = [1, 1]} : vector<16x8xf32> to vector<1x8xf32>
    %1040 = arith.mulf %1039, %957 : vector<1x8xf32>
    %1041 = arith.subf %1038, %1040 : vector<1x8xf32>
    %1042 = vector.extract_strided_slice %670 {offsets = [8, 0], sizes = [1, 8], strides = [1, 1]} : vector<16x8xf32> to vector<1x8xf32>
    %1043 = arith.mulf %1042, %1041 : vector<1x8xf32>
    %1044 = arith.subf %671, %1043 : vector<1x8xf32>
    %1045 = vector.extract_strided_slice %670 {offsets = [9, 0], sizes = [1, 8], strides = [1, 1]} : vector<16x8xf32> to vector<1x8xf32>
    %1046 = arith.mulf %1045, %1020 : vector<1x8xf32>
    %1047 = arith.subf %1044, %1046 : vector<1x8xf32>
    %1048 = vector.extract_strided_slice %670 {offsets = [10, 0], sizes = [1, 8], strides = [1, 1]} : vector<16x8xf32> to vector<1x8xf32>
    %1049 = arith.mulf %1048, %1002 : vector<1x8xf32>
    %1050 = arith.subf %1047, %1049 : vector<1x8xf32>
    %1051 = vector.extract_strided_slice %670 {offsets = [11, 0], sizes = [1, 8], strides = [1, 1]} : vector<16x8xf32> to vector<1x8xf32>
    %1052 = arith.mulf %1051, %987 : vector<1x8xf32>
    %1053 = arith.subf %1050, %1052 : vector<1x8xf32>
    %1054 = vector.extract_strided_slice %670 {offsets = [12, 0], sizes = [1, 8], strides = [1, 1]} : vector<16x8xf32> to vector<1x8xf32>
    %1055 = arith.mulf %1054, %975 : vector<1x8xf32>
    %1056 = arith.subf %1053, %1055 : vector<1x8xf32>
    %1057 = vector.extract_strided_slice %670 {offsets = [13, 0], sizes = [1, 8], strides = [1, 1]} : vector<16x8xf32> to vector<1x8xf32>
    %1058 = arith.mulf %1057, %966 : vector<1x8xf32>
    %1059 = arith.subf %1056, %1058 : vector<1x8xf32>
    %1060 = vector.extract_strided_slice %670 {offsets = [14, 0], sizes = [1, 8], strides = [1, 1]} : vector<16x8xf32> to vector<1x8xf32>
    %1061 = arith.mulf %1060, %960 : vector<1x8xf32>
    %1062 = arith.subf %1059, %1061 : vector<1x8xf32>
    %1063 = vector.extract_strided_slice %670 {offsets = [15, 0], sizes = [1, 8], strides = [1, 1]} : vector<16x8xf32> to vector<1x8xf32>
    %1064 = arith.mulf %1063, %957 : vector<1x8xf32>
    %1065 = arith.subf %1062, %1064 : vector<1x8xf32>
    %1066 = vector.extract_strided_slice %607 {offsets = [7, 0], sizes = [1, 8], strides = [1, 1]} : vector<16x8xf32> to vector<1x8xf32>
    %1067 = arith.mulf %1066, %1065 : vector<1x8xf32>
    %1068 = arith.subf %608, %1067 : vector<1x8xf32>
    %1069 = vector.extract_strided_slice %607 {offsets = [8, 0], sizes = [1, 8], strides = [1, 1]} : vector<16x8xf32> to vector<1x8xf32>
    %1070 = arith.mulf %1069, %1041 : vector<1x8xf32>
    %1071 = arith.subf %1068, %1070 : vector<1x8xf32>
    %1072 = vector.extract_strided_slice %607 {offsets = [9, 0], sizes = [1, 8], strides = [1, 1]} : vector<16x8xf32> to vector<1x8xf32>
    %1073 = arith.mulf %1072, %1020 : vector<1x8xf32>
    %1074 = arith.subf %1071, %1073 : vector<1x8xf32>
    %1075 = vector.extract_strided_slice %607 {offsets = [10, 0], sizes = [1, 8], strides = [1, 1]} : vector<16x8xf32> to vector<1x8xf32>
    %1076 = arith.mulf %1075, %1002 : vector<1x8xf32>
    %1077 = arith.subf %1074, %1076 : vector<1x8xf32>
    %1078 = vector.extract_strided_slice %607 {offsets = [11, 0], sizes = [1, 8], strides = [1, 1]} : vector<16x8xf32> to vector<1x8xf32>
    %1079 = arith.mulf %1078, %987 : vector<1x8xf32>
    %1080 = arith.subf %1077, %1079 : vector<1x8xf32>
    %1081 = vector.extract_strided_slice %607 {offsets = [12, 0], sizes = [1, 8], strides = [1, 1]} : vector<16x8xf32> to vector<1x8xf32>
    %1082 = arith.mulf %1081, %975 : vector<1x8xf32>
    %1083 = arith.subf %1080, %1082 : vector<1x8xf32>
    %1084 = vector.extract_strided_slice %607 {offsets = [13, 0], sizes = [1, 8], strides = [1, 1]} : vector<16x8xf32> to vector<1x8xf32>
    %1085 = arith.mulf %1084, %966 : vector<1x8xf32>
    %1086 = arith.subf %1083, %1085 : vector<1x8xf32>
    %1087 = vector.extract_strided_slice %607 {offsets = [14, 0], sizes = [1, 8], strides = [1, 1]} : vector<16x8xf32> to vector<1x8xf32>
    %1088 = arith.mulf %1087, %960 : vector<1x8xf32>
    %1089 = arith.subf %1086, %1088 : vector<1x8xf32>
    %1090 = vector.extract_strided_slice %607 {offsets = [15, 0], sizes = [1, 8], strides = [1, 1]} : vector<16x8xf32> to vector<1x8xf32>
    %1091 = arith.mulf %1090, %957 : vector<1x8xf32>
    %1092 = arith.subf %1089, %1091 : vector<1x8xf32>
    %1093 = vector.extract_strided_slice %538 {offsets = [6, 0], sizes = [1, 8], strides = [1, 1]} : vector<16x8xf32> to vector<1x8xf32>
    %1094 = arith.mulf %1093, %1092 : vector<1x8xf32>
    %1095 = arith.subf %539, %1094 : vector<1x8xf32>
    %1096 = vector.extract_strided_slice %538 {offsets = [7, 0], sizes = [1, 8], strides = [1, 1]} : vector<16x8xf32> to vector<1x8xf32>
    %1097 = arith.mulf %1096, %1065 : vector<1x8xf32>
    %1098 = arith.subf %1095, %1097 : vector<1x8xf32>
    %1099 = vector.extract_strided_slice %538 {offsets = [8, 0], sizes = [1, 8], strides = [1, 1]} : vector<16x8xf32> to vector<1x8xf32>
    %1100 = arith.mulf %1099, %1041 : vector<1x8xf32>
    %1101 = arith.subf %1098, %1100 : vector<1x8xf32>
    %1102 = vector.extract_strided_slice %538 {offsets = [9, 0], sizes = [1, 8], strides = [1, 1]} : vector<16x8xf32> to vector<1x8xf32>
    %1103 = arith.mulf %1102, %1020 : vector<1x8xf32>
    %1104 = arith.subf %1101, %1103 : vector<1x8xf32>
    %1105 = vector.extract_strided_slice %538 {offsets = [10, 0], sizes = [1, 8], strides = [1, 1]} : vector<16x8xf32> to vector<1x8xf32>
    %1106 = arith.mulf %1105, %1002 : vector<1x8xf32>
    %1107 = arith.subf %1104, %1106 : vector<1x8xf32>
    %1108 = vector.extract_strided_slice %538 {offsets = [11, 0], sizes = [1, 8], strides = [1, 1]} : vector<16x8xf32> to vector<1x8xf32>
    %1109 = arith.mulf %1108, %987 : vector<1x8xf32>
    %1110 = arith.subf %1107, %1109 : vector<1x8xf32>
    %1111 = vector.extract_strided_slice %538 {offsets = [12, 0], sizes = [1, 8], strides = [1, 1]} : vector<16x8xf32> to vector<1x8xf32>
    %1112 = arith.mulf %1111, %975 : vector<1x8xf32>
    %1113 = arith.subf %1110, %1112 : vector<1x8xf32>
    %1114 = vector.extract_strided_slice %538 {offsets = [13, 0], sizes = [1, 8], strides = [1, 1]} : vector<16x8xf32> to vector<1x8xf32>
    %1115 = arith.mulf %1114, %966 : vector<1x8xf32>
    %1116 = arith.subf %1113, %1115 : vector<1x8xf32>
    %1117 = vector.extract_strided_slice %538 {offsets = [14, 0], sizes = [1, 8], strides = [1, 1]} : vector<16x8xf32> to vector<1x8xf32>
    %1118 = arith.mulf %1117, %960 : vector<1x8xf32>
    %1119 = arith.subf %1116, %1118 : vector<1x8xf32>
    %1120 = vector.extract_strided_slice %538 {offsets = [15, 0], sizes = [1, 8], strides = [1, 1]} : vector<16x8xf32> to vector<1x8xf32>
    %1121 = arith.mulf %1120, %957 : vector<1x8xf32>
    %1122 = arith.subf %1119, %1121 : vector<1x8xf32>
    %1123 = vector.extract_strided_slice %463 {offsets = [5, 0], sizes = [1, 8], strides = [1, 1]} : vector<16x8xf32> to vector<1x8xf32>
    %1124 = arith.mulf %1123, %1122 : vector<1x8xf32>
    %1125 = arith.subf %464, %1124 : vector<1x8xf32>
    %1126 = vector.extract_strided_slice %463 {offsets = [6, 0], sizes = [1, 8], strides = [1, 1]} : vector<16x8xf32> to vector<1x8xf32>
    %1127 = arith.mulf %1126, %1092 : vector<1x8xf32>
    %1128 = arith.subf %1125, %1127 : vector<1x8xf32>
    %1129 = vector.extract_strided_slice %463 {offsets = [7, 0], sizes = [1, 8], strides = [1, 1]} : vector<16x8xf32> to vector<1x8xf32>
    %1130 = arith.mulf %1129, %1065 : vector<1x8xf32>
    %1131 = arith.subf %1128, %1130 : vector<1x8xf32>
    %1132 = vector.extract_strided_slice %463 {offsets = [8, 0], sizes = [1, 8], strides = [1, 1]} : vector<16x8xf32> to vector<1x8xf32>
    %1133 = arith.mulf %1132, %1041 : vector<1x8xf32>
    %1134 = arith.subf %1131, %1133 : vector<1x8xf32>
    %1135 = vector.extract_strided_slice %463 {offsets = [9, 0], sizes = [1, 8], strides = [1, 1]} : vector<16x8xf32> to vector<1x8xf32>
    %1136 = arith.mulf %1135, %1020 : vector<1x8xf32>
    %1137 = arith.subf %1134, %1136 : vector<1x8xf32>
    %1138 = vector.extract_strided_slice %463 {offsets = [10, 0], sizes = [1, 8], strides = [1, 1]} : vector<16x8xf32> to vector<1x8xf32>
    %1139 = arith.mulf %1138, %1002 : vector<1x8xf32>
    %1140 = arith.subf %1137, %1139 : vector<1x8xf32>
    %1141 = vector.extract_strided_slice %463 {offsets = [11, 0], sizes = [1, 8], strides = [1, 1]} : vector<16x8xf32> to vector<1x8xf32>
    %1142 = arith.mulf %1141, %987 : vector<1x8xf32>
    %1143 = arith.subf %1140, %1142 : vector<1x8xf32>
    %1144 = vector.extract_strided_slice %463 {offsets = [12, 0], sizes = [1, 8], strides = [1, 1]} : vector<16x8xf32> to vector<1x8xf32>
    %1145 = arith.mulf %1144, %975 : vector<1x8xf32>
    %1146 = arith.subf %1143, %1145 : vector<1x8xf32>
    %1147 = vector.extract_strided_slice %463 {offsets = [13, 0], sizes = [1, 8], strides = [1, 1]} : vector<16x8xf32> to vector<1x8xf32>
    %1148 = arith.mulf %1147, %966 : vector<1x8xf32>
    %1149 = arith.subf %1146, %1148 : vector<1x8xf32>
    %1150 = vector.extract_strided_slice %463 {offsets = [14, 0], sizes = [1, 8], strides = [1, 1]} : vector<16x8xf32> to vector<1x8xf32>
    %1151 = arith.mulf %1150, %960 : vector<1x8xf32>
    %1152 = arith.subf %1149, %1151 : vector<1x8xf32>
    %1153 = vector.extract_strided_slice %463 {offsets = [15, 0], sizes = [1, 8], strides = [1, 1]} : vector<16x8xf32> to vector<1x8xf32>
    %1154 = arith.mulf %1153, %957 : vector<1x8xf32>
    %1155 = arith.subf %1152, %1154 : vector<1x8xf32>
    %1156 = vector.extract_strided_slice %382 {offsets = [4, 0], sizes = [1, 8], strides = [1, 1]} : vector<16x8xf32> to vector<1x8xf32>
    %1157 = arith.mulf %1156, %1155 : vector<1x8xf32>
    %1158 = arith.subf %383, %1157 : vector<1x8xf32>
    %1159 = vector.extract_strided_slice %382 {offsets = [5, 0], sizes = [1, 8], strides = [1, 1]} : vector<16x8xf32> to vector<1x8xf32>
    %1160 = arith.mulf %1159, %1122 : vector<1x8xf32>
    %1161 = arith.subf %1158, %1160 : vector<1x8xf32>
    %1162 = vector.extract_strided_slice %382 {offsets = [6, 0], sizes = [1, 8], strides = [1, 1]} : vector<16x8xf32> to vector<1x8xf32>
    %1163 = arith.mulf %1162, %1092 : vector<1x8xf32>
    %1164 = arith.subf %1161, %1163 : vector<1x8xf32>
    %1165 = vector.extract_strided_slice %382 {offsets = [7, 0], sizes = [1, 8], strides = [1, 1]} : vector<16x8xf32> to vector<1x8xf32>
    %1166 = arith.mulf %1165, %1065 : vector<1x8xf32>
    %1167 = arith.subf %1164, %1166 : vector<1x8xf32>
    %1168 = vector.extract_strided_slice %382 {offsets = [8, 0], sizes = [1, 8], strides = [1, 1]} : vector<16x8xf32> to vector<1x8xf32>
    %1169 = arith.mulf %1168, %1041 : vector<1x8xf32>
    %1170 = arith.subf %1167, %1169 : vector<1x8xf32>
    %1171 = vector.extract_strided_slice %382 {offsets = [9, 0], sizes = [1, 8], strides = [1, 1]} : vector<16x8xf32> to vector<1x8xf32>
    %1172 = arith.mulf %1171, %1020 : vector<1x8xf32>
    %1173 = arith.subf %1170, %1172 : vector<1x8xf32>
    %1174 = vector.extract_strided_slice %382 {offsets = [10, 0], sizes = [1, 8], strides = [1, 1]} : vector<16x8xf32> to vector<1x8xf32>
    %1175 = arith.mulf %1174, %1002 : vector<1x8xf32>
    %1176 = arith.subf %1173, %1175 : vector<1x8xf32>
    %1177 = vector.extract_strided_slice %382 {offsets = [11, 0], sizes = [1, 8], strides = [1, 1]} : vector<16x8xf32> to vector<1x8xf32>
    %1178 = arith.mulf %1177, %987 : vector<1x8xf32>
    %1179 = arith.subf %1176, %1178 : vector<1x8xf32>
    %1180 = vector.extract_strided_slice %382 {offsets = [12, 0], sizes = [1, 8], strides = [1, 1]} : vector<16x8xf32> to vector<1x8xf32>
    %1181 = arith.mulf %1180, %975 : vector<1x8xf32>
    %1182 = arith.subf %1179, %1181 : vector<1x8xf32>
    %1183 = vector.extract_strided_slice %382 {offsets = [13, 0], sizes = [1, 8], strides = [1, 1]} : vector<16x8xf32> to vector<1x8xf32>
    %1184 = arith.mulf %1183, %966 : vector<1x8xf32>
    %1185 = arith.subf %1182, %1184 : vector<1x8xf32>
    %1186 = vector.extract_strided_slice %382 {offsets = [14, 0], sizes = [1, 8], strides = [1, 1]} : vector<16x8xf32> to vector<1x8xf32>
    %1187 = arith.mulf %1186, %960 : vector<1x8xf32>
    %1188 = arith.subf %1185, %1187 : vector<1x8xf32>
    %1189 = vector.extract_strided_slice %382 {offsets = [15, 0], sizes = [1, 8], strides = [1, 1]} : vector<16x8xf32> to vector<1x8xf32>
    %1190 = arith.mulf %1189, %957 : vector<1x8xf32>
    %1191 = arith.subf %1188, %1190 : vector<1x8xf32>
    %1192 = vector.extract_strided_slice %295 {offsets = [3, 0], sizes = [1, 8], strides = [1, 1]} : vector<16x8xf32> to vector<1x8xf32>
    %1193 = arith.mulf %1192, %1191 : vector<1x8xf32>
    %1194 = arith.subf %296, %1193 : vector<1x8xf32>
    %1195 = vector.extract_strided_slice %295 {offsets = [4, 0], sizes = [1, 8], strides = [1, 1]} : vector<16x8xf32> to vector<1x8xf32>
    %1196 = arith.mulf %1195, %1155 : vector<1x8xf32>
    %1197 = arith.subf %1194, %1196 : vector<1x8xf32>
    %1198 = vector.extract_strided_slice %295 {offsets = [5, 0], sizes = [1, 8], strides = [1, 1]} : vector<16x8xf32> to vector<1x8xf32>
    %1199 = arith.mulf %1198, %1122 : vector<1x8xf32>
    %1200 = arith.subf %1197, %1199 : vector<1x8xf32>
    %1201 = vector.extract_strided_slice %295 {offsets = [6, 0], sizes = [1, 8], strides = [1, 1]} : vector<16x8xf32> to vector<1x8xf32>
    %1202 = arith.mulf %1201, %1092 : vector<1x8xf32>
    %1203 = arith.subf %1200, %1202 : vector<1x8xf32>
    %1204 = vector.extract_strided_slice %295 {offsets = [7, 0], sizes = [1, 8], strides = [1, 1]} : vector<16x8xf32> to vector<1x8xf32>
    %1205 = arith.mulf %1204, %1065 : vector<1x8xf32>
    %1206 = arith.subf %1203, %1205 : vector<1x8xf32>
    %1207 = vector.extract_strided_slice %295 {offsets = [8, 0], sizes = [1, 8], strides = [1, 1]} : vector<16x8xf32> to vector<1x8xf32>
    %1208 = arith.mulf %1207, %1041 : vector<1x8xf32>
    %1209 = arith.subf %1206, %1208 : vector<1x8xf32>
    %1210 = vector.extract_strided_slice %295 {offsets = [9, 0], sizes = [1, 8], strides = [1, 1]} : vector<16x8xf32> to vector<1x8xf32>
    %1211 = arith.mulf %1210, %1020 : vector<1x8xf32>
    %1212 = arith.subf %1209, %1211 : vector<1x8xf32>
    %1213 = vector.extract_strided_slice %295 {offsets = [10, 0], sizes = [1, 8], strides = [1, 1]} : vector<16x8xf32> to vector<1x8xf32>
    %1214 = arith.mulf %1213, %1002 : vector<1x8xf32>
    %1215 = arith.subf %1212, %1214 : vector<1x8xf32>
    %1216 = vector.extract_strided_slice %295 {offsets = [11, 0], sizes = [1, 8], strides = [1, 1]} : vector<16x8xf32> to vector<1x8xf32>
    %1217 = arith.mulf %1216, %987 : vector<1x8xf32>
    %1218 = arith.subf %1215, %1217 : vector<1x8xf32>
    %1219 = vector.extract_strided_slice %295 {offsets = [12, 0], sizes = [1, 8], strides = [1, 1]} : vector<16x8xf32> to vector<1x8xf32>
    %1220 = arith.mulf %1219, %975 : vector<1x8xf32>
    %1221 = arith.subf %1218, %1220 : vector<1x8xf32>
    %1222 = vector.extract_strided_slice %295 {offsets = [13, 0], sizes = [1, 8], strides = [1, 1]} : vector<16x8xf32> to vector<1x8xf32>
    %1223 = arith.mulf %1222, %966 : vector<1x8xf32>
    %1224 = arith.subf %1221, %1223 : vector<1x8xf32>
    %1225 = vector.extract_strided_slice %295 {offsets = [14, 0], sizes = [1, 8], strides = [1, 1]} : vector<16x8xf32> to vector<1x8xf32>
    %1226 = arith.mulf %1225, %960 : vector<1x8xf32>
    %1227 = arith.subf %1224, %1226 : vector<1x8xf32>
    %1228 = vector.extract_strided_slice %295 {offsets = [15, 0], sizes = [1, 8], strides = [1, 1]} : vector<16x8xf32> to vector<1x8xf32>
    %1229 = arith.mulf %1228, %957 : vector<1x8xf32>
    %1230 = arith.subf %1227, %1229 : vector<1x8xf32>
    %1231 = vector.extract_strided_slice %202 {offsets = [2, 0], sizes = [1, 8], strides = [1, 1]} : vector<16x8xf32> to vector<1x8xf32>
    %1232 = arith.mulf %1231, %1230 : vector<1x8xf32>
    %1233 = arith.subf %203, %1232 : vector<1x8xf32>
    %1234 = vector.extract_strided_slice %202 {offsets = [3, 0], sizes = [1, 8], strides = [1, 1]} : vector<16x8xf32> to vector<1x8xf32>
    %1235 = arith.mulf %1234, %1191 : vector<1x8xf32>
    %1236 = arith.subf %1233, %1235 : vector<1x8xf32>
    %1237 = vector.extract_strided_slice %202 {offsets = [4, 0], sizes = [1, 8], strides = [1, 1]} : vector<16x8xf32> to vector<1x8xf32>
    %1238 = arith.mulf %1237, %1155 : vector<1x8xf32>
    %1239 = arith.subf %1236, %1238 : vector<1x8xf32>
    %1240 = vector.extract_strided_slice %202 {offsets = [5, 0], sizes = [1, 8], strides = [1, 1]} : vector<16x8xf32> to vector<1x8xf32>
    %1241 = arith.mulf %1240, %1122 : vector<1x8xf32>
    %1242 = arith.subf %1239, %1241 : vector<1x8xf32>
    %1243 = vector.extract_strided_slice %202 {offsets = [6, 0], sizes = [1, 8], strides = [1, 1]} : vector<16x8xf32> to vector<1x8xf32>
    %1244 = arith.mulf %1243, %1092 : vector<1x8xf32>
    %1245 = arith.subf %1242, %1244 : vector<1x8xf32>
    %1246 = vector.extract_strided_slice %202 {offsets = [7, 0], sizes = [1, 8], strides = [1, 1]} : vector<16x8xf32> to vector<1x8xf32>
    %1247 = arith.mulf %1246, %1065 : vector<1x8xf32>
    %1248 = arith.subf %1245, %1247 : vector<1x8xf32>
    %1249 = vector.extract_strided_slice %202 {offsets = [8, 0], sizes = [1, 8], strides = [1, 1]} : vector<16x8xf32> to vector<1x8xf32>
    %1250 = arith.mulf %1249, %1041 : vector<1x8xf32>
    %1251 = arith.subf %1248, %1250 : vector<1x8xf32>
    %1252 = vector.extract_strided_slice %202 {offsets = [9, 0], sizes = [1, 8], strides = [1, 1]} : vector<16x8xf32> to vector<1x8xf32>
    %1253 = arith.mulf %1252, %1020 : vector<1x8xf32>
    %1254 = arith.subf %1251, %1253 : vector<1x8xf32>
    %1255 = vector.extract_strided_slice %202 {offsets = [10, 0], sizes = [1, 8], strides = [1, 1]} : vector<16x8xf32> to vector<1x8xf32>
    %1256 = arith.mulf %1255, %1002 : vector<1x8xf32>
    %1257 = arith.subf %1254, %1256 : vector<1x8xf32>
    %1258 = vector.extract_strided_slice %202 {offsets = [11, 0], sizes = [1, 8], strides = [1, 1]} : vector<16x8xf32> to vector<1x8xf32>
    %1259 = arith.mulf %1258, %987 : vector<1x8xf32>
    %1260 = arith.subf %1257, %1259 : vector<1x8xf32>
    %1261 = vector.extract_strided_slice %202 {offsets = [12, 0], sizes = [1, 8], strides = [1, 1]} : vector<16x8xf32> to vector<1x8xf32>
    %1262 = arith.mulf %1261, %975 : vector<1x8xf32>
    %1263 = arith.subf %1260, %1262 : vector<1x8xf32>
    %1264 = vector.extract_strided_slice %202 {offsets = [13, 0], sizes = [1, 8], strides = [1, 1]} : vector<16x8xf32> to vector<1x8xf32>
    %1265 = arith.mulf %1264, %966 : vector<1x8xf32>
    %1266 = arith.subf %1263, %1265 : vector<1x8xf32>
    %1267 = vector.extract_strided_slice %202 {offsets = [14, 0], sizes = [1, 8], strides = [1, 1]} : vector<16x8xf32> to vector<1x8xf32>
    %1268 = arith.mulf %1267, %960 : vector<1x8xf32>
    %1269 = arith.subf %1266, %1268 : vector<1x8xf32>
    %1270 = vector.extract_strided_slice %202 {offsets = [15, 0], sizes = [1, 8], strides = [1, 1]} : vector<16x8xf32> to vector<1x8xf32>
    %1271 = arith.mulf %1270, %957 : vector<1x8xf32>
    %1272 = arith.subf %1269, %1271 : vector<1x8xf32>
    %1273 = vector.extract_strided_slice %103 {offsets = [1, 0], sizes = [1, 8], strides = [1, 1]} : vector<16x8xf32> to vector<1x8xf32>
    %1274 = arith.mulf %1273, %1272 : vector<1x8xf32>
    %1275 = arith.subf %104, %1274 : vector<1x8xf32>
    %1276 = vector.extract_strided_slice %103 {offsets = [2, 0], sizes = [1, 8], strides = [1, 1]} : vector<16x8xf32> to vector<1x8xf32>
    %1277 = arith.mulf %1276, %1230 : vector<1x8xf32>
    %1278 = arith.subf %1275, %1277 : vector<1x8xf32>
    %1279 = vector.extract_strided_slice %103 {offsets = [3, 0], sizes = [1, 8], strides = [1, 1]} : vector<16x8xf32> to vector<1x8xf32>
    %1280 = arith.mulf %1279, %1191 : vector<1x8xf32>
    %1281 = arith.subf %1278, %1280 : vector<1x8xf32>
    %1282 = vector.extract_strided_slice %103 {offsets = [4, 0], sizes = [1, 8], strides = [1, 1]} : vector<16x8xf32> to vector<1x8xf32>
    %1283 = arith.mulf %1282, %1155 : vector<1x8xf32>
    %1284 = arith.subf %1281, %1283 : vector<1x8xf32>
    %1285 = vector.extract_strided_slice %103 {offsets = [5, 0], sizes = [1, 8], strides = [1, 1]} : vector<16x8xf32> to vector<1x8xf32>
    %1286 = arith.mulf %1285, %1122 : vector<1x8xf32>
    %1287 = arith.subf %1284, %1286 : vector<1x8xf32>
    %1288 = vector.extract_strided_slice %103 {offsets = [6, 0], sizes = [1, 8], strides = [1, 1]} : vector<16x8xf32> to vector<1x8xf32>
    %1289 = arith.mulf %1288, %1092 : vector<1x8xf32>
    %1290 = arith.subf %1287, %1289 : vector<1x8xf32>
    %1291 = vector.extract_strided_slice %103 {offsets = [7, 0], sizes = [1, 8], strides = [1, 1]} : vector<16x8xf32> to vector<1x8xf32>
    %1292 = arith.mulf %1291, %1065 : vector<1x8xf32>
    %1293 = arith.subf %1290, %1292 : vector<1x8xf32>
    %1294 = vector.extract_strided_slice %103 {offsets = [8, 0], sizes = [1, 8], strides = [1, 1]} : vector<16x8xf32> to vector<1x8xf32>
    %1295 = arith.mulf %1294, %1041 : vector<1x8xf32>
    %1296 = arith.subf %1293, %1295 : vector<1x8xf32>
    %1297 = vector.extract_strided_slice %103 {offsets = [9, 0], sizes = [1, 8], strides = [1, 1]} : vector<16x8xf32> to vector<1x8xf32>
    %1298 = arith.mulf %1297, %1020 : vector<1x8xf32>
    %1299 = arith.subf %1296, %1298 : vector<1x8xf32>
    %1300 = vector.extract_strided_slice %103 {offsets = [10, 0], sizes = [1, 8], strides = [1, 1]} : vector<16x8xf32> to vector<1x8xf32>
    %1301 = arith.mulf %1300, %1002 : vector<1x8xf32>
    %1302 = arith.subf %1299, %1301 : vector<1x8xf32>
    %1303 = vector.extract_strided_slice %103 {offsets = [11, 0], sizes = [1, 8], strides = [1, 1]} : vector<16x8xf32> to vector<1x8xf32>
    %1304 = arith.mulf %1303, %987 : vector<1x8xf32>
    %1305 = arith.subf %1302, %1304 : vector<1x8xf32>
    %1306 = vector.extract_strided_slice %103 {offsets = [12, 0], sizes = [1, 8], strides = [1, 1]} : vector<16x8xf32> to vector<1x8xf32>
    %1307 = arith.mulf %1306, %975 : vector<1x8xf32>
    %1308 = arith.subf %1305, %1307 : vector<1x8xf32>
    %1309 = vector.extract_strided_slice %103 {offsets = [13, 0], sizes = [1, 8], strides = [1, 1]} : vector<16x8xf32> to vector<1x8xf32>
    %1310 = arith.mulf %1309, %966 : vector<1x8xf32>
    %1311 = arith.subf %1308, %1310 : vector<1x8xf32>
    %1312 = vector.extract_strided_slice %103 {offsets = [14, 0], sizes = [1, 8], strides = [1, 1]} : vector<16x8xf32> to vector<1x8xf32>
    %1313 = arith.mulf %1312, %960 : vector<1x8xf32>
    %1314 = arith.subf %1311, %1313 : vector<1x8xf32>
    %1315 = vector.extract_strided_slice %103 {offsets = [15, 0], sizes = [1, 8], strides = [1, 1]} : vector<16x8xf32> to vector<1x8xf32>
    %1316 = arith.mulf %1315, %957 : vector<1x8xf32>
    %1317 = arith.subf %1314, %1316 : vector<1x8xf32>
    %1318 = tpu.concatenate %1317, %1272, %1230, %1191, %1155, %1122, %1092, %1065, %1041, %1020, %1002, %987, %975, %966, %960, %957 in 0 : vector<1x8xf32>, vector<1x8xf32>, vector<1x8xf32>, vector<1x8xf32>, vector<1x8xf32>, vector<1x8xf32>, vector<1x8xf32>, vector<1x8xf32>, vector<1x8xf32>, vector<1x8xf32>, vector<1x8xf32>, vector<1x8xf32>, vector<1x8xf32>, vector<1x8xf32>, vector<1x8xf32>, vector<1x8xf32> -> vector<16x8xf32>
    %1319 = tpu.transpose %1318, [1, 0] : vector<16x8xf32> -> vector<8x16xf32>
    %c0_37 = arith.constant 0 : index
    %c0_38 = arith.constant 0 : index
    %1320 = vector.load %arg7[%c0_37, %c0_38] : memref<16x96xf32, #tpu.memory_space<vmem>>, vector<16x96xf32>
    %cst_39 = arith.constant dense<0.000000e+00> : vector<8x96xf32>
    %1321 = tpu.matmul %1319, %1320, %cst_39 {dimension_numbers = #tpu.dot_dimension_numbers<[1], [0], [0], [1], [0, 0, 1, 1], [], []>} : vector<8x16xf32>, vector<16x96xf32>, vector<8x96xf32> -> vector<8x96xf32>
    %1322 = vector.extract_strided_slice %1321 {offsets = [0, 0], sizes = [8, 32], strides = [1, 1]} : vector<8x96xf32> to vector<8x32xf32>
    %1323 = arith.mulf %35, %1322 : vector<8x32xf32>
    %1324 = vector.extract_strided_slice %1321 {offsets = [0, 32], sizes = [8, 32], strides = [1, 1]} : vector<8x96xf32> to vector<8x32xf32>
    %1325 = arith.mulf %39, %1324 : vector<8x32xf32>
    %1326 = arith.addf %1323, %1325 : vector<8x32xf32>
    %1327 = vector.extract_strided_slice %1321 {offsets = [0, 64], sizes = [8, 32], strides = [1, 1]} : vector<8x96xf32> to vector<8x32xf32>
    %1328 = arith.mulf %43, %1327 : vector<8x32xf32>
    %1329 = arith.addf %1326, %1328 : vector<8x32xf32>
    %cst_40 = arith.constant 1.000000e+00 : f32
    %1330 = vector.broadcast %cst_40 : f32 to vector<8x32xf32>
    %1331 = arith.mulf %1330, %1329 : vector<8x32xf32>
    %1332 = arith.subf %29, %1331 : vector<8x32xf32>
    %1333 = tpu.concatenate %31, %1332 in 1 : vector<8x32xf32>, vector<8x32xf32> -> vector<8x64xf32>
    %c0_41 = arith.constant 0 : index
    %c0_42 = arith.constant 0 : index
    %1334 = vector.load %arg9[%c0_41, %c0_42] : memref<8x64xf32, #tpu.memory_space<vmem>>, vector<8x64xf32>
    tpu.vector_store %arg9[%c0_41, %c0_42], %1333 {strides = array<i32>} : memref<8x64xf32, #tpu.memory_space<vmem>>, vector<8x64xf32>,
    return
  }
  func.func @transform_0(%arg0: i32) -> (i32, i32) {
    %c0_i32 = arith.constant 0 : i32
    %c0_i32_0 = arith.constant 0 : i32
    return %arg0, %c0_i32 : i32, i32
  }
  func.func @transform_1(%arg0: i32) -> (i32, i32) {
    %c0_i32 = arith.constant 0 : i32
    %c0_i32_0 = arith.constant 0 : i32
    return %arg0, %c0_i32 : i32, i32
  }
  func.func @transform_2(%arg0: i32) -> (i32, i32) {
    %c0_i32 = arith.constant 0 : i32
    %c0_i32_0 = arith.constant 0 : i32
    %c0_i32_1 = arith.constant 0 : i32
    return %c0_i32, %c0_i32_0 : i32, i32
  }
  func.func @transform_3(%arg0: i32) -> (i32, i32) {
    %c0_i32 = arith.constant 0 : i32
    %c0_i32_0 = arith.constant 0 : i32
    %c0_i32_1 = arith.constant 0 : i32
    return %c0_i32, %c0_i32_0 : i32, i32
  }
  func.func @transform_4(%arg0: i32) -> (i32, i32) {
    %c0_i32 = arith.constant 0 : i32
    %c0_i32_0 = arith.constant 0 : i32
    %c0_i32_1 = arith.constant 0 : i32
    return %c0_i32, %c0_i32_0 : i32, i32
  }
  func.func @transform_5(%arg0: i32) -> (i32, i32) {
    %c0_i32 = arith.constant 0 : i32
    %c0_i32_0 = arith.constant 0 : i32
    %c0_i32_1 = arith.constant 0 : i32
    return %c0_i32, %c0_i32_0 : i32, i32
  }
  func.func @transform_6(%arg0: i32) -> (i32, i32) {
    %c0_i32 = arith.constant 0 : i32
    %c0_i32_0 = arith.constant 0 : i32
    %c0_i32_1 = arith.constant 0 : i32
    return %c0_i32, %c0_i32_0 : i32, i32
  }
  func.func @transform_7(%arg0: i32) -> (i32, i32) {
    %c0_i32 = arith.constant 0 : i32
    %c0_i32_0 = arith.constant 0 : i32
    %c0_i32_1 = arith.constant 0 : i32
    return %c0_i32, %c0_i32_0 : i32, i32
  }
  func.func @transform_8(%arg0: i32) -> (i32, i32) {
    %c0_i32 = arith.constant 0 : i32
    %c0_i32_0 = arith.constant 0 : i32
    return %arg0, %c0_i32 : i32, i32
  }
}

</mosaic_0001>

<llo_original>
// kernel: tpu_custom_call.1
$region0: #{tpu_custom_call.1}
  #allocation0 [shape = 'u32[]', space=smem, size = 0x4, offset = 0x4, fixed_abs, tag = 'smem constant byte address 0x4 - core index']
  #allocation1 [shape = 'u32[72,128]{1,0:T(1,128)}', space=vmem, size = 0x9000, scoped, tag = 'internal scratch']
  %s0 = inlined_call_operand.vmem [shape: f32[8,48], index: 0, kind: input, shape index: {}]
  %s1 = inlined_call_operand.vmem [shape: f32[8,32], index: 1, kind: input, shape index: {}]
  %s2 = inlined_call_operand.vmem [shape: f32[48,128], index: 2, kind: input, shape index: {}]
  %s3 = inlined_call_operand.vmem [shape: f32[1,128], index: 3, kind: input, shape index: {}]
  %s4 = inlined_call_operand.vmem [shape: f32[256,192], index: 4, kind: input, shape index: {}]
  %s5 = inlined_call_operand.vmem [shape: f32[96,16], index: 5, kind: input, shape index: {}]
  %s6 = inlined_call_operand.vmem [shape: f32[16,96], index: 6, kind: input, shape index: {}]
  %s7 = inlined_call_operand.vmem [shape: f32[256,1], index: 7, kind: input, shape index: {}]
  %s8 = inlined_call_operand.hbm [shape: f32[8,64], index: 8, kind: output, shape index: {}]
  %s9 = sld [smem:[#allocation0]]
  $region42: #{tpu_custom_call.1} parent=0
    _
  %s11 = ssub.s32 1, %s9
  %s12 = scalar_select 0, %s11, %s9
  $region1: #{tpu_custom_call.1} parent=0
    #allocation2 [shape = 'u8[4096]{0}', space=vmem, size = 0x1000, scoped, tag = 'output window, operand 0, single buffered']
    #allocation3 [shape = 's32[1]{0}', space=sflag, size = 0x4, scoped, tag = 'scoped memory for tpu_custom_call.1']
    %13 = vsyncpa [#allocation3], 0
    // Predicated region
    $region2: #{tpu_custom_call.1} parent=1 // pred_check
      _
    $region3: #{tpu_custom_call.1} parent=1 // pred_check_branch
      %15 = sbr.rel (0) target = $region5
    $region4: #{tpu_custom_call.1} parent=1 // pred_region
      _
    $region5: #{tpu_custom_call.1} parent=1 // pred_fallthru
      _
    // Predicated region
    $region6: #{tpu_custom_call.1} parent=1 // pred_check
      _
    $region7: #{tpu_custom_call.1} parent=1 // pred_check_branch
      %17 = sbr.rel (0) target = $region9
    $region8: #{tpu_custom_call.1} parent=1 // pred_region
      _
    $region9: #{tpu_custom_call.1} parent=1 // pred_fallthru
      _
    // Predicated region
    $region10: #{tpu_custom_call.1} parent=1 // pred_check
      _
    $region11: #{tpu_custom_call.1} parent=1 // pred_check_branch
      %19 = sbr.rel (0) target = $region13
    $region12: #{tpu_custom_call.1} parent=1 // pred_region
      _
    $region13: #{tpu_custom_call.1} parent=1 // pred_fallthru
      _
    // Predicated region
    $region14: #{tpu_custom_call.1} parent=1 // pred_check
      _
    $region15: #{tpu_custom_call.1} parent=1 // pred_check_branch
      %21 = sbr.rel (0) target = $region17
    $region16: #{tpu_custom_call.1} parent=1 // pred_region
      _
    $region17: #{tpu_custom_call.1} parent=1 // pred_fallthru
      _
    // Predicated region
    $region18: #{tpu_custom_call.1} parent=1 // pred_check
      _
    $region19: #{tpu_custom_call.1} parent=1 // pred_check_branch
      %23 = sbr.rel (0) target = $region21
    $region20: #{tpu_custom_call.1} parent=1 // pred_region
      _
    $region21: #{tpu_custom_call.1} parent=1 // pred_fallthru
      _
    // Predicated region
    $region22: #{tpu_custom_call.1} parent=1 // pred_check
      _
    $region23: #{tpu_custom_call.1} parent=1 // pred_check_branch
      %25 = sbr.rel (0) target = $region25
    $region24: #{tpu_custom_call.1} parent=1 // pred_region
      _
    $region25: #{tpu_custom_call.1} parent=1 // pred_fallthru
      _
    // Predicated region
    $region26: #{tpu_custom_call.1} parent=1 // pred_check
      _
    $region27: #{tpu_custom_call.1} parent=1 // pred_check_branch
      %27 = sbr.rel (0) target = $region29
    $region28: #{tpu_custom_call.1} parent=1 // pred_region
      _
    $region29: #{tpu_custom_call.1} parent=1 // pred_fallthru
      _
    // Predicated region
    $region30: #{tpu_custom_call.1} parent=1 // pred_check
      _
    $region31: #{tpu_custom_call.1} parent=1 // pred_check_branch
      %29 = sbr.rel (0) target = $region33
    $region32: #{tpu_custom_call.1} parent=1 // pred_region
      _
    $region33: #{tpu_custom_call.1} parent=1 // pred_fallthru
      _
    %v30 = vld [vmem:[%s0] sm:$0xff]
    %v31 = vld [vmem:[%s1] sm:$0xff]
    %v32 = vld [vmem:[%s2] sm:$0xff]
    %v33 = vld [vmem:[%s2 + $0x8] sm:$0xff]
    %v34 = vld [vmem:[%s2 + $0x10] sm:$0xff]
    %v35 = vld [vmem:[%s2 + $0x18] sm:$0xff]
    %v36 = vld [vmem:[%s2 + $0x20] sm:$0xff]
    %v37 = vld [vmem:[%s2 + $0x28] sm:$0xff]
    %v38 = vld [vmem:[%s3] sm:$0x1]
    %v40 = vperm.slane %v38, 0
    %vm42 = vcmask 392192
    %v44 = vsel %vm42, %v30, 0
    %46 = vmatpush.msra.mxu0 0.0
    %47 = vmatpush.msra.mxu0 0.0
    %48 = vmatpush.msra.mxu0 0.0
    %49 = vmatpush.msra.mxu0 0.0
    %50 = vmatpush.msra.mxu0 0.0
    %51 = vmatpush.msra.mxu0 0.0
    %52 = vmatpush.msra.mxu0 0.0
    %53 = vmatpush.msra.mxu0 0.0
    %54 = vmatpush.msra.mxu0 0.0
    %55 = vmatpush.msra.mxu0 0.0
    %56 = vmatpush.msra.mxu0 %v37
    %57 = vmatpush.msra.mxu0 %v36
    %58 = vmatpush.msra.mxu0 %v35
    %59 = vmatpush.msra.mxu0 %v34
    %60 = vmatpush.msra.mxu0 %v33
    %61 = vmatpush.msra.mxu0 %v32
    %62 = vmatmul.f32.gmra.mxu0 %v44
    %v63 = vpop.f32.mrf.mxu0
    %v64 = vadd.f32 %v40, %v63
    %65 = vdwg.mxu0
    %v66 = vxor.u32 %v64, 2147483648
    %v67 = vmul.f32 %v66, 1.442695
    %v68 = vpow.pop %v67
    %v69 = vadd.f32 %v68, 1.0
    %v70 = vrcp.pop %v69
    %v71 = vmul.f32 %v69, %v70
    %v72 = vsub.f32 1.0, %v71
    %v73 = vmul.f32 %v70, %v72
    %v74 = vadd.f32 %v70, %v73
    %vm75 = vweird.f32 %v69
    %vm76 = vweird.f32 %v70
    %vm77 = vmor %vm75, %vm76
    %v78 = vsel %vm77, %v70, %v74
    %v79 = vand.u32 2147483647, %v69
    %vm80 = vcmp.eq.f32.partialorder %v79, 8.507059e+37
    %v81 = vand.u32 %v69, 2147483648
    %v82 = vor.u32 1.1754944e-38, %v81
    %v83 = vsel %vm80, %v82, %v78
    %v84 = vmul.f32 1.0, %v83
    %v85 = vtanh.pop %v64
    %87 = vrot.lane.b32.xlu0 %v31, 32
    %v88 = vpop.permute.xlu0 %87
    %v90 = vmul.f32 %v84, %v88
    %92 = vrot.lane.b32.xlu0 %v85, 64
    %v93 = vpop.permute.xlu0 %92
    %v95 = vmul.f32 %v84, %v93
    %97 = vrot.lane.b32.xlu0 %v95, 32
    %v98 = vpop.permute.xlu0 %97
    %v100 = vadd.f32 %v90, %v98
    %v101 = vtanh.pop %v100
    %103 = vrot.lane.b32.xlu0 %v101, 64
    %v104 = vpop.permute.xlu0 %103
    %v106 = vmul.f32 %v84, %v104
    %v107 = vsub.f32 1.0, %v84
    %v108 = vmul.f32 %v95, %v107
    %v109 = vmul.f32 %v90, %v107
    %v110 = vmul.f32 %v85, %v85
    %v111 = vsub.f32 1.0, %v110
    %113 = vrot.lane.b32.xlu0 %v111, 64
    %v114 = vpop.permute.xlu0 %113
    %v116 = vmul.f32 %v84, %v114
    %v117 = vmul.f32 %v108, %v108
    %119 = vrot.lane.b32.xlu0 %v109, 96
    %v120 = vpop.permute.xlu0 %119
    %v122 = vmul.f32 %v108, %v120
    %v123 = vmul.f32 %v108, %v116
    %v124 = vmul.f32 %v109, %v109
    %126 = vrot.lane.b32.xlu0 %v116, 32
    %v127 = vpop.permute.xlu0 %126
    %v129 = vmul.f32 %v109, %v127
    %v130 = vmul.f32 %v116, %v116
    %132 = vrot.lane.b32.xlu0 %v122, 32
    %v133 = vpop.permute.xlu0 %132
    %136 = vrot.lane.b32.xlu0 %v123, 64
    %v137 = vpop.permute.xlu0 %136
    %140 = vrot.lane.b32.xlu0 %v124, 64
    %v141 = vpop.permute.xlu0 %140
    %144 = vrot.lane.b32.xlu0 %v129, 96
    %v145 = vpop.permute.xlu0 %144
    %148 = vrot.lane.b32.xlu0 %v130, 32
    %v149 = vpop.permute.xlu0 %148
    %vm151 = vcmask 261120
    %v152 = vsel %vm151, %v117, %v133
    %vm153 = vcmask 523264
    %v154 = vsel %vm153, %v152, %v137
    %vm155 = vcmask 785408
    %v156 = vsel %vm155, %v154, %v141
    %v157 = vsel %vm151, %v145, %v149
    %v158 = vld [vmem:[%s4] sm:$0xff]
    %v159 = vld [vmem:[%s4 + $0x8] sm:$0xff]
    %v160 = vld [vmem:[%s4 + $0x10] sm:$0xff]
    %v161 = vld [vmem:[%s4 + $0x18] sm:$0xff]
    %v162 = vld [vmem:[%s4 + $0x20] sm:$0xff]
    %v163 = vld [vmem:[%s4 + $0x28] sm:$0xff]
    %v164 = vld [vmem:[%s4 + $0x30] sm:$0xff]
    %v165 = vld [vmem:[%s4 + $0x38] sm:$0xff]
    %v166 = vld [vmem:[%s4 + $0x40] sm:$0xff]
    %v167 = vld [vmem:[%s4 + $0x48] sm:$0xff]
    %v168 = vld [vmem:[%s4 + $0x50] sm:$0xff]
    %v169 = vld [vmem:[%s4 + $0x58] sm:$0xff]
    %v170 = vld [vmem:[%s4 + $0x60] sm:$0xff]
    %v171 = vld [vmem:[%s4 + $0x68] sm:$0xff]
    %v172 = vld [vmem:[%s4 + $0x70] sm:$0xff]
    %v173 = vld [vmem:[%s4 + $0x78] sm:$0xff]
    %v174 = vld [vmem:[%s4 + $0x80] sm:$0xff]
    %v175 = vld [vmem:[%s4 + $0x88] sm:$0xff]
    %v176 = vld [vmem:[%s4 + $0x90] sm:$0xff]
    %v177 = vld [vmem:[%s4 + $0x98] sm:$0xff]
    %v178 = vld [vmem:[%s4 + $0xa0] sm:$0xff]
    %v179 = vld [vmem:[%s4 + $0xa8] sm:$0xff]
    %v180 = vld [vmem:[%s4 + $0xb0] sm:$0xff]
    %v181 = vld [vmem:[%s4 + $0xb8] sm:$0xff]
    %v182 = vld [vmem:[%s4 + $0xc0] sm:$0xff]
    %v183 = vld [vmem:[%s4 + $0xc8] sm:$0xff]
    %v184 = vld [vmem:[%s4 + $0xd0] sm:$0xff]
    %v185 = vld [vmem:[%s4 + $0xd8] sm:$0xff]
    %v186 = vld [vmem:[%s4 + $0xe0] sm:$0xff]
    %v187 = vld [vmem:[%s4 + $0xe8] sm:$0xff]
    %v188 = vld [vmem:[%s4 + $0xf0] sm:$0xff]
    %v189 = vld [vmem:[%s4 + $0xf8] sm:$0xff]
    %v190 = vld [vmem:[%s4 + $0x100] sm:$0xff]
    %v191 = vld [vmem:[%s4 + $0x108] sm:$0xff]
    %v192 = vld [vmem:[%s4 + $0x110] sm:$0xff]
    %v193 = vld [vmem:[%s4 + $0x118] sm:$0xff]
    %v194 = vld [vmem:[%s4 + $0x120] sm:$0xff]
    %v195 = vld [vmem:[%s4 + $0x128] sm:$0xff]
    %v196 = vld [vmem:[%s4 + $0x130] sm:$0xff]
    %v197 = vld [vmem:[%s4 + $0x138] sm:$0xff]
    %v198 = vld [vmem:[%s4 + $0x140] sm:$0xff]
    %v199 = vld [vmem:[%s4 + $0x148] sm:$0xff]
    %v200 = vld [vmem:[%s4 + $0x150] sm:$0xff]
    %v201 = vld [vmem:[%s4 + $0x158] sm:$0xff]
    %v202 = vld [vmem:[%s4 + $0x160] sm:$0xff]
    %v203 = vld [vmem:[%s4 + $0x168] sm:$0xff]
    %v204 = vld [vmem:[%s4 + $0x170] sm:$0xff]
    %v205 = vld [vmem:[%s4 + $0x178] sm:$0xff]
    %v206 = vld [vmem:[%s4 + $0x180] sm:$0xff]
    %v207 = vld [vmem:[%s4 + $0x188] sm:$0xff]
    %v208 = vld [vmem:[%s4 + $0x190] sm:$0xff]
    %v209 = vld [vmem:[%s4 + $0x198] sm:$0xff]
    %v210 = vld [vmem:[%s4 + $0x1a0] sm:$0xff]
    %v211 = vld [vmem:[%s4 + $0x1a8] sm:$0xff]
    %v212 = vld [vmem:[%s4 + $0x1b0] sm:$0xff]
    %v213 = vld [vmem:[%s4 + $0x1b8] sm:$0xff]
    %v214 = vld [vmem:[%s4 + $0x1c0] sm:$0xff]
    %v215 = vld [vmem:[%s4 + $0x1c8] sm:$0xff]
    %v216 = vld [vmem:[%s4 + $0x1d0] sm:$0xff]
    %v217 = vld [vmem:[%s4 + $0x1d8] sm:$0xff]
    %v218 = vld [vmem:[%s4 + $0x1e0] sm:$0xff]
    %v219 = vld [vmem:[%s4 + $0x1e8] sm:$0xff]
    %v220 = vld [vmem:[%s4 + $0x1f0] sm:$0xff]
    %v221 = vld [vmem:[%s4 + $0x1f8] sm:$0xff]
    %v222 = vld [vmem:[%s7] sm:$0xff]
    %v223 = vld [vmem:[%s7 + $0x8] sm:$0xff]
    %v224 = vld [vmem:[%s7 + $0x10] sm:$0xff]
    %v225 = vld [vmem:[%s7 + $0x18] sm:$0xff]
    %v226 = vld [vmem:[%s7 + $0x20] sm:$0xff]
    %v227 = vld [vmem:[%s7 + $0x28] sm:$0xff]
    %v228 = vld [vmem:[%s7 + $0x30] sm:$0xff]
    %v229 = vld [vmem:[%s7 + $0x38] sm:$0xff]
    %v230 = vld [vmem:[%s7 + $0x40] sm:$0xff]
    %v231 = vld [vmem:[%s7 + $0x48] sm:$0xff]
    %v232 = vld [vmem:[%s7 + $0x50] sm:$0xff]
    %v233 = vld [vmem:[%s7 + $0x58] sm:$0xff]
    %v234 = vld [vmem:[%s7 + $0x60] sm:$0xff]
    %v235 = vld [vmem:[%s7 + $0x68] sm:$0xff]
    %v236 = vld [vmem:[%s7 + $0x70] sm:$0xff]
    %v237 = vld [vmem:[%s7 + $0x78] sm:$0xff]
    %v238 = vld [vmem:[%s7 + $0x80] sm:$0xff]
    %v239 = vld [vmem:[%s7 + $0x88] sm:$0xff]
    %v240 = vld [vmem:[%s7 + $0x90] sm:$0xff]
    %v241 = vld [vmem:[%s7 + $0x98] sm:$0xff]
    %v242 = vld [vmem:[%s7 + $0xa0] sm:$0xff]
    %v243 = vld [vmem:[%s7 + $0xa8] sm:$0xff]
    %v244 = vld [vmem:[%s7 + $0xb0] sm:$0xff]
    %v245 = vld [vmem:[%s7 + $0xb8] sm:$0xff]
    %v246 = vld [vmem:[%s7 + $0xc0] sm:$0xff]
    %v247 = vld [vmem:[%s7 + $0xc8] sm:$0xff]
    %v248 = vld [vmem:[%s7 + $0xd0] sm:$0xff]
    %v249 = vld [vmem:[%s7 + $0xd8] sm:$0xff]
    %v250 = vld [vmem:[%s7 + $0xe0] sm:$0xff]
    %v251 = vld [vmem:[%s7 + $0xe8] sm:$0xff]
    %v252 = vld [vmem:[%s7 + $0xf0] sm:$0xff]
    %v253 = vld [vmem:[%s7 + $0xf8] sm:$0xff]
    %255 = vset.pattern.permute.xlu0 0
    %256 = vperm.xlu0 %255, %v222
    %v257 = vpop.permute.xlu0 %256
    %260 = vset.pattern.permute.xlu0 0
    %261 = vperm.xlu0 %260, %v223
    %v262 = vpop.permute.xlu0 %261
    %265 = vset.pattern.permute.xlu0 0
    %266 = vperm.xlu0 %265, %v224
    %v267 = vpop.permute.xlu0 %266
    %270 = vset.pattern.permute.xlu0 0
    %271 = vperm.xlu0 %270, %v225
    %v272 = vpop.permute.xlu0 %271
    %275 = vset.pattern.permute.xlu0 0
    %276 = vperm.xlu0 %275, %v226
    %v277 = vpop.permute.xlu0 %276
    %280 = vset.pattern.permute.xlu0 0
    %281 = vperm.xlu0 %280, %v227
    %v282 = vpop.permute.xlu0 %281
    %285 = vset.pattern.permute.xlu0 0
    %286 = vperm.xlu0 %285, %v228
    %v287 = vpop.permute.xlu0 %286
    %290 = vset.pattern.permute.xlu0 0
    %291 = vperm.xlu0 %290, %v229
    %v292 = vpop.permute.xlu0 %291
    %295 = vset.pattern.permute.xlu0 0
    %296 = vperm.xlu0 %295, %v230
    %v297 = vpop.permute.xlu0 %296
    %300 = vset.pattern.permute.xlu0 0
    %301 = vperm.xlu0 %300, %v231
    %v302 = vpop.permute.xlu0 %301
    %305 = vset.pattern.permute.xlu0 0
    %306 = vperm.xlu0 %305, %v232
    %v307 = vpop.permute.xlu0 %306
    %310 = vset.pattern.permute.xlu0 0
    %311 = vperm.xlu0 %310, %v233
    %v312 = vpop.permute.xlu0 %311
    %315 = vset.pattern.permute.xlu0 0
    %316 = vperm.xlu0 %315, %v234
    %v317 = vpop.permute.xlu0 %316
    %320 = vset.pattern.permute.xlu0 0
    %321 = vperm.xlu0 %320, %v235
    %v322 = vpop.permute.xlu0 %321
    %325 = vset.pattern.permute.xlu0 0
    %326 = vperm.xlu0 %325, %v236
    %v327 = vpop.permute.xlu0 %326
    %330 = vset.pattern.permute.xlu0 0
    %331 = vperm.xlu0 %330, %v237
    %v332 = vpop.permute.xlu0 %331
    %335 = vset.pattern.permute.xlu0 0
    %336 = vperm.xlu0 %335, %v238
    %v337 = vpop.permute.xlu0 %336
    %340 = vset.pattern.permute.xlu0 0
    %341 = vperm.xlu0 %340, %v239
    %v342 = vpop.permute.xlu0 %341
    %345 = vset.pattern.permute.xlu0 0
    %346 = vperm.xlu0 %345, %v240
    %v347 = vpop.permute.xlu0 %346
    %350 = vset.pattern.permute.xlu0 0
    %351 = vperm.xlu0 %350, %v241
    %v352 = vpop.permute.xlu0 %351
    %355 = vset.pattern.permute.xlu0 0
    %356 = vperm.xlu0 %355, %v242
    %v357 = vpop.permute.xlu0 %356
    %360 = vset.pattern.permute.xlu0 0
    %361 = vperm.xlu0 %360, %v243
    %v362 = vpop.permute.xlu0 %361
    %365 = vset.pattern.permute.xlu0 0
    %366 = vperm.xlu0 %365, %v244
    %v367 = vpop.permute.xlu0 %366
    %370 = vset.pattern.permute.xlu0 0
    %371 = vperm.xlu0 %370, %v245
    %v372 = vpop.permute.xlu0 %371
    %375 = vset.pattern.permute.xlu0 0
    %376 = vperm.xlu0 %375, %v246
    %v377 = vpop.permute.xlu0 %376
    %380 = vset.pattern.permute.xlu0 0
    %381 = vperm.xlu0 %380, %v247
    %v382 = vpop.permute.xlu0 %381
    %385 = vset.pattern.permute.xlu0 0
    %386 = vperm.xlu0 %385, %v248
    %v387 = vpop.permute.xlu0 %386
    %390 = vset.pattern.permute.xlu0 0
    %391 = vperm.xlu0 %390, %v249
    %v392 = vpop.permute.xlu0 %391
    %395 = vset.pattern.permute.xlu0 0
    %396 = vperm.xlu0 %395, %v250
    %v397 = vpop.permute.xlu0 %396
    %400 = vset.pattern.permute.xlu0 0
    %401 = vperm.xlu0 %400, %v251
    %v402 = vpop.permute.xlu0 %401
    %405 = vset.pattern.permute.xlu0 0
    %406 = vperm.xlu0 %405, %v252
    %v407 = vpop.permute.xlu0 %406
    %410 = vset.pattern.permute.xlu0 0
    %411 = vperm.xlu0 %410, %v253
    %v412 = vpop.permute.xlu0 %411
    %v415 = vsel %vm153, %v159, 0
    %v418 = vsel %vm153, %v161, 0
    %v421 = vsel %vm153, %v163, 0
    %v424 = vsel %vm153, %v165, 0
    %v427 = vsel %vm153, %v167, 0
    %v430 = vsel %vm153, %v169, 0
    %v433 = vsel %vm153, %v171, 0
    %v436 = vsel %vm153, %v173, 0
    %v439 = vsel %vm153, %v175, 0
    %v442 = vsel %vm153, %v177, 0
    %v445 = vsel %vm153, %v179, 0
    %v448 = vsel %vm153, %v181, 0
    %v451 = vsel %vm153, %v183, 0
    %v454 = vsel %vm153, %v185, 0
    %v457 = vsel %vm153, %v187, 0
    %v460 = vsel %vm153, %v189, 0
    %v463 = vsel %vm153, %v191, 0
    %v466 = vsel %vm153, %v193, 0
    %v469 = vsel %vm153, %v195, 0
    %v472 = vsel %vm153, %v197, 0
    %v475 = vsel %vm153, %v199, 0
    %v478 = vsel %vm153, %v201, 0
    %v481 = vsel %vm153, %v203, 0
    %v484 = vsel %vm153, %v205, 0
    %v487 = vsel %vm153, %v207, 0
    %v490 = vsel %vm153, %v209, 0
    %v493 = vsel %vm153, %v211, 0
    %v496 = vsel %vm153, %v213, 0
    %v499 = vsel %vm153, %v215, 0
    %v502 = vsel %vm153, %v217, 0
    %v505 = vsel %vm153, %v219, 0
    %v508 = vsel %vm153, %v221, 0
    %v511 = vsel %vm153, %v157, 0
    %513 = vmatpush.xpose.msra.mxu0 0.0
    %514 = vmatpush.xpose.msra.mxu0 0.0
    %515 = vmatpush.xpose.msra.mxu0 0.0
    %516 = vmatpush.xpose.msra.mxu0 0.0
    %517 = vmatpush.xpose.msra.mxu0 0.0
    %518 = vmatpush.xpose.msra.mxu0 0.0
    %519 = vmatpush.xpose.msra.mxu0 0.0
    %520 = vmatpush.xpose.msra.mxu0 0.0
    %521 = vmatpush.xpose.msra.mxu0 0.0
    %522 = vmatpush.xpose.msra.mxu0 0.0
    %523 = vmatpush.xpose.msra.mxu0 0.0
    %524 = vmatpush.xpose.msra.mxu0 0.0
    %525 = vmatpush.xpose.msra.mxu0 0.0
    %526 = vmatpush.xpose.msra.mxu0 0.0
    %527 = vmatpush.xpose.msra.mxu0 0.0
    %528 = vmatpush.xpose.msra.mxu0 %v156
    %529 = vmatmul.f32.gmra.mxu0 %v158
    %v530 = vpop.f32.mrf.mxu0
    %v531 = vadd.f32 %v257, %v530
    %532 = vmatmul.f32.gmra.mxu0 %v160
    %v533 = vpop.f32.mrf.mxu0
    %v534 = vadd.f32 %v262, %v533
    %535 = vmatmul.f32.gmra.mxu0 %v162
    %v536 = vpop.f32.mrf.mxu0
    %v537 = vadd.f32 %v267, %v536
    %538 = vmatmul.f32.gmra.mxu0 %v164
    %v539 = vpop.f32.mrf.mxu0
    %v540 = vadd.f32 %v272, %v539
    %541 = vmatmul.f32.gmra.mxu0 %v166
    %v542 = vpop.f32.mrf.mxu0
    %v543 = vadd.f32 %v277, %v542
    %544 = vmatmul.f32.gmra.mxu0 %v168
    %v545 = vpop.f32.mrf.mxu0
    %v546 = vadd.f32 %v282, %v545
    %547 = vmatmul.f32.gmra.mxu0 %v170
    %v548 = vpop.f32.mrf.mxu0
    %v549 = vadd.f32 %v287, %v548
    %550 = vmatmul.f32.gmra.mxu0 %v172
    %v551 = vpop.f32.mrf.mxu0
    %v552 = vadd.f32 %v292, %v551
    %553 = vmatmul.f32.gmra.mxu0 %v174
    %v554 = vpop.f32.mrf.mxu0
    %v555 = vadd.f32 %v297, %v554
    %556 = vmatmul.f32.gmra.mxu0 %v176
    %v557 = vpop.f32.mrf.mxu0
    %v558 = vadd.f32 %v302, %v557
    %559 = vmatmul.f32.gmra.mxu0 %v178
    %v560 = vpop.f32.mrf.mxu0
    %v561 = vadd.f32 %v307, %v560
    %562 = vmatmul.f32.gmra.mxu0 %v180
    %v563 = vpop.f32.mrf.mxu0
    %v564 = vadd.f32 %v312, %v563
    %565 = vmatmul.f32.gmra.mxu0 %v182
    %v566 = vpop.f32.mrf.mxu0
    %v567 = vadd.f32 %v317, %v566
    %568 = vmatmul.f32.gmra.mxu0 %v184
    %v569 = vpop.f32.mrf.mxu0
    %v570 = vadd.f32 %v322, %v569
    %571 = vmatmul.f32.gmra.mxu0 %v186
    %v572 = vpop.f32.mrf.mxu0
    %v573 = vadd.f32 %v327, %v572
    %574 = vmatmul.f32.gmra.mxu0 %v188
    %v575 = vpop.f32.mrf.mxu0
    %v576 = vadd.f32 %v332, %v575
    %577 = vmatmul.f32.gmra.mxu0 %v190
    %v578 = vpop.f32.mrf.mxu0
    %v579 = vadd.f32 %v337, %v578
    %580 = vmatmul.f32.gmra.mxu0 %v192
    %v581 = vpop.f32.mrf.mxu0
    %v582 = vadd.f32 %v342, %v581
    %583 = vmatmul.f32.gmra.mxu0 %v194
    %v584 = vpop.f32.mrf.mxu0
    %v585 = vadd.f32 %v347, %v584
    %586 = vmatmul.f32.gmra.mxu0 %v196
    %v587 = vpop.f32.mrf.mxu0
    %v588 = vadd.f32 %v352, %v587
    %589 = vmatmul.f32.gmra.mxu0 %v198
    %v590 = vpop.f32.mrf.mxu0
    %v591 = vadd.f32 %v357, %v590
    %592 = vmatmul.f32.gmra.mxu0 %v200
    %v593 = vpop.f32.mrf.mxu0
    %v594 = vadd.f32 %v362, %v593
    %595 = vmatmul.f32.gmra.mxu0 %v202
    %v596 = vpop.f32.mrf.mxu0
    %v597 = vadd.f32 %v367, %v596
    %598 = vmatmul.f32.gmra.mxu0 %v204
    %v599 = vpop.f32.mrf.mxu0
    %v600 = vadd.f32 %v372, %v599
    %601 = vmatmul.f32.gmra.mxu0 %v206
    %v602 = vpop.f32.mrf.mxu0
    %v603 = vadd.f32 %v377, %v602
    %604 = vmatmul.f32.gmra.mxu0 %v208
    %v605 = vpop.f32.mrf.mxu0
    %v606 = vadd.f32 %v382, %v605
    %607 = vmatmul.f32.gmra.mxu0 %v210
    %v608 = vpop.f32.mrf.mxu0
    %v609 = vadd.f32 %v387, %v608
    %610 = vmatmul.f32.gmra.mxu0 %v212
    %v611 = vpop.f32.mrf.mxu0
    %v612 = vadd.f32 %v392, %v611
    %613 = vmatmul.f32.gmra.mxu0 %v214
    %v614 = vpop.f32.mrf.mxu0
    %v615 = vadd.f32 %v397, %v614
    %616 = vmatmul.f32.gmra.mxu0 %v216
    %v617 = vpop.f32.mrf.mxu0
    %v618 = vadd.f32 %v402, %v617
    %619 = vmatmul.f32.gmra.mxu0 %v218
    %v620 = vpop.f32.mrf.mxu0
    %v621 = vadd.f32 %v407, %v620
    %622 = vmatmul.f32.gmra.mxu0 %v220
    %v623 = vpop.f32.mrf.mxu0
    %v624 = vadd.f32 %v412, %v623
    %625 = vdwg.mxu0
    %626 = vmatpush.xpose.msra.mxu0 0.0
    %627 = vmatpush.xpose.msra.mxu0 0.0
    %628 = vmatpush.xpose.msra.mxu0 0.0
    %629 = vmatpush.xpose.msra.mxu0 0.0
    %630 = vmatpush.xpose.msra.mxu0 0.0
    %631 = vmatpush.xpose.msra.mxu0 0.0
    %632 = vmatpush.xpose.msra.mxu0 0.0
    %633 = vmatpush.xpose.msra.mxu0 0.0
    %634 = vmatpush.xpose.msra.mxu0 0.0
    %635 = vmatpush.xpose.msra.mxu0 0.0
    %636 = vmatpush.xpose.msra.mxu0 0.0
    %637 = vmatpush.xpose.msra.mxu0 0.0
    %638 = vmatpush.xpose.msra.mxu0 0.0
    %639 = vmatpush.xpose.msra.mxu0 0.0
    %640 = vmatpush.xpose.msra.mxu0 0.0
    %641 = vmatpush.xpose.msra.mxu0 %v511
    %642 = vmatmul.f32.gmra.mxu0 %v415
    %v643 = vpop.f32.mrf.mxu0
    %v644 = vadd.f32 %v531, %v643
    %645 = vmatmul.f32.gmra.mxu0 %v418
    %v646 = vpop.f32.mrf.mxu0
    %v647 = vadd.f32 %v534, %v646
    %648 = vmatmul.f32.gmra.mxu0 %v421
    %v649 = vpop.f32.mrf.mxu0
    %v650 = vadd.f32 %v537, %v649
    %651 = vmatmul.f32.gmra.mxu0 %v424
    %v652 = vpop.f32.mrf.mxu0
    %v653 = vadd.f32 %v540, %v652
    %654 = vmatmul.f32.gmra.mxu0 %v427
    %v655 = vpop.f32.mrf.mxu0
    %v656 = vadd.f32 %v543, %v655
    %657 = vmatmul.f32.gmra.mxu0 %v430
    %v658 = vpop.f32.mrf.mxu0
    %v659 = vadd.f32 %v546, %v658
    %660 = vmatmul.f32.gmra.mxu0 %v433
    %v661 = vpop.f32.mrf.mxu0
    %v662 = vadd.f32 %v549, %v661
    %663 = vmatmul.f32.gmra.mxu0 %v436
    %v664 = vpop.f32.mrf.mxu0
    %v665 = vadd.f32 %v552, %v664
    %666 = vmatmul.f32.gmra.mxu0 %v439
    %v667 = vpop.f32.mrf.mxu0
    %v668 = vadd.f32 %v555, %v667
    %669 = vmatmul.f32.gmra.mxu0 %v442
    %v670 = vpop.f32.mrf.mxu0
    %v671 = vadd.f32 %v558, %v670
    %672 = vmatmul.f32.gmra.mxu0 %v445
    %v673 = vpop.f32.mrf.mxu0
    %v674 = vadd.f32 %v561, %v673
    %675 = vmatmul.f32.gmra.mxu0 %v448
    %v676 = vpop.f32.mrf.mxu0
    %v677 = vadd.f32 %v564, %v676
    %678 = vmatmul.f32.gmra.mxu0 %v451
    %v679 = vpop.f32.mrf.mxu0
    %v680 = vadd.f32 %v567, %v679
    %681 = vmatmul.f32.gmra.mxu0 %v454
    %v682 = vpop.f32.mrf.mxu0
    %v683 = vadd.f32 %v570, %v682
    %684 = vmatmul.f32.gmra.mxu0 %v457
    %v685 = vpop.f32.mrf.mxu0
    %v686 = vadd.f32 %v573, %v685
    %687 = vmatmul.f32.gmra.mxu0 %v460
    %v688 = vpop.f32.mrf.mxu0
    %v689 = vadd.f32 %v576, %v688
    %690 = vmatmul.f32.gmra.mxu0 %v463
    %v691 = vpop.f32.mrf.mxu0
    %v692 = vadd.f32 %v579, %v691
    %693 = vmatmul.f32.gmra.mxu0 %v466
    %v694 = vpop.f32.mrf.mxu0
    %v695 = vadd.f32 %v582, %v694
    %696 = vmatmul.f32.gmra.mxu0 %v469
    %v697 = vpop.f32.mrf.mxu0
    %v698 = vadd.f32 %v585, %v697
    %699 = vmatmul.f32.gmra.mxu0 %v472
    %v700 = vpop.f32.mrf.mxu0
    %v701 = vadd.f32 %v588, %v700
    %702 = vmatmul.f32.gmra.mxu0 %v475
    %v703 = vpop.f32.mrf.mxu0
    %v704 = vadd.f32 %v591, %v703
    %705 = vmatmul.f32.gmra.mxu0 %v478
    %v706 = vpop.f32.mrf.mxu0
    %v707 = vadd.f32 %v594, %v706
    %708 = vmatmul.f32.gmra.mxu0 %v481
    %v709 = vpop.f32.mrf.mxu0
    %v710 = vadd.f32 %v597, %v709
    %711 = vmatmul.f32.gmra.mxu0 %v484
    %v712 = vpop.f32.mrf.mxu0
    %v713 = vadd.f32 %v600, %v712
    %714 = vmatmul.f32.gmra.mxu0 %v487
    %v715 = vpop.f32.mrf.mxu0
    %v716 = vadd.f32 %v603, %v715
    %717 = vmatmul.f32.gmra.mxu0 %v490
    %v718 = vpop.f32.mrf.mxu0
    %v719 = vadd.f32 %v606, %v718
    %720 = vmatmul.f32.gmra.mxu0 %v493
    %v721 = vpop.f32.mrf.mxu0
    %v722 = vadd.f32 %v609, %v721
    %723 = vmatmul.f32.gmra.mxu0 %v496
    %v724 = vpop.f32.mrf.mxu0
    %v725 = vadd.f32 %v612, %v724
    %726 = vmatmul.f32.gmra.mxu0 %v499
    %v727 = vpop.f32.mrf.mxu0
    %v728 = vadd.f32 %v615, %v727
    %729 = vmatmul.f32.gmra.mxu0 %v502
    %v730 = vpop.f32.mrf.mxu0
    %v731 = vadd.f32 %v618, %v730
    %732 = vmatmul.f32.gmra.mxu0 %v505
    %v733 = vpop.f32.mrf.mxu0
    %v734 = vadd.f32 %v621, %v733
    %735 = vmatmul.f32.gmra.mxu0 %v508
    %v736 = vpop.f32.mrf.mxu0
    %v737 = vadd.f32 %v624, %v736
    %738 = vdwg.mxu0
    %740 = vrot.lane.b32.xlu0 %v100, 96
    %v741 = vpop.permute.xlu0 %740
    %v743 = vmul.f32 %v108, %v741
    %v744 = vmul.f32 %v109, %v100
    %v745 = vmul.f32 %v116, %v741
    %747 = vrot.lane.b32.xlu0 %v745, 64
    %v748 = vpop.permute.xlu0 %747
    %v750 = vsel %vm151, %v743, %v744
    %v751 = vsel %vm153, %v750, %v748
    %v752 = vld [vmem:[%s5] sm:$0xff]
    %v753 = vld [vmem:[%s5 + $0x8] sm:$0xff]
    %v754 = vld [vmem:[%s5 + $0x10] sm:$0xff]
    %v755 = vld [vmem:[%s5 + $0x18] sm:$0xff]
    %v756 = vld [vmem:[%s5 + $0x20] sm:$0xff]
    %v757 = vld [vmem:[%s5 + $0x28] sm:$0xff]
    %v758 = vld [vmem:[%s5 + $0x30] sm:$0xff]
    %v759 = vld [vmem:[%s5 + $0x38] sm:$0xff]
    %v760 = vld [vmem:[%s5 + $0x40] sm:$0xff]
    %v761 = vld [vmem:[%s5 + $0x48] sm:$0xff]
    %v762 = vld [vmem:[%s5 + $0x50] sm:$0xff]
    %v763 = vld [vmem:[%s5 + $0x58] sm:$0xff]
    %v765 = vsel %vm155, %v751, 0
    %767 = vmatpush.msra.mxu0 0.0
    %768 = vmatpush.msra.mxu0 0.0
    %769 = vmatpush.msra.mxu0 0.0
    %770 = vmatpush.msra.mxu0 0.0
    %771 = vmatpush.msra.mxu0 %v763
    %772 = vmatpush.msra.mxu0 %v762
    %773 = vmatpush.msra.mxu0 %v761
    %774 = vmatpush.msra.mxu0 %v760
    %775 = vmatpush.msra.mxu0 %v759
    %776 = vmatpush.msra.mxu0 %v758
    %777 = vmatpush.msra.mxu0 %v757
    %778 = vmatpush.msra.mxu0 %v756
    %779 = vmatpush.msra.mxu0 %v755
    %780 = vmatpush.msra.mxu0 %v754
    %781 = vmatpush.msra.mxu0 %v753
    %782 = vmatpush.msra.mxu0 %v752
    %783 = vmatmul.f32.gmra.mxu0 %v765
    %v784 = vpop.f32.mrf.mxu0
    %v785 = vadd.f32 0.0, %v784
    %786 = vdwg.mxu0
    %787 = vxpose.xlu0.b32.start [1/16] %v785, 128
    %788 = vxpose.xlu0.b32.cont [2/16] 0.0, 128
    %789 = vxpose.xlu0.b32.cont [3/16] 0.0, 128
    %790 = vxpose.xlu0.b32.cont [4/16] 0.0, 128
    %791 = vxpose.xlu0.b32.cont [5/16] 0.0, 128
    %792 = vxpose.xlu0.b32.cont [6/16] 0.0, 128
    %793 = vxpose.xlu0.b32.cont [7/16] 0.0, 128
    %794 = vxpose.xlu0.b32.cont [8/16] 0.0, 128
    %795 = vxpose.xlu0.b32.cont [9/16] 0.0, 128
    %796 = vxpose.xlu0.b32.cont [10/16] 0.0, 128
    %797 = vxpose.xlu0.b32.cont [11/16] 0.0, 128
    %798 = vxpose.xlu0.b32.cont [12/16] 0.0, 128
    %799 = vxpose.xlu0.b32.cont [13/16] 0.0, 128
    %800 = vxpose.xlu0.b32.cont [14/16] 0.0, 128
    %801 = vxpose.xlu0.b32.cont [15/16] 0.0, 128
    %802 = vxpose.xlu0.b32.end [16/16] 0.0, 128
    %v803 = vpop.trf.xlu0
    %v804 = vpop.trf.xlu0
    %v805 = vpop.trf.xlu0
    %v806 = vpop.trf.xlu0
    %v807 = vpop.trf.xlu0
    %v808 = vpop.trf.xlu0
    %v809 = vpop.trf.xlu0
    %v810 = vpop.trf.xlu0
    %v811 = vpop.trf.xlu0
    %v812 = vpop.trf.xlu0
    %v813 = vpop.trf.xlu0
    %v814 = vpop.trf.xlu0
    %v815 = vpop.trf.xlu0
    %v816 = vpop.trf.xlu0
    %v817 = vpop.trf.xlu0
    %v818 = vpop.trf.xlu0
    %v819 = vrcp.pop %v644
    %v820 = vmul.f32 %v644, %v819
    %v821 = vsub.f32 2.0, %v820
    %v822 = vmul.f32 %v819, %v821
    %v823 = vperm.slane %v822, 0
    %v824 = vmul.f32 %v644, %v823
    %v825 = vmul.f32 %v647, %v823
    %v826 = vmul.f32 %v803, %v822
    %v827 = vperm.slane %v650, 0
    %v828 = vmul.f32 %v827, %v824
    %v829 = vmul.f32 %v827, %v825
    %v830 = vsub.f32 %v650, %v828
    %v831 = vsub.f32 %v653, %v829
    %v832 = vmul.f32 %v650, %v826
    %v834 = vrot.slane %v832, 7
    %v836 = vsub.f32 %v803, %v834
    %v837 = vperm.slane %v656, 0
    %v838 = vmul.f32 %v837, %v824
    %v839 = vmul.f32 %v837, %v825
    %v840 = vsub.f32 %v656, %v838
    %v841 = vsub.f32 %v659, %v839
    %v842 = vmul.f32 %v656, %v826
    %v844 = vrot.slane %v842, 6
    %v846 = vsub.f32 %v803, %v844
    %v847 = vperm.slane %v662, 0
    %v848 = vmul.f32 %v847, %v824
    %v849 = vmul.f32 %v847, %v825
    %v850 = vsub.f32 %v662, %v848
    %v851 = vsub.f32 %v665, %v849
    %v852 = vmul.f32 %v662, %v826
    %v854 = vrot.slane %v852, 5
    %v856 = vsub.f32 %v803, %v854
    %v857 = vperm.slane %v668, 0
    %v858 = vmul.f32 %v857, %v824
    %v859 = vmul.f32 %v857, %v825
    %v860 = vsub.f32 %v668, %v858
    %v861 = vsub.f32 %v671, %v859
    %v862 = vmul.f32 %v668, %v826
    %v864 = vrot.slane %v862, 4
    %v866 = vsub.f32 %v803, %v864
    %v867 = vperm.slane %v674, 0
    %v868 = vmul.f32 %v867, %v824
    %v869 = vmul.f32 %v867, %v825
    %v870 = vsub.f32 %v674, %v868
    %v871 = vsub.f32 %v677, %v869
    %v872 = vmul.f32 %v674, %v826
    %v874 = vrot.slane %v872, 3
    %v876 = vsub.f32 %v803, %v874
    %v877 = vperm.slane %v680, 0
    %v878 = vmul.f32 %v877, %v824
    %v879 = vmul.f32 %v877, %v825
    %v880 = vsub.f32 %v680, %v878
    %v881 = vsub.f32 %v683, %v879
    %v882 = vmul.f32 %v680, %v826
    %v884 = vrot.slane %v882, 2
    %v886 = vsub.f32 %v803, %v884
    %v887 = vperm.slane %v686, 0
    %v888 = vmul.f32 %v887, %v824
    %v889 = vmul.f32 %v887, %v825
    %v890 = vsub.f32 %v686, %v888
    %v891 = vsub.f32 %v689, %v889
    %v892 = vmul.f32 %v686, %v826
    %v894 = vrot.slane %v892, 1
    %v896 = vsub.f32 %v803, %v894
    %v897 = vperm.slane %v692, 0
    %v898 = vmul.f32 %v897, %v824
    %v899 = vmul.f32 %v897, %v825
    %v900 = vsub.f32 %v692, %v898
    %v901 = vsub.f32 %v695, %v899
    %v902 = vmul.f32 %v692, %v826
    %v903 = vsub.f32 %v804, %v902
    %v904 = vperm.slane %v698, 0
    %v905 = vmul.f32 %v904, %v824
    %v906 = vmul.f32 %v904, %v825
    %v907 = vsub.f32 %v698, %v905
    %v908 = vsub.f32 %v701, %v906
    %v909 = vmul.f32 %v698, %v826
    %v911 = vrot.slane %v909, 7
    %v913 = vsub.f32 %v804, %v911
    %v914 = vperm.slane %v704, 0
    %v915 = vmul.f32 %v914, %v824
    %v916 = vmul.f32 %v914, %v825
    %v917 = vsub.f32 %v704, %v915
    %v918 = vsub.f32 %v707, %v916
    %v919 = vmul.f32 %v704, %v826
    %v921 = vrot.slane %v919, 6
    %v923 = vsub.f32 %v804, %v921
    %v924 = vperm.slane %v710, 0
    %v925 = vmul.f32 %v924, %v824
    %v926 = vmul.f32 %v924, %v825
    %v927 = vsub.f32 %v710, %v925
    %v928 = vsub.f32 %v713, %v926
    %v929 = vmul.f32 %v710, %v826
    %v931 = vrot.slane %v929, 5
    %v933 = vsub.f32 %v804, %v931
    %v934 = vperm.slane %v716, 0
    %v935 = vmul.f32 %v934, %v824
    %v936 = vmul.f32 %v934, %v825
    %v937 = vsub.f32 %v716, %v935
    %v938 = vsub.f32 %v719, %v936
    %v939 = vmul.f32 %v716, %v826
    %v941 = vrot.slane %v939, 4
    %v943 = vsub.f32 %v804, %v941
    %v944 = vperm.slane %v722, 0
    %v945 = vmul.f32 %v944, %v824
    %v946 = vmul.f32 %v944, %v825
    %v947 = vsub.f32 %v722, %v945
    %v948 = vsub.f32 %v725, %v946
    %v949 = vmul.f32 %v722, %v826
    %v951 = vrot.slane %v949, 3
    %v953 = vsub.f32 %v804, %v951
    %v954 = vperm.slane %v728, 0
    %v955 = vmul.f32 %v954, %v824
    %v956 = vmul.f32 %v954, %v825
    %v957 = vsub.f32 %v728, %v955
    %v958 = vsub.f32 %v731, %v956
    %v959 = vmul.f32 %v728, %v826
    %v961 = vrot.slane %v959, 2
    %v963 = vsub.f32 %v804, %v961
    %v964 = vperm.slane %v734, 0
    %v965 = vmul.f32 %v964, %v824
    %v966 = vmul.f32 %v964, %v825
    %v967 = vsub.f32 %v734, %v965
    %v968 = vsub.f32 %v737, %v966
    %v969 = vmul.f32 %v734, %v826
    %v971 = vrot.slane %v969, 1
    %v973 = vsub.f32 %v804, %v971
    %v974 = vrcp.pop %v830
    %v975 = vmul.f32 %v830, %v974
    %v976 = vsub.f32 2.0, %v975
    %v977 = vmul.f32 %v974, %v976
    %v978 = vperm.slane %v977, 1
    %v979 = vmul.f32 %v830, %v978
    %v980 = vmul.f32 %v831, %v978
    %v981 = vmul.f32 %v836, %v977
    %v982 = vperm.slane %v840, 1
    %v983 = vmul.f32 %v982, %v979
    %v984 = vmul.f32 %v982, %v980
    %v985 = vsub.f32 %v840, %v983
    %v986 = vsub.f32 %v841, %v984
    %v987 = vmul.f32 %v840, %v981
    %v989 = vrot.slane %v987, 7
    %v991 = vsub.f32 %v846, %v989
    %v992 = vperm.slane %v850, 1
    %v993 = vmul.f32 %v992, %v979
    %v994 = vmul.f32 %v992, %v980
    %v995 = vsub.f32 %v850, %v993
    %v996 = vsub.f32 %v851, %v994
    %v997 = vmul.f32 %v850, %v981
    %v999 = vrot.slane %v997, 6
    %v1001 = vsub.f32 %v856, %v999
    %v1002 = vperm.slane %v860, 1
    %v1003 = vmul.f32 %v1002, %v979
    %v1004 = vmul.f32 %v1002, %v980
    %v1005 = vsub.f32 %v860, %v1003
    %v1006 = vsub.f32 %v861, %v1004
    %v1007 = vmul.f32 %v860, %v981
    %v1009 = vrot.slane %v1007, 5
    %v1011 = vsub.f32 %v866, %v1009
    %v1012 = vperm.slane %v870, 1
    %v1013 = vmul.f32 %v1012, %v979
    %v1014 = vmul.f32 %v1012, %v980
    %v1015 = vsub.f32 %v870, %v1013
    %v1016 = vsub.f32 %v871, %v1014
    %v1017 = vmul.f32 %v870, %v981
    %v1019 = vrot.slane %v1017, 4
    %v1021 = vsub.f32 %v876, %v1019
    %v1022 = vperm.slane %v880, 1
    %v1023 = vmul.f32 %v1022, %v979
    %v1024 = vmul.f32 %v1022, %v980
    %v1025 = vsub.f32 %v880, %v1023
    %v1026 = vsub.f32 %v881, %v1024
    %v1027 = vmul.f32 %v880, %v981
    %v1029 = vrot.slane %v1027, 3
    %v1031 = vsub.f32 %v886, %v1029
    %v1032 = vperm.slane %v890, 1
    %v1033 = vmul.f32 %v1032, %v979
    %v1034 = vmul.f32 %v1032, %v980
    %v1035 = vsub.f32 %v890, %v1033
    %v1036 = vsub.f32 %v891, %v1034
    %v1037 = vmul.f32 %v890, %v981
    %v1039 = vrot.slane %v1037, 2
    %v1041 = vsub.f32 %v896, %v1039
    %v1042 = vperm.slane %v900, 1
    %v1043 = vmul.f32 %v1042, %v979
    %v1044 = vmul.f32 %v1042, %v980
    %v1045 = vsub.f32 %v900, %v1043
    %v1046 = vsub.f32 %v901, %v1044
    %v1047 = vmul.f32 %v900, %v981
    %v1049 = vrot.slane %v1047, 1
    %v1051 = vsub.f32 %v903, %v1049
    %v1052 = vperm.slane %v907, 1
    %v1053 = vmul.f32 %v1052, %v979
    %v1054 = vmul.f32 %v1052, %v980
    %v1055 = vsub.f32 %v907, %v1053
    %v1056 = vsub.f32 %v908, %v1054
    %v1057 = vmul.f32 %v907, %v981
    %v1058 = vsub.f32 %v913, %v1057
    %v1059 = vperm.slane %v917, 1
    %v1060 = vmul.f32 %v1059, %v979
    %v1061 = vmul.f32 %v1059, %v980
    %v1062 = vsub.f32 %v917, %v1060
    %v1063 = vsub.f32 %v918, %v1061
    %v1064 = vmul.f32 %v917, %v981
    %v1066 = vrot.slane %v1064, 7
    %v1068 = vsub.f32 %v923, %v1066
    %v1069 = vperm.slane %v927, 1
    %v1070 = vmul.f32 %v1069, %v979
    %v1071 = vmul.f32 %v1069, %v980
    %v1072 = vsub.f32 %v927, %v1070
    %v1073 = vsub.f32 %v928, %v1071
    %v1074 = vmul.f32 %v927, %v981
    %v1076 = vrot.slane %v1074, 6
    %v1078 = vsub.f32 %v933, %v1076
    %v1079 = vperm.slane %v937, 1
    %v1080 = vmul.f32 %v1079, %v979
    %v1081 = vmul.f32 %v1079, %v980
    %v1082 = vsub.f32 %v937, %v1080
    %v1083 = vsub.f32 %v938, %v1081
    %v1084 = vmul.f32 %v937, %v981
    %v1086 = vrot.slane %v1084, 5
    %v1088 = vsub.f32 %v943, %v1086
    %v1089 = vperm.slane %v947, 1
    %v1090 = vmul.f32 %v1089, %v979
    %v1091 = vmul.f32 %v1089, %v980
    %v1092 = vsub.f32 %v947, %v1090
    %v1093 = vsub.f32 %v948, %v1091
    %v1094 = vmul.f32 %v947, %v981
    %v1096 = vrot.slane %v1094, 4
    %v1098 = vsub.f32 %v953, %v1096
    %v1099 = vperm.slane %v957, 1
    %v1100 = vmul.f32 %v1099, %v979
    %v1101 = vmul.f32 %v1099, %v980
    %v1102 = vsub.f32 %v957, %v1100
    %v1103 = vsub.f32 %v958, %v1101
    %v1104 = vmul.f32 %v957, %v981
    %v1106 = vrot.slane %v1104, 3
    %v1108 = vsub.f32 %v963, %v1106
    %v1109 = vperm.slane %v967, 1
    %v1110 = vmul.f32 %v1109, %v979
    %v1111 = vmul.f32 %v1109, %v980
    %v1112 = vsub.f32 %v967, %v1110
    %v1113 = vsub.f32 %v968, %v1111
    %v1114 = vmul.f32 %v967, %v981
    %v1116 = vrot.slane %v1114, 2
    %v1118 = vsub.f32 %v973, %v1116
    %v1119 = vrcp.pop %v985
    %v1120 = vmul.f32 %v985, %v1119
    %v1121 = vsub.f32 2.0, %v1120
    %v1122 = vmul.f32 %v1119, %v1121
    %v1123 = vperm.slane %v1122, 2
    %v1124 = vmul.f32 %v985, %v1123
    %v1125 = vmul.f32 %v986, %v1123
    %v1126 = vmul.f32 %v991, %v1122
    %v1127 = vperm.slane %v995, 2
    %v1128 = vmul.f32 %v1127, %v1124
    %v1129 = vmul.f32 %v1127, %v1125
    %v1130 = vsub.f32 %v995, %v1128
    %v1131 = vsub.f32 %v996, %v1129
    %v1132 = vmul.f32 %v995, %v1126
    %v1134 = vrot.slane %v1132, 7
    %v1136 = vsub.f32 %v1001, %v1134
    %v1137 = vperm.slane %v1005, 2
    %v1138 = vmul.f32 %v1137, %v1124
    %v1139 = vmul.f32 %v1137, %v1125
    %v1140 = vsub.f32 %v1005, %v1138
    %v1141 = vsub.f32 %v1006, %v1139
    %v1142 = vmul.f32 %v1005, %v1126
    %v1144 = vrot.slane %v1142, 6
    %v1146 = vsub.f32 %v1011, %v1144
    %v1147 = vperm.slane %v1015, 2
    %v1148 = vmul.f32 %v1147, %v1124
    %v1149 = vmul.f32 %v1147, %v1125
    %v1150 = vsub.f32 %v1015, %v1148
    %v1151 = vsub.f32 %v1016, %v1149
    %v1152 = vmul.f32 %v1015, %v1126
    %v1154 = vrot.slane %v1152, 5
    %v1156 = vsub.f32 %v1021, %v1154
    %v1157 = vperm.slane %v1025, 2
    %v1158 = vmul.f32 %v1157, %v1124
    %v1159 = vmul.f32 %v1157, %v1125
    %v1160 = vsub.f32 %v1025, %v1158
    %v1161 = vsub.f32 %v1026, %v1159
    %v1162 = vmul.f32 %v1025, %v1126
    %v1164 = vrot.slane %v1162, 4
    %v1166 = vsub.f32 %v1031, %v1164
    %v1167 = vperm.slane %v1035, 2
    %v1168 = vmul.f32 %v1167, %v1124
    %v1169 = vmul.f32 %v1167, %v1125
    %v1170 = vsub.f32 %v1035, %v1168
    %v1171 = vsub.f32 %v1036, %v1169
    %v1172 = vmul.f32 %v1035, %v1126
    %v1174 = vrot.slane %v1172, 3
    %v1176 = vsub.f32 %v1041, %v1174
    %v1177 = vperm.slane %v1045, 2
    %v1178 = vmul.f32 %v1177, %v1124
    %v1179 = vmul.f32 %v1177, %v1125
    %v1180 = vsub.f32 %v1045, %v1178
    %v1181 = vsub.f32 %v1046, %v1179
    %v1182 = vmul.f32 %v1045, %v1126
    %v1184 = vrot.slane %v1182, 2
    %v1186 = vsub.f32 %v1051, %v1184
    %v1187 = vperm.slane %v1055, 2
    %v1188 = vmul.f32 %v1187, %v1124
    %v1189 = vmul.f32 %v1187, %v1125
    %v1190 = vsub.f32 %v1055, %v1188
    %v1191 = vsub.f32 %v1056, %v1189
    %v1192 = vmul.f32 %v1055, %v1126
    %v1194 = vrot.slane %v1192, 1
    %v1196 = vsub.f32 %v1058, %v1194
    %v1197 = vperm.slane %v1062, 2
    %v1198 = vmul.f32 %v1197, %v1124
    %v1199 = vmul.f32 %v1197, %v1125
    %v1200 = vsub.f32 %v1062, %v1198
    %v1201 = vsub.f32 %v1063, %v1199
    %v1202 = vmul.f32 %v1062, %v1126
    %v1203 = vsub.f32 %v1068, %v1202
    %v1204 = vperm.slane %v1072, 2
    %v1205 = vmul.f32 %v1204, %v1124
    %v1206 = vmul.f32 %v1204, %v1125
    %v1207 = vsub.f32 %v1072, %v1205
    %v1208 = vsub.f32 %v1073, %v1206
    %v1209 = vmul.f32 %v1072, %v1126
    %v1211 = vrot.slane %v1209, 7
    %v1213 = vsub.f32 %v1078, %v1211
    %v1214 = vperm.slane %v1082, 2
    %v1215 = vmul.f32 %v1214, %v1124
    %v1216 = vmul.f32 %v1214, %v1125
    %v1217 = vsub.f32 %v1082, %v1215
    %v1218 = vsub.f32 %v1083, %v1216
    %v1219 = vmul.f32 %v1082, %v1126
    %v1221 = vrot.slane %v1219, 6
    %v1223 = vsub.f32 %v1088, %v1221
    %v1224 = vperm.slane %v1092, 2
    %v1225 = vmul.f32 %v1224, %v1124
    %v1226 = vmul.f32 %v1224, %v1125
    %v1227 = vsub.f32 %v1092, %v1225
    %v1228 = vsub.f32 %v1093, %v1226
    %v1229 = vmul.f32 %v1092, %v1126
    %v1231 = vrot.slane %v1229, 5
    %v1233 = vsub.f32 %v1098, %v1231
    %v1234 = vperm.slane %v1102, 2
    %v1235 = vmul.f32 %v1234, %v1124
    %v1236 = vmul.f32 %v1234, %v1125
    %v1237 = vsub.f32 %v1102, %v1235
    %v1238 = vsub.f32 %v1103, %v1236
    %v1239 = vmul.f32 %v1102, %v1126
    %v1241 = vrot.slane %v1239, 4
    %v1243 = vsub.f32 %v1108, %v1241
    %v1244 = vperm.slane %v1112, 2
    %v1245 = vmul.f32 %v1244, %v1124
    %v1246 = vmul.f32 %v1244, %v1125
    %v1247 = vsub.f32 %v1112, %v1245
    %v1248 = vsub.f32 %v1113, %v1246
    %v1249 = vmul.f32 %v1112, %v1126
    %v1251 = vrot.slane %v1249, 3
    %v1253 = vsub.f32 %v1118, %v1251
    %v1254 = vrcp.pop %v1130
    %v1255 = vmul.f32 %v1130, %v1254
    %v1256 = vsub.f32 2.0, %v1255
    %v1257 = vmul.f32 %v1254, %v1256
    %v1258 = vperm.slane %v1257, 3
    %v1259 = vmul.f32 %v1130, %v1258
    %v1260 = vmul.f32 %v1131, %v1258
    %v1261 = vmul.f32 %v1136, %v1257
    %v1262 = vperm.slane %v1140, 3
    %v1263 = vmul.f32 %v1262, %v1259
    %v1264 = vmul.f32 %v1262, %v1260
    %v1265 = vsub.f32 %v1140, %v1263
    %v1266 = vsub.f32 %v1141, %v1264
    %v1267 = vmul.f32 %v1140, %v1261
    %v1269 = vrot.slane %v1267, 7
    %v1271 = vsub.f32 %v1146, %v1269
    %v1272 = vperm.slane %v1150, 3
    %v1273 = vmul.f32 %v1272, %v1259
    %v1274 = vmul.f32 %v1272, %v1260
    %v1275 = vsub.f32 %v1150, %v1273
    %v1276 = vsub.f32 %v1151, %v1274
    %v1277 = vmul.f32 %v1150, %v1261
    %v1279 = vrot.slane %v1277, 6
    %v1281 = vsub.f32 %v1156, %v1279
    %v1282 = vperm.slane %v1160, 3
    %v1283 = vmul.f32 %v1282, %v1259
    %v1284 = vmul.f32 %v1282, %v1260
    %v1285 = vsub.f32 %v1160, %v1283
    %v1286 = vsub.f32 %v1161, %v1284
    %v1287 = vmul.f32 %v1160, %v1261
    %v1289 = vrot.slane %v1287, 5
    %v1291 = vsub.f32 %v1166, %v1289
    %v1292 = vperm.slane %v1170, 3
    %v1293 = vmul.f32 %v1292, %v1259
    %v1294 = vmul.f32 %v1292, %v1260
    %v1295 = vsub.f32 %v1170, %v1293
    %v1296 = vsub.f32 %v1171, %v1294
    %v1297 = vmul.f32 %v1170, %v1261
    %v1299 = vrot.slane %v1297, 4
    %v1301 = vsub.f32 %v1176, %v1299
    %v1302 = vperm.slane %v1180, 3
    %v1303 = vmul.f32 %v1302, %v1259
    %v1304 = vmul.f32 %v1302, %v1260
    %v1305 = vsub.f32 %v1180, %v1303
    %v1306 = vsub.f32 %v1181, %v1304
    %v1307 = vmul.f32 %v1180, %v1261
    %v1309 = vrot.slane %v1307, 3
    %v1311 = vsub.f32 %v1186, %v1309
    %v1312 = vperm.slane %v1190, 3
    %v1313 = vmul.f32 %v1312, %v1259
    %v1314 = vmul.f32 %v1312, %v1260
    %v1315 = vsub.f32 %v1190, %v1313
    %v1316 = vsub.f32 %v1191, %v1314
    %v1317 = vmul.f32 %v1190, %v1261
    %v1319 = vrot.slane %v1317, 2
    %v1321 = vsub.f32 %v1196, %v1319
    %v1322 = vperm.slane %v1200, 3
    %v1323 = vmul.f32 %v1322, %v1259
    %v1324 = vmul.f32 %v1322, %v1260
    %v1325 = vsub.f32 %v1200, %v1323
    %v1326 = vsub.f32 %v1201, %v1324
    %v1327 = vmul.f32 %v1200, %v1261
    %v1329 = vrot.slane %v1327, 1
    %v1331 = vsub.f32 %v1203, %v1329
    %v1332 = vperm.slane %v1207, 3
    %v1333 = vmul.f32 %v1332, %v1259
    %v1334 = vmul.f32 %v1332, %v1260
    %v1335 = vsub.f32 %v1207, %v1333
    %v1336 = vsub.f32 %v1208, %v1334
    %v1337 = vmul.f32 %v1207, %v1261
    %v1338 = vsub.f32 %v1213, %v1337
    %v1339 = vperm.slane %v1217, 3
    %v1340 = vmul.f32 %v1339, %v1259
    %v1341 = vmul.f32 %v1339, %v1260
    %v1342 = vsub.f32 %v1217, %v1340
    %v1343 = vsub.f32 %v1218, %v1341
    %v1344 = vmul.f32 %v1217, %v1261
    %v1346 = vrot.slane %v1344, 7
    %v1348 = vsub.f32 %v1223, %v1346
    %v1349 = vperm.slane %v1227, 3
    %v1350 = vmul.f32 %v1349, %v1259
    %v1351 = vmul.f32 %v1349, %v1260
    %v1352 = vsub.f32 %v1227, %v1350
    %v1353 = vsub.f32 %v1228, %v1351
    %v1354 = vmul.f32 %v1227, %v1261
    %v1356 = vrot.slane %v1354, 6
    %v1358 = vsub.f32 %v1233, %v1356
    %v1359 = vperm.slane %v1237, 3
    %v1360 = vmul.f32 %v1359, %v1259
    %v1361 = vmul.f32 %v1359, %v1260
    %v1362 = vsub.f32 %v1237, %v1360
    %v1363 = vsub.f32 %v1238, %v1361
    %v1364 = vmul.f32 %v1237, %v1261
    %v1366 = vrot.slane %v1364, 5
    %v1368 = vsub.f32 %v1243, %v1366
    %v1369 = vperm.slane %v1247, 3
    %v1370 = vmul.f32 %v1369, %v1259
    %v1371 = vmul.f32 %v1369, %v1260
    %v1372 = vsub.f32 %v1247, %v1370
    %v1373 = vsub.f32 %v1248, %v1371
    %v1374 = vmul.f32 %v1247, %v1261
    %v1376 = vrot.slane %v1374, 4
    %v1378 = vsub.f32 %v1253, %v1376
    %v1379 = vrcp.pop %v1265
    %v1380 = vmul.f32 %v1265, %v1379
    %v1381 = vsub.f32 2.0, %v1380
    %v1382 = vmul.f32 %v1379, %v1381
    %v1383 = vperm.slane %v1382, 4
    %v1384 = vmul.f32 %v1265, %v1383
    %v1385 = vmul.f32 %v1266, %v1383
    %v1386 = vmul.f32 %v1271, %v1382
    %v1387 = vperm.slane %v1275, 4
    %v1388 = vmul.f32 %v1387, %v1384
    %v1389 = vmul.f32 %v1387, %v1385
    %v1390 = vsub.f32 %v1275, %v1388
    %v1391 = vsub.f32 %v1276, %v1389
    %v1392 = vmul.f32 %v1275, %v1386
    %v1394 = vrot.slane %v1392, 7
    %v1396 = vsub.f32 %v1281, %v1394
    %v1397 = vperm.slane %v1285, 4
    %v1398 = vmul.f32 %v1397, %v1384
    %v1399 = vmul.f32 %v1397, %v1385
    %v1400 = vsub.f32 %v1285, %v1398
    %v1401 = vsub.f32 %v1286, %v1399
    %v1402 = vmul.f32 %v1285, %v1386
    %v1404 = vrot.slane %v1402, 6
    %v1406 = vsub.f32 %v1291, %v1404
    %v1407 = vperm.slane %v1295, 4
    %v1408 = vmul.f32 %v1407, %v1384
    %v1409 = vmul.f32 %v1407, %v1385
    %v1410 = vsub.f32 %v1295, %v1408
    %v1411 = vsub.f32 %v1296, %v1409
    %v1412 = vmul.f32 %v1295, %v1386
    %v1414 = vrot.slane %v1412, 5
    %v1416 = vsub.f32 %v1301, %v1414
    %v1417 = vperm.slane %v1305, 4
    %v1418 = vmul.f32 %v1417, %v1384
    %v1419 = vmul.f32 %v1417, %v1385
    %v1420 = vsub.f32 %v1305, %v1418
    %v1421 = vsub.f32 %v1306, %v1419
    %v1422 = vmul.f32 %v1305, %v1386
    %v1424 = vrot.slane %v1422, 4
    %v1426 = vsub.f32 %v1311, %v1424
    %v1427 = vperm.slane %v1315, 4
    %v1428 = vmul.f32 %v1427, %v1384
    %v1429 = vmul.f32 %v1427, %v1385
    %v1430 = vsub.f32 %v1315, %v1428
    %v1431 = vsub.f32 %v1316, %v1429
    %v1432 = vmul.f32 %v1315, %v1386
    %v1434 = vrot.slane %v1432, 3
    %v1436 = vsub.f32 %v1321, %v1434
    %v1437 = vperm.slane %v1325, 4
    %v1438 = vmul.f32 %v1437, %v1384
    %v1439 = vmul.f32 %v1437, %v1385
    %v1440 = vsub.f32 %v1325, %v1438
    %v1441 = vsub.f32 %v1326, %v1439
    %v1442 = vmul.f32 %v1325, %v1386
    %v1444 = vrot.slane %v1442, 2
    %v1446 = vsub.f32 %v1331, %v1444
    %v1447 = vperm.slane %v1335, 4
    %v1448 = vmul.f32 %v1447, %v1384
    %v1449 = vmul.f32 %v1447, %v1385
    %v1450 = vsub.f32 %v1335, %v1448
    %v1451 = vsub.f32 %v1336, %v1449
    %v1452 = vmul.f32 %v1335, %v1386
    %v1454 = vrot.slane %v1452, 1
    %v1456 = vsub.f32 %v1338, %v1454
    %v1457 = vperm.slane %v1342, 4
    %v1458 = vmul.f32 %v1457, %v1384
    %v1459 = vmul.f32 %v1457, %v1385
    %v1460 = vsub.f32 %v1342, %v1458
    %v1461 = vsub.f32 %v1343, %v1459
    %v1462 = vmul.f32 %v1342, %v1386
    %v1463 = vsub.f32 %v1348, %v1462
    %v1464 = vperm.slane %v1352, 4
    %v1465 = vmul.f32 %v1464, %v1384
    %v1466 = vmul.f32 %v1464, %v1385
    %v1467 = vsub.f32 %v1352, %v1465
    %v1468 = vsub.f32 %v1353, %v1466
    %v1469 = vmul.f32 %v1352, %v1386
    %v1471 = vrot.slane %v1469, 7
    %v1473 = vsub.f32 %v1358, %v1471
    %v1474 = vperm.slane %v1362, 4
    %v1475 = vmul.f32 %v1474, %v1384
    %v1476 = vmul.f32 %v1474, %v1385
    %v1477 = vsub.f32 %v1362, %v1475
    %v1478 = vsub.f32 %v1363, %v1476
    %v1479 = vmul.f32 %v1362, %v1386
    %v1481 = vrot.slane %v1479, 6
    %v1483 = vsub.f32 %v1368, %v1481
    %v1484 = vperm.slane %v1372, 4
    %v1485 = vmul.f32 %v1484, %v1384
    %v1486 = vmul.f32 %v1484, %v1385
    %v1487 = vsub.f32 %v1372, %v1485
    %v1488 = vsub.f32 %v1373, %v1486
    %v1489 = vmul.f32 %v1372, %v1386
    %v1491 = vrot.slane %v1489, 5
    %v1493 = vsub.f32 %v1378, %v1491
    %v1494 = vrcp.pop %v1390
    %v1495 = vmul.f32 %v1390, %v1494
    %v1496 = vsub.f32 2.0, %v1495
    %v1497 = vmul.f32 %v1494, %v1496
    %v1498 = vperm.slane %v1497, 5
    %v1499 = vmul.f32 %v1390, %v1498
    %v1500 = vmul.f32 %v1391, %v1498
    %v1501 = vmul.f32 %v1396, %v1497
    %v1502 = vperm.slane %v1400, 5
    %v1503 = vmul.f32 %v1502, %v1499
    %v1504 = vmul.f32 %v1502, %v1500
    %v1505 = vsub.f32 %v1400, %v1503
    %v1506 = vsub.f32 %v1401, %v1504
    %v1507 = vmul.f32 %v1400, %v1501
    %v1509 = vrot.slane %v1507, 7
    %v1511 = vsub.f32 %v1406, %v1509
    %v1512 = vperm.slane %v1410, 5
    %v1513 = vmul.f32 %v1512, %v1499
    %v1514 = vmul.f32 %v1512, %v1500
    %v1515 = vsub.f32 %v1410, %v1513
    %v1516 = vsub.f32 %v1411, %v1514
    %v1517 = vmul.f32 %v1410, %v1501
    %v1519 = vrot.slane %v1517, 6
    %v1521 = vsub.f32 %v1416, %v1519
    %v1522 = vperm.slane %v1420, 5
    %v1523 = vmul.f32 %v1522, %v1499
    %v1524 = vmul.f32 %v1522, %v1500
    %v1525 = vsub.f32 %v1420, %v1523
    %v1526 = vsub.f32 %v1421, %v1524
    %v1527 = vmul.f32 %v1420, %v1501
    %v1529 = vrot.slane %v1527, 5
    %v1531 = vsub.f32 %v1426, %v1529
    %v1532 = vperm.slane %v1430, 5
    %v1533 = vmul.f32 %v1532, %v1499
    %v1534 = vmul.f32 %v1532, %v1500
    %v1535 = vsub.f32 %v1430, %v1533
    %v1536 = vsub.f32 %v1431, %v1534
    %v1537 = vmul.f32 %v1430, %v1501
    %v1539 = vrot.slane %v1537, 4
    %v1541 = vsub.f32 %v1436, %v1539
    %v1542 = vperm.slane %v1440, 5
    %v1543 = vmul.f32 %v1542, %v1499
    %v1544 = vmul.f32 %v1542, %v1500
    %v1545 = vsub.f32 %v1440, %v1543
    %v1546 = vsub.f32 %v1441, %v1544
    %v1547 = vmul.f32 %v1440, %v1501
    %v1549 = vrot.slane %v1547, 3
    %v1551 = vsub.f32 %v1446, %v1549
    %v1552 = vperm.slane %v1450, 5
    %v1553 = vmul.f32 %v1552, %v1499
    %v1554 = vmul.f32 %v1552, %v1500
    %v1555 = vsub.f32 %v1450, %v1553
    %v1556 = vsub.f32 %v1451, %v1554
    %v1557 = vmul.f32 %v1450, %v1501
    %v1559 = vrot.slane %v1557, 2
    %v1561 = vsub.f32 %v1456, %v1559
    %v1562 = vperm.slane %v1460, 5
    %v1563 = vmul.f32 %v1562, %v1499
    %v1564 = vmul.f32 %v1562, %v1500
    %v1565 = vsub.f32 %v1460, %v1563
    %v1566 = vsub.f32 %v1461, %v1564
    %v1567 = vmul.f32 %v1460, %v1501
    %v1569 = vrot.slane %v1567, 1
    %v1571 = vsub.f32 %v1463, %v1569
    %v1572 = vperm.slane %v1467, 5
    %v1573 = vmul.f32 %v1572, %v1499
    %v1574 = vmul.f32 %v1572, %v1500
    %v1575 = vsub.f32 %v1467, %v1573
    %v1576 = vsub.f32 %v1468, %v1574
    %v1577 = vmul.f32 %v1467, %v1501
    %v1578 = vsub.f32 %v1473, %v1577
    %v1579 = vperm.slane %v1477, 5
    %v1580 = vmul.f32 %v1579, %v1499
    %v1581 = vmul.f32 %v1579, %v1500
    %v1582 = vsub.f32 %v1477, %v1580
    %v1583 = vsub.f32 %v1478, %v1581
    %v1584 = vmul.f32 %v1477, %v1501
    %v1586 = vrot.slane %v1584, 7
    %v1588 = vsub.f32 %v1483, %v1586
    %v1589 = vperm.slane %v1487, 5
    %v1590 = vmul.f32 %v1589, %v1499
    %v1591 = vmul.f32 %v1589, %v1500
    %v1592 = vsub.f32 %v1487, %v1590
    %v1593 = vsub.f32 %v1488, %v1591
    %v1594 = vmul.f32 %v1487, %v1501
    %v1596 = vrot.slane %v1594, 6
    %v1598 = vsub.f32 %v1493, %v1596
    %v1599 = vrcp.pop %v1505
    %v1600 = vmul.f32 %v1505, %v1599
    %v1601 = vsub.f32 2.0, %v1600
    %v1602 = vmul.f32 %v1599, %v1601
    %v1603 = vperm.slane %v1602, 6
    %v1604 = vmul.f32 %v1505, %v1603
    %v1605 = vmul.f32 %v1506, %v1603
    %v1606 = vmul.f32 %v1511, %v1602
    %v1607 = vperm.slane %v1515, 6
    %v1608 = vmul.f32 %v1607, %v1604
    %v1609 = vmul.f32 %v1607, %v1605
    %v1610 = vsub.f32 %v1515, %v1608
    %v1611 = vsub.f32 %v1516, %v1609
    %v1612 = vmul.f32 %v1515, %v1606
    %v1614 = vrot.slane %v1612, 7
    %v1616 = vsub.f32 %v1521, %v1614
    %v1617 = vperm.slane %v1525, 6
    %v1618 = vmul.f32 %v1617, %v1604
    %v1619 = vmul.f32 %v1617, %v1605
    %v1620 = vsub.f32 %v1525, %v1618
    %v1621 = vsub.f32 %v1526, %v1619
    %v1622 = vmul.f32 %v1525, %v1606
    %v1624 = vrot.slane %v1622, 6
    %v1626 = vsub.f32 %v1531, %v1624
    %v1627 = vperm.slane %v1535, 6
    %v1628 = vmul.f32 %v1627, %v1604
    %v1629 = vmul.f32 %v1627, %v1605
    %v1630 = vsub.f32 %v1535, %v1628
    %v1631 = vsub.f32 %v1536, %v1629
    %v1632 = vmul.f32 %v1535, %v1606
    %v1634 = vrot.slane %v1632, 5
    %v1636 = vsub.f32 %v1541, %v1634
    %v1637 = vperm.slane %v1545, 6
    %v1638 = vmul.f32 %v1637, %v1604
    %v1639 = vmul.f32 %v1637, %v1605
    %v1640 = vsub.f32 %v1545, %v1638
    %v1641 = vsub.f32 %v1546, %v1639
    %v1642 = vmul.f32 %v1545, %v1606
    %v1644 = vrot.slane %v1642, 4
    %v1646 = vsub.f32 %v1551, %v1644
    %v1647 = vperm.slane %v1555, 6
    %v1648 = vmul.f32 %v1647, %v1604
    %v1649 = vmul.f32 %v1647, %v1605
    %v1650 = vsub.f32 %v1555, %v1648
    %v1651 = vsub.f32 %v1556, %v1649
    %v1652 = vmul.f32 %v1555, %v1606
    %v1654 = vrot.slane %v1652, 3
    %v1656 = vsub.f32 %v1561, %v1654
    %v1657 = vperm.slane %v1565, 6
    %v1658 = vmul.f32 %v1657, %v1604
    %v1659 = vmul.f32 %v1657, %v1605
    %v1660 = vsub.f32 %v1565, %v1658
    %v1661 = vsub.f32 %v1566, %v1659
    %v1662 = vmul.f32 %v1565, %v1606
    %v1664 = vrot.slane %v1662, 2
    %v1666 = vsub.f32 %v1571, %v1664
    %v1667 = vperm.slane %v1575, 6
    %v1668 = vmul.f32 %v1667, %v1604
    %v1669 = vmul.f32 %v1667, %v1605
    %v1670 = vsub.f32 %v1575, %v1668
    %v1671 = vsub.f32 %v1576, %v1669
    %v1672 = vmul.f32 %v1575, %v1606
    %v1674 = vrot.slane %v1672, 1
    %v1676 = vsub.f32 %v1578, %v1674
    %v1677 = vperm.slane %v1582, 6
    %v1678 = vmul.f32 %v1677, %v1604
    %v1679 = vmul.f32 %v1677, %v1605
    %v1680 = vsub.f32 %v1582, %v1678
    %v1681 = vsub.f32 %v1583, %v1679
    %v1682 = vmul.f32 %v1582, %v1606
    %v1683 = vsub.f32 %v1588, %v1682
    %v1684 = vperm.slane %v1592, 6
    %v1685 = vmul.f32 %v1684, %v1604
    %v1686 = vmul.f32 %v1684, %v1605
    %v1687 = vsub.f32 %v1592, %v1685
    %v1688 = vsub.f32 %v1593, %v1686
    %v1689 = vmul.f32 %v1592, %v1606
    %v1691 = vrot.slane %v1689, 7
    %v1693 = vsub.f32 %v1598, %v1691
    %v1694 = vrcp.pop %v1610
    %v1695 = vmul.f32 %v1610, %v1694
    %v1696 = vsub.f32 2.0, %v1695
    %v1697 = vmul.f32 %v1694, %v1696
    %v1698 = vperm.slane %v1697, 7
    %v1699 = vmul.f32 %v1611, %v1698
    %v1700 = vmul.f32 %v1616, %v1697
    %v1701 = vperm.slane %v1620, 7
    %v1702 = vmul.f32 %v1701, %v1699
    %v1703 = vsub.f32 %v1621, %v1702
    %v1704 = vmul.f32 %v1620, %v1700
    %v1706 = vrot.slane %v1704, 7
    %v1708 = vsub.f32 %v1626, %v1706
    %v1709 = vperm.slane %v1630, 7
    %v1710 = vmul.f32 %v1709, %v1699
    %v1711 = vsub.f32 %v1631, %v1710
    %v1712 = vmul.f32 %v1630, %v1700
    %v1714 = vrot.slane %v1712, 6
    %v1716 = vsub.f32 %v1636, %v1714
    %v1717 = vperm.slane %v1640, 7
    %v1718 = vmul.f32 %v1717, %v1699
    %v1719 = vsub.f32 %v1641, %v1718
    %v1720 = vmul.f32 %v1640, %v1700
    %v1722 = vrot.slane %v1720, 5
    %v1724 = vsub.f32 %v1646, %v1722
    %v1725 = vperm.slane %v1650, 7
    %v1726 = vmul.f32 %v1725, %v1699
    %v1727 = vsub.f32 %v1651, %v1726
    %v1728 = vmul.f32 %v1650, %v1700
    %v1730 = vrot.slane %v1728, 4
    %v1732 = vsub.f32 %v1656, %v1730
    %v1733 = vperm.slane %v1660, 7
    %v1734 = vmul.f32 %v1733, %v1699
    %v1735 = vsub.f32 %v1661, %v1734
    %v1736 = vmul.f32 %v1660, %v1700
    %v1738 = vrot.slane %v1736, 3
    %v1740 = vsub.f32 %v1666, %v1738
    %v1741 = vperm.slane %v1670, 7
    %v1742 = vmul.f32 %v1741, %v1699
    %v1743 = vsub.f32 %v1671, %v1742
    %v1744 = vmul.f32 %v1670, %v1700
    %v1746 = vrot.slane %v1744, 2
    %v1748 = vsub.f32 %v1676, %v1746
    %v1749 = vperm.slane %v1680, 7
    %v1750 = vmul.f32 %v1749, %v1699
    %v1751 = vsub.f32 %v1681, %v1750
    %v1752 = vmul.f32 %v1680, %v1700
    %v1754 = vrot.slane %v1752, 1
    %v1756 = vsub.f32 %v1683, %v1754
    %v1757 = vperm.slane %v1687, 7
    %v1758 = vmul.f32 %v1757, %v1699
    %v1759 = vsub.f32 %v1688, %v1758
    %v1760 = vmul.f32 %v1687, %v1700
    %v1761 = vsub.f32 %v1693, %v1760
    %v1762 = vrcp.pop %v1703
    %v1763 = vmul.f32 %v1703, %v1762
    %v1764 = vsub.f32 2.0, %v1763
    %v1765 = vmul.f32 %v1762, %v1764
    %v1766 = vperm.slane %v1765, 0
    %v1767 = vmul.f32 %v1703, %v1766
    %v1768 = vmul.f32 %v1708, %v1765
    %v1769 = vperm.slane %v1711, 0
    %v1770 = vmul.f32 %v1769, %v1767
    %v1771 = vsub.f32 %v1711, %v1770
    %v1772 = vmul.f32 %v1711, %v1768
    %v1774 = vrot.slane %v1772, 7
    %v1776 = vsub.f32 %v1716, %v1774
    %v1777 = vperm.slane %v1719, 0
    %v1778 = vmul.f32 %v1777, %v1767
    %v1779 = vsub.f32 %v1719, %v1778
    %v1780 = vmul.f32 %v1719, %v1768
    %v1782 = vrot.slane %v1780, 6
    %v1784 = vsub.f32 %v1724, %v1782
    %v1785 = vperm.slane %v1727, 0
    %v1786 = vmul.f32 %v1785, %v1767
    %v1787 = vsub.f32 %v1727, %v1786
    %v1788 = vmul.f32 %v1727, %v1768
    %v1790 = vrot.slane %v1788, 5
    %v1792 = vsub.f32 %v1732, %v1790
    %v1793 = vperm.slane %v1735, 0
    %v1794 = vmul.f32 %v1793, %v1767
    %v1795 = vsub.f32 %v1735, %v1794
    %v1796 = vmul.f32 %v1735, %v1768
    %v1798 = vrot.slane %v1796, 4
    %v1800 = vsub.f32 %v1740, %v1798
    %v1801 = vperm.slane %v1743, 0
    %v1802 = vmul.f32 %v1801, %v1767
    %v1803 = vsub.f32 %v1743, %v1802
    %v1804 = vmul.f32 %v1743, %v1768
    %v1806 = vrot.slane %v1804, 3
    %v1808 = vsub.f32 %v1748, %v1806
    %v1809 = vperm.slane %v1751, 0
    %v1810 = vmul.f32 %v1809, %v1767
    %v1811 = vsub.f32 %v1751, %v1810
    %v1812 = vmul.f32 %v1751, %v1768
    %v1814 = vrot.slane %v1812, 2
    %v1816 = vsub.f32 %v1756, %v1814
    %v1817 = vperm.slane %v1759, 0
    %v1818 = vmul.f32 %v1817, %v1767
    %v1819 = vsub.f32 %v1759, %v1818
    %v1820 = vmul.f32 %v1759, %v1768
    %v1822 = vrot.slane %v1820, 1
    %v1824 = vsub.f32 %v1761, %v1822
    %v1825 = vrcp.pop %v1771
    %v1826 = vmul.f32 %v1771, %v1825
    %v1827 = vsub.f32 2.0, %v1826
    %v1828 = vmul.f32 %v1825, %v1827
    %v1829 = vperm.slane %v1828, 1
    %v1830 = vmul.f32 %v1771, %v1829
    %v1831 = vmul.f32 %v1776, %v1828
    %v1832 = vperm.slane %v1779, 1
    %v1833 = vmul.f32 %v1832, %v1830
    %v1834 = vsub.f32 %v1779, %v1833
    %v1835 = vmul.f32 %v1779, %v1831
    %v1837 = vrot.slane %v1835, 7
    %v1839 = vsub.f32 %v1784, %v1837
    %v1840 = vperm.slane %v1787, 1
    %v1841 = vmul.f32 %v1840, %v1830
    %v1842 = vsub.f32 %v1787, %v1841
    %v1843 = vmul.f32 %v1787, %v1831
    %v1845 = vrot.slane %v1843, 6
    %v1847 = vsub.f32 %v1792, %v1845
    %v1848 = vperm.slane %v1795, 1
    %v1849 = vmul.f32 %v1848, %v1830
    %v1850 = vsub.f32 %v1795, %v1849
    %v1851 = vmul.f32 %v1795, %v1831
    %v1853 = vrot.slane %v1851, 5
    %v1855 = vsub.f32 %v1800, %v1853
    %v1856 = vperm.slane %v1803, 1
    %v1857 = vmul.f32 %v1856, %v1830
    %v1858 = vsub.f32 %v1803, %v1857
    %v1859 = vmul.f32 %v1803, %v1831
    %v1861 = vrot.slane %v1859, 4
    %v1863 = vsub.f32 %v1808, %v1861
    %v1864 = vperm.slane %v1811, 1
    %v1865 = vmul.f32 %v1864, %v1830
    %v1866 = vsub.f32 %v1811, %v1865
    %v1867 = vmul.f32 %v1811, %v1831
    %v1869 = vrot.slane %v1867, 3
    %v1871 = vsub.f32 %v1816, %v1869
    %v1872 = vperm.slane %v1819, 1
    %v1873 = vmul.f32 %v1872, %v1830
    %v1874 = vsub.f32 %v1819, %v1873
    %v1875 = vmul.f32 %v1819, %v1831
    %v1877 = vrot.slane %v1875, 2
    %v1879 = vsub.f32 %v1824, %v1877
    %v1880 = vrcp.pop %v1834
    %v1881 = vmul.f32 %v1834, %v1880
    %v1882 = vsub.f32 2.0, %v1881
    %v1883 = vmul.f32 %v1880, %v1882
    %v1884 = vperm.slane %v1883, 2
    %v1885 = vmul.f32 %v1834, %v1884
    %v1886 = vmul.f32 %v1839, %v1883
    %v1887 = vperm.slane %v1842, 2
    %v1888 = vmul.f32 %v1887, %v1885
    %v1889 = vsub.f32 %v1842, %v1888
    %v1890 = vmul.f32 %v1842, %v1886
    %v1892 = vrot.slane %v1890, 7
    %v1894 = vsub.f32 %v1847, %v1892
    %v1895 = vperm.slane %v1850, 2
    %v1896 = vmul.f32 %v1895, %v1885
    %v1897 = vsub.f32 %v1850, %v1896
    %v1898 = vmul.f32 %v1850, %v1886
    %v1900 = vrot.slane %v1898, 6
    %v1902 = vsub.f32 %v1855, %v1900
    %v1903 = vperm.slane %v1858, 2
    %v1904 = vmul.f32 %v1903, %v1885
    %v1905 = vsub.f32 %v1858, %v1904
    %v1906 = vmul.f32 %v1858, %v1886
    %v1908 = vrot.slane %v1906, 5
    %v1910 = vsub.f32 %v1863, %v1908
    %v1911 = vperm.slane %v1866, 2
    %v1912 = vmul.f32 %v1911, %v1885
    %v1913 = vsub.f32 %v1866, %v1912
    %v1914 = vmul.f32 %v1866, %v1886
    %v1916 = vrot.slane %v1914, 4
    %v1918 = vsub.f32 %v1871, %v1916
    %v1919 = vperm.slane %v1874, 2
    %v1920 = vmul.f32 %v1919, %v1885
    %v1921 = vsub.f32 %v1874, %v1920
    %v1922 = vmul.f32 %v1874, %v1886
    %v1924 = vrot.slane %v1922, 3
    %v1926 = vsub.f32 %v1879, %v1924
    %v1927 = vrcp.pop %v1889
    %v1928 = vmul.f32 %v1889, %v1927
    %v1929 = vsub.f32 2.0, %v1928
    %v1930 = vmul.f32 %v1927, %v1929
    %v1931 = vperm.slane %v1930, 3
    %v1932 = vmul.f32 %v1889, %v1931
    %v1933 = vmul.f32 %v1894, %v1930
    %v1934 = vperm.slane %v1897, 3
    %v1935 = vmul.f32 %v1934, %v1932
    %v1936 = vsub.f32 %v1897, %v1935
    %v1937 = vmul.f32 %v1897, %v1933
    %v1939 = vrot.slane %v1937, 7
    %v1941 = vsub.f32 %v1902, %v1939
    %v1942 = vperm.slane %v1905, 3
    %v1943 = vmul.f32 %v1942, %v1932
    %v1944 = vsub.f32 %v1905, %v1943
    %v1945 = vmul.f32 %v1905, %v1933
    %v1947 = vrot.slane %v1945, 6
    %v1949 = vsub.f32 %v1910, %v1947
    %v1950 = vperm.slane %v1913, 3
    %v1951 = vmul.f32 %v1950, %v1932
    %v1952 = vsub.f32 %v1913, %v1951
    %v1953 = vmul.f32 %v1913, %v1933
    %v1955 = vrot.slane %v1953, 5
    %v1957 = vsub.f32 %v1918, %v1955
    %v1958 = vperm.slane %v1921, 3
    %v1959 = vmul.f32 %v1958, %v1932
    %v1960 = vsub.f32 %v1921, %v1959
    %v1961 = vmul.f32 %v1921, %v1933
    %v1963 = vrot.slane %v1961, 4
    %v1965 = vsub.f32 %v1926, %v1963
    %v1966 = vrcp.pop %v1936
    %v1967 = vmul.f32 %v1936, %v1966
    %v1968 = vsub.f32 2.0, %v1967
    %v1969 = vmul.f32 %v1966, %v1968
    %v1970 = vperm.slane %v1969, 4
    %v1971 = vmul.f32 %v1936, %v1970
    %v1972 = vmul.f32 %v1941, %v1969
    %v1973 = vperm.slane %v1944, 4
    %v1974 = vmul.f32 %v1973, %v1971
    %v1975 = vsub.f32 %v1944, %v1974
    %v1976 = vmul.f32 %v1944, %v1972
    %v1978 = vrot.slane %v1976, 7
    %v1980 = vsub.f32 %v1949, %v1978
    %v1981 = vperm.slane %v1952, 4
    %v1982 = vmul.f32 %v1981, %v1971
    %v1983 = vsub.f32 %v1952, %v1982
    %v1984 = vmul.f32 %v1952, %v1972
    %v1986 = vrot.slane %v1984, 6
    %v1988 = vsub.f32 %v1957, %v1986
    %v1989 = vperm.slane %v1960, 4
    %v1990 = vmul.f32 %v1989, %v1971
    %v1991 = vsub.f32 %v1960, %v1990
    %v1992 = vmul.f32 %v1960, %v1972
    %v1994 = vrot.slane %v1992, 5
    %v1996 = vsub.f32 %v1965, %v1994
    %v1997 = vrcp.pop %v1975
    %v1998 = vmul.f32 %v1975, %v1997
    %v1999 = vsub.f32 2.0, %v1998
    %v2000 = vmul.f32 %v1997, %v1999
    %v2001 = vperm.slane %v2000, 5
    %v2002 = vmul.f32 %v1975, %v2001
    %v2003 = vmul.f32 %v1980, %v2000
    %v2004 = vperm.slane %v1983, 5
    %v2005 = vmul.f32 %v2004, %v2002
    %v2006 = vsub.f32 %v1983, %v2005
    %v2007 = vmul.f32 %v1983, %v2003
    %v2009 = vrot.slane %v2007, 7
    %v2011 = vsub.f32 %v1988, %v2009
    %v2012 = vperm.slane %v1991, 5
    %v2013 = vmul.f32 %v2012, %v2002
    %v2014 = vsub.f32 %v1991, %v2013
    %v2015 = vmul.f32 %v1991, %v2003
    %v2017 = vrot.slane %v2015, 6
    %v2019 = vsub.f32 %v1996, %v2017
    %v2020 = vrcp.pop %v2006
    %v2021 = vmul.f32 %v2006, %v2020
    %v2022 = vsub.f32 2.0, %v2021
    %v2023 = vmul.f32 %v2020, %v2022
    %v2024 = vperm.slane %v2023, 6
    %v2025 = vmul.f32 %v2006, %v2024
    %v2026 = vmul.f32 %v2011, %v2023
    %v2027 = vperm.slane %v2014, 6
    %v2028 = vmul.f32 %v2027, %v2025
    %v2029 = vsub.f32 %v2014, %v2028
    %v2030 = vmul.f32 %v2014, %v2026
    %v2032 = vrot.slane %v2030, 7
    %v2034 = vsub.f32 %v2019, %v2032
    %v2035 = vrcp.pop %v2029
    %v2036 = vmul.f32 %v2029, %v2035
    %v2037 = vsub.f32 2.0, %v2036
    %v2038 = vmul.f32 %v2035, %v2037
    %v2039 = vmul.f32 %v2034, %v2038
    %v2040 = vmul.f32 %v2025, %v2039
    %v2042 = vrot.slane %v2040, 1
    %v2044 = vsub.f32 %v2026, %v2042
    %v2045 = vmul.f32 %v2002, %v2044
    %v2047 = vrot.slane %v2045, 1
    %v2049 = vsub.f32 %v2003, %v2047
    %v2050 = vmul.f32 %v2002, %v2039
    %v2052 = vrot.slane %v2050, 2
    %v2054 = vsub.f32 %v2049, %v2052
    %v2055 = vmul.f32 %v1971, %v2054
    %v2057 = vrot.slane %v2055, 1
    %v2059 = vsub.f32 %v1972, %v2057
    %v2060 = vmul.f32 %v1971, %v2044
    %v2062 = vrot.slane %v2060, 2
    %v2064 = vsub.f32 %v2059, %v2062
    %v2065 = vmul.f32 %v1971, %v2039
    %v2067 = vrot.slane %v2065, 3
    %v2069 = vsub.f32 %v2064, %v2067
    %v2070 = vmul.f32 %v1932, %v2069
    %v2072 = vrot.slane %v2070, 1
    %v2074 = vsub.f32 %v1933, %v2072
    %v2075 = vmul.f32 %v1932, %v2054
    %v2077 = vrot.slane %v2075, 2
    %v2079 = vsub.f32 %v2074, %v2077
    %v2080 = vmul.f32 %v1932, %v2044
    %v2082 = vrot.slane %v2080, 3
    %v2084 = vsub.f32 %v2079, %v2082
    %v2085 = vmul.f32 %v1932, %v2039
    %v2087 = vrot.slane %v2085, 4
    %v2089 = vsub.f32 %v2084, %v2087
    %v2090 = vmul.f32 %v1885, %v2089
    %v2092 = vrot.slane %v2090, 1
    %v2094 = vsub.f32 %v1886, %v2092
    %v2095 = vmul.f32 %v1885, %v2069
    %v2097 = vrot.slane %v2095, 2
    %v2099 = vsub.f32 %v2094, %v2097
    %v2100 = vmul.f32 %v1885, %v2054
    %v2102 = vrot.slane %v2100, 3
    %v2104 = vsub.f32 %v2099, %v2102
    %v2105 = vmul.f32 %v1885, %v2044
    %v2107 = vrot.slane %v2105, 4
    %v2109 = vsub.f32 %v2104, %v2107
    %v2110 = vmul.f32 %v1885, %v2039
    %v2112 = vrot.slane %v2110, 5
    %v2114 = vsub.f32 %v2109, %v2112
    %v2115 = vmul.f32 %v1830, %v2114
    %v2117 = vrot.slane %v2115, 1
    %v2119 = vsub.f32 %v1831, %v2117
    %v2120 = vmul.f32 %v1830, %v2089
    %v2122 = vrot.slane %v2120, 2
    %v2124 = vsub.f32 %v2119, %v2122
    %v2125 = vmul.f32 %v1830, %v2069
    %v2127 = vrot.slane %v2125, 3
    %v2129 = vsub.f32 %v2124, %v2127
    %v2130 = vmul.f32 %v1830, %v2054
    %v2132 = vrot.slane %v2130, 4
    %v2134 = vsub.f32 %v2129, %v2132
    %v2135 = vmul.f32 %v1830, %v2044
    %v2137 = vrot.slane %v2135, 5
    %v2139 = vsub.f32 %v2134, %v2137
    %v2140 = vmul.f32 %v1830, %v2039
    %v2142 = vrot.slane %v2140, 6
    %v2144 = vsub.f32 %v2139, %v2142
    %v2145 = vmul.f32 %v1767, %v2144
    %v2147 = vrot.slane %v2145, 1
    %v2149 = vsub.f32 %v1768, %v2147
    %v2150 = vmul.f32 %v1767, %v2114
    %v2152 = vrot.slane %v2150, 2
    %v2154 = vsub.f32 %v2149, %v2152
    %v2155 = vmul.f32 %v1767, %v2089
    %v2157 = vrot.slane %v2155, 3
    %v2159 = vsub.f32 %v2154, %v2157
    %v2160 = vmul.f32 %v1767, %v2069
    %v2162 = vrot.slane %v2160, 4
    %v2164 = vsub.f32 %v2159, %v2162
    %v2165 = vmul.f32 %v1767, %v2054
    %v2167 = vrot.slane %v2165, 5
    %v2169 = vsub.f32 %v2164, %v2167
    %v2170 = vmul.f32 %v1767, %v2044
    %v2172 = vrot.slane %v2170, 6
    %v2174 = vsub.f32 %v2169, %v2172
    %v2175 = vmul.f32 %v1767, %v2039
    %v2177 = vrot.slane %v2175, 7
    %v2179 = vsub.f32 %v2174, %v2177
    %v2180 = vmul.f32 %v1699, %v2179
    %v2182 = vrot.slane %v2180, 1
    %v2184 = vsub.f32 %v1700, %v2182
    %v2185 = vmul.f32 %v1699, %v2144
    %v2187 = vrot.slane %v2185, 2
    %v2189 = vsub.f32 %v2184, %v2187
    %v2190 = vmul.f32 %v1699, %v2114
    %v2192 = vrot.slane %v2190, 3
    %v2194 = vsub.f32 %v2189, %v2192
    %v2195 = vmul.f32 %v1699, %v2089
    %v2197 = vrot.slane %v2195, 4
    %v2199 = vsub.f32 %v2194, %v2197
    %v2200 = vmul.f32 %v1699, %v2069
    %v2202 = vrot.slane %v2200, 5
    %v2204 = vsub.f32 %v2199, %v2202
    %v2205 = vmul.f32 %v1699, %v2054
    %v2207 = vrot.slane %v2205, 6
    %v2209 = vsub.f32 %v2204, %v2207
    %v2210 = vmul.f32 %v1699, %v2044
    %v2212 = vrot.slane %v2210, 7
    %v2214 = vsub.f32 %v2209, %v2212
    %v2215 = vmul.f32 %v1699, %v2039
    %v2216 = vsub.f32 %v2214, %v2215
    %v2217 = vmul.f32 %v1604, %v2216
    %v2219 = vrot.slane %v2217, 1
    %v2221 = vsub.f32 %v1606, %v2219
    %v2222 = vmul.f32 %v1605, %v2179
    %v2224 = vrot.slane %v2222, 2
    %v2226 = vsub.f32 %v2221, %v2224
    %v2227 = vmul.f32 %v1605, %v2144
    %v2229 = vrot.slane %v2227, 3
    %v2231 = vsub.f32 %v2226, %v2229
    %v2232 = vmul.f32 %v1605, %v2114
    %v2234 = vrot.slane %v2232, 4
    %v2236 = vsub.f32 %v2231, %v2234
    %v2237 = vmul.f32 %v1605, %v2089
    %v2239 = vrot.slane %v2237, 5
    %v2241 = vsub.f32 %v2236, %v2239
    %v2242 = vmul.f32 %v1605, %v2069
    %v2244 = vrot.slane %v2242, 6
    %v2246 = vsub.f32 %v2241, %v2244
    %v2247 = vmul.f32 %v1605, %v2054
    %v2249 = vrot.slane %v2247, 7
    %v2251 = vsub.f32 %v2246, %v2249
    %v2252 = vmul.f32 %v1605, %v2044
    %v2253 = vsub.f32 %v2251, %v2252
    %v2254 = vmul.f32 %v1605, %v2039
    %v2256 = vrot.slane %v2254, 1
    %v2258 = vsub.f32 %v2253, %v2256
    %v2259 = vmul.f32 %v1499, %v2258
    %v2261 = vrot.slane %v2259, 1
    %v2263 = vsub.f32 %v1501, %v2261
    %v2264 = vmul.f32 %v1499, %v2216
    %v2266 = vrot.slane %v2264, 2
    %v2268 = vsub.f32 %v2263, %v2266
    %v2269 = vmul.f32 %v1500, %v2179
    %v2271 = vrot.slane %v2269, 3
    %v2273 = vsub.f32 %v2268, %v2271
    %v2274 = vmul.f32 %v1500, %v2144
    %v2276 = vrot.slane %v2274, 4
    %v2278 = vsub.f32 %v2273, %v2276
    %v2279 = vmul.f32 %v1500, %v2114
    %v2281 = vrot.slane %v2279, 5
    %v2283 = vsub.f32 %v2278, %v2281
    %v2284 = vmul.f32 %v1500, %v2089
    %v2286 = vrot.slane %v2284, 6
    %v2288 = vsub.f32 %v2283, %v2286
    %v2289 = vmul.f32 %v1500, %v2069
    %v2291 = vrot.slane %v2289, 7
    %v2293 = vsub.f32 %v2288, %v2291
    %v2294 = vmul.f32 %v1500, %v2054
    %v2295 = vsub.f32 %v2293, %v2294
    %v2296 = vmul.f32 %v1500, %v2044
    %v2298 = vrot.slane %v2296, 1
    %v2300 = vsub.f32 %v2295, %v2298
    %v2301 = vmul.f32 %v1500, %v2039
    %v2303 = vrot.slane %v2301, 2
    %v2305 = vsub.f32 %v2300, %v2303
    %v2306 = vmul.f32 %v1384, %v2305
    %v2308 = vrot.slane %v2306, 1
    %v2310 = vsub.f32 %v1386, %v2308
    %v2311 = vmul.f32 %v1384, %v2258
    %v2313 = vrot.slane %v2311, 2
    %v2315 = vsub.f32 %v2310, %v2313
    %v2316 = vmul.f32 %v1384, %v2216
    %v2318 = vrot.slane %v2316, 3
    %v2320 = vsub.f32 %v2315, %v2318
    %v2321 = vmul.f32 %v1385, %v2179
    %v2323 = vrot.slane %v2321, 4
    %v2325 = vsub.f32 %v2320, %v2323
    %v2326 = vmul.f32 %v1385, %v2144
    %v2328 = vrot.slane %v2326, 5
    %v2330 = vsub.f32 %v2325, %v2328
    %v2331 = vmul.f32 %v1385, %v2114
    %v2333 = vrot.slane %v2331, 6
    %v2335 = vsub.f32 %v2330, %v2333
    %v2336 = vmul.f32 %v1385, %v2089
    %v2338 = vrot.slane %v2336, 7
    %v2340 = vsub.f32 %v2335, %v2338
    %v2341 = vmul.f32 %v1385, %v2069
    %v2342 = vsub.f32 %v2340, %v2341
    %v2343 = vmul.f32 %v1385, %v2054
    %v2345 = vrot.slane %v2343, 1
    %v2347 = vsub.f32 %v2342, %v2345
    %v2348 = vmul.f32 %v1385, %v2044
    %v2350 = vrot.slane %v2348, 2
    %v2352 = vsub.f32 %v2347, %v2350
    %v2353 = vmul.f32 %v1385, %v2039
    %v2355 = vrot.slane %v2353, 3
    %v2357 = vsub.f32 %v2352, %v2355
    %v2358 = vmul.f32 %v1259, %v2357
    %v2360 = vrot.slane %v2358, 1
    %v2362 = vsub.f32 %v1261, %v2360
    %v2363 = vmul.f32 %v1259, %v2305
    %v2365 = vrot.slane %v2363, 2
    %v2367 = vsub.f32 %v2362, %v2365
    %v2368 = vmul.f32 %v1259, %v2258
    %v2370 = vrot.slane %v2368, 3
    %v2372 = vsub.f32 %v2367, %v2370
    %v2373 = vmul.f32 %v1259, %v2216
    %v2375 = vrot.slane %v2373, 4
    %v2377 = vsub.f32 %v2372, %v2375
    %v2378 = vmul.f32 %v1260, %v2179
    %v2380 = vrot.slane %v2378, 5
    %v2382 = vsub.f32 %v2377, %v2380
    %v2383 = vmul.f32 %v1260, %v2144
    %v2385 = vrot.slane %v2383, 6
    %v2387 = vsub.f32 %v2382, %v2385
    %v2388 = vmul.f32 %v1260, %v2114
    %v2390 = vrot.slane %v2388, 7
    %v2392 = vsub.f32 %v2387, %v2390
    %v2393 = vmul.f32 %v1260, %v2089
    %v2394 = vsub.f32 %v2392, %v2393
    %v2395 = vmul.f32 %v1260, %v2069
    %v2397 = vrot.slane %v2395, 1
    %v2399 = vsub.f32 %v2394, %v2397
    %v2400 = vmul.f32 %v1260, %v2054
    %v2402 = vrot.slane %v2400, 2
    %v2404 = vsub.f32 %v2399, %v2402
    %v2405 = vmul.f32 %v1260, %v2044
    %v2407 = vrot.slane %v2405, 3
    %v2409 = vsub.f32 %v2404, %v2407
    %v2410 = vmul.f32 %v1260, %v2039
    %v2412 = vrot.slane %v2410, 4
    %v2414 = vsub.f32 %v2409, %v2412
    %v2415 = vmul.f32 %v1124, %v2414
    %v2417 = vrot.slane %v2415, 1
    %v2419 = vsub.f32 %v1126, %v2417
    %v2420 = vmul.f32 %v1124, %v2357
    %v2422 = vrot.slane %v2420, 2
    %v2424 = vsub.f32 %v2419, %v2422
    %v2425 = vmul.f32 %v1124, %v2305
    %v2427 = vrot.slane %v2425, 3
    %v2429 = vsub.f32 %v2424, %v2427
    %v2430 = vmul.f32 %v1124, %v2258
    %v2432 = vrot.slane %v2430, 4
    %v2434 = vsub.f32 %v2429, %v2432
    %v2435 = vmul.f32 %v1124, %v2216
    %v2437 = vrot.slane %v2435, 5
    %v2439 = vsub.f32 %v2434, %v2437
    %v2440 = vmul.f32 %v1125, %v2179
    %v2442 = vrot.slane %v2440, 6
    %v2444 = vsub.f32 %v2439, %v2442
    %v2445 = vmul.f32 %v1125, %v2144
    %v2447 = vrot.slane %v2445, 7
    %v2449 = vsub.f32 %v2444, %v2447
    %v2450 = vmul.f32 %v1125, %v2114
    %v2451 = vsub.f32 %v2449, %v2450
    %v2452 = vmul.f32 %v1125, %v2089
    %v2454 = vrot.slane %v2452, 1
    %v2456 = vsub.f32 %v2451, %v2454
    %v2457 = vmul.f32 %v1125, %v2069
    %v2459 = vrot.slane %v2457, 2
    %v2461 = vsub.f32 %v2456, %v2459
    %v2462 = vmul.f32 %v1125, %v2054
    %v2464 = vrot.slane %v2462, 3
    %v2466 = vsub.f32 %v2461, %v2464
    %v2467 = vmul.f32 %v1125, %v2044
    %v2469 = vrot.slane %v2467, 4
    %v2471 = vsub.f32 %v2466, %v2469
    %v2472 = vmul.f32 %v1125, %v2039
    %v2474 = vrot.slane %v2472, 5
    %v2476 = vsub.f32 %v2471, %v2474
    %v2477 = vmul.f32 %v979, %v2476
    %v2479 = vrot.slane %v2477, 1
    %v2481 = vsub.f32 %v981, %v2479
    %v2482 = vmul.f32 %v979, %v2414
    %v2484 = vrot.slane %v2482, 2
    %v2486 = vsub.f32 %v2481, %v2484
    %v2487 = vmul.f32 %v979, %v2357
    %v2489 = vrot.slane %v2487, 3
    %v2491 = vsub.f32 %v2486, %v2489
    %v2492 = vmul.f32 %v979, %v2305
    %v2494 = vrot.slane %v2492, 4
    %v2496 = vsub.f32 %v2491, %v2494
    %v2497 = vmul.f32 %v979, %v2258
    %v2499 = vrot.slane %v2497, 5
    %v2501 = vsub.f32 %v2496, %v2499
    %v2502 = vmul.f32 %v979, %v2216
    %v2504 = vrot.slane %v2502, 6
    %v2506 = vsub.f32 %v2501, %v2504
    %v2507 = vmul.f32 %v980, %v2179
    %v2509 = vrot.slane %v2507, 7
    %v2511 = vsub.f32 %v2506, %v2509
    %v2512 = vmul.f32 %v980, %v2144
    %v2513 = vsub.f32 %v2511, %v2512
    %v2514 = vmul.f32 %v980, %v2114
    %v2516 = vrot.slane %v2514, 1
    %v2518 = vsub.f32 %v2513, %v2516
    %v2519 = vmul.f32 %v980, %v2089
    %v2521 = vrot.slane %v2519, 2
    %v2523 = vsub.f32 %v2518, %v2521
    %v2524 = vmul.f32 %v980, %v2069
    %v2526 = vrot.slane %v2524, 3
    %v2528 = vsub.f32 %v2523, %v2526
    %v2529 = vmul.f32 %v980, %v2054
    %v2531 = vrot.slane %v2529, 4
    %v2533 = vsub.f32 %v2528, %v2531
    %v2534 = vmul.f32 %v980, %v2044
    %v2536 = vrot.slane %v2534, 5
    %v2538 = vsub.f32 %v2533, %v2536
    %v2539 = vmul.f32 %v980, %v2039
    %v2541 = vrot.slane %v2539, 6
    %v2543 = vsub.f32 %v2538, %v2541
    %v2544 = vmul.f32 %v824, %v2543
    %v2546 = vrot.slane %v2544, 1
    %v2548 = vsub.f32 %v826, %v2546
    %v2549 = vmul.f32 %v824, %v2476
    %v2551 = vrot.slane %v2549, 2
    %v2553 = vsub.f32 %v2548, %v2551
    %v2554 = vmul.f32 %v824, %v2414
    %v2556 = vrot.slane %v2554, 3
    %v2558 = vsub.f32 %v2553, %v2556
    %v2559 = vmul.f32 %v824, %v2357
    %v2561 = vrot.slane %v2559, 4
    %v2563 = vsub.f32 %v2558, %v2561
    %v2564 = vmul.f32 %v824, %v2305
    %v2566 = vrot.slane %v2564, 5
    %v2568 = vsub.f32 %v2563, %v2566
    %v2569 = vmul.f32 %v824, %v2258
    %v2571 = vrot.slane %v2569, 6
    %v2573 = vsub.f32 %v2568, %v2571
    %v2574 = vmul.f32 %v824, %v2216
    %v2576 = vrot.slane %v2574, 7
    %v2578 = vsub.f32 %v2573, %v2576
    %v2579 = vmul.f32 %v825, %v2179
    %v2580 = vsub.f32 %v2578, %v2579
    %v2581 = vmul.f32 %v825, %v2144
    %v2583 = vrot.slane %v2581, 1
    %v2585 = vsub.f32 %v2580, %v2583
    %v2586 = vmul.f32 %v825, %v2114
    %v2588 = vrot.slane %v2586, 2
    %v2590 = vsub.f32 %v2585, %v2588
    %v2591 = vmul.f32 %v825, %v2089
    %v2593 = vrot.slane %v2591, 3
    %v2595 = vsub.f32 %v2590, %v2593
    %v2596 = vmul.f32 %v825, %v2069
    %v2598 = vrot.slane %v2596, 4
    %v2600 = vsub.f32 %v2595, %v2598
    %v2601 = vmul.f32 %v825, %v2054
    %v2603 = vrot.slane %v2601, 5
    %v2605 = vsub.f32 %v2600, %v2603
    %v2606 = vmul.f32 %v825, %v2044
    %v2608 = vrot.slane %v2606, 6
    %v2610 = vsub.f32 %v2605, %v2608
    %v2611 = vmul.f32 %v825, %v2039
    %v2613 = vrot.slane %v2611, 7
    %v2615 = vsub.f32 %v2610, %v2613
    %vm2616 = vcmask 1040384
    %v2617 = vsel %vm2616, %v2615, %v2543
    %vm2618 = vcmask 1041408
    %v2619 = vsel %vm2618, %v2617, %v2476
    %vm2620 = vcmask 1042432
    %v2621 = vsel %vm2620, %v2619, %v2414
    %vm2622 = vcmask 1043456
    %v2623 = vsel %vm2622, %v2621, %v2357
    %vm2624 = vcmask 1044480
    %v2625 = vsel %vm2624, %v2623, %v2305
    %vm2626 = vcmask 1045504
    %v2627 = vsel %vm2626, %v2625, %v2258
    %vm2628 = vcmask 1046528
    %v2629 = vsel %vm2628, %v2627, %v2216
    %v2630 = vsel %vm2616, %v2179, %v2144
    %v2631 = vsel %vm2618, %v2630, %v2114
    %v2632 = vsel %vm2620, %v2631, %v2089
    %v2633 = vsel %vm2622, %v2632, %v2069
    %v2634 = vsel %vm2624, %v2633, %v2054
    %v2635 = vsel %vm2626, %v2634, %v2044
    %v2636 = vsel %vm2628, %v2635, %v2039
    %2637 = vxpose.xlu0.b32.start [1/16] %v2629, 128
    %2638 = vxpose.xlu0.b32.cont [2/16] %v2636, 128
    %2639 = vxpose.xlu0.b32.cont [3/16] 0.0, 128
    %2640 = vxpose.xlu0.b32.cont [4/16] 0.0, 128
    %2641 = vxpose.xlu0.b32.cont [5/16] 0.0, 128
    %2642 = vxpose.xlu0.b32.cont [6/16] 0.0, 128
    %2643 = vxpose.xlu0.b32.cont [7/16] 0.0, 128
    %2644 = vxpose.xlu0.b32.cont [8/16] 0.0, 128
    %2645 = vxpose.xlu0.b32.cont [9/16] 0.0, 128
    %2646 = vxpose.xlu0.b32.cont [10/16] 0.0, 128
    %2647 = vxpose.xlu0.b32.cont [11/16] 0.0, 128
    %2648 = vxpose.xlu0.b32.cont [12/16] 0.0, 128
    %2649 = vxpose.xlu0.b32.cont [13/16] 0.0, 128
    %2650 = vxpose.xlu0.b32.cont [14/16] 0.0, 128
    %2651 = vxpose.xlu0.b32.cont [15/16] 0.0, 128
    %2652 = vxpose.xlu0.b32.end [16/16] 0.0, 128
    %v2653 = vpop.trf.xlu0
    %v2654 = vpop.trf.xlu0
    %v2655 = vpop.trf.xlu0
    %v2656 = vpop.trf.xlu0
    %v2657 = vpop.trf.xlu0
    %v2658 = vpop.trf.xlu0
    %v2659 = vpop.trf.xlu0
    %v2660 = vpop.trf.xlu0
    %v2661 = vpop.trf.xlu0
    %v2662 = vpop.trf.xlu0
    %v2663 = vpop.trf.xlu0
    %v2664 = vpop.trf.xlu0
    %v2665 = vpop.trf.xlu0
    %v2666 = vpop.trf.xlu0
    %v2667 = vpop.trf.xlu0
    %v2668 = vpop.trf.xlu0
    %v2669 = vld [vmem:[%s6] sm:$0xff]
    %v2670 = vld [vmem:[%s6 + $0x8] sm:$0xff]
    %vm2671 = vcmask 130048
    %v2673 = vsel %vm2671, %v2653, 0
    %2675 = vmatpush.msra.mxu0 0.0
    %2676 = vmatpush.msra.mxu0 0.0
    %2677 = vmatpush.msra.mxu0 0.0
    %2678 = vmatpush.msra.mxu0 0.0
    %2679 = vmatpush.msra.mxu0 0.0
    %2680 = vmatpush.msra.mxu0 0.0
    %2681 = vmatpush.msra.mxu0 0.0
    %2682 = vmatpush.msra.mxu0 0.0
    %2683 = vmatpush.msra.mxu0 0.0
    %2684 = vmatpush.msra.mxu0 0.0
    %2685 = vmatpush.msra.mxu0 0.0
    %2686 = vmatpush.msra.mxu0 0.0
    %2687 = vmatpush.msra.mxu0 0.0
    %2688 = vmatpush.msra.mxu0 0.0
    %2689 = vmatpush.msra.mxu0 %v2670
    %2690 = vmatpush.msra.mxu0 %v2669
    %2691 = vmatmul.f32.gmra.mxu0 %v2673
    %v2692 = vpop.f32.mrf.mxu0
    %v2693 = vadd.f32 0.0, %v2692
    %2694 = vdwg.mxu0
    %v2695 = vmul.f32 %v108, %v2693
    %v2696 = vmul.f32 %v109, %v2693
    %2698 = vrot.lane.b32.xlu0 %v2696, 96
    %v2699 = vpop.permute.xlu0 %2698
    %v2701 = vadd.f32 %v2695, %v2699
    %2703 = vrot.lane.b32.xlu0 %v2693, 64
    %v2704 = vpop.permute.xlu0 %2703
    %v2706 = vmul.f32 %v116, %v2704
    %v2707 = vadd.f32 %v2701, %v2706
    %2709 = vrot.lane.b32.xlu0 %v2707, 32
    %v2710 = vpop.permute.xlu0 %2709
    %v2712 = vsub.f32 %v100, %v2710
    %2714 = vrot.lane.b32.xlu0 %v106, 32
    %v2715 = vpop.permute.xlu0 %2714
    %v2717 = vsel %vm151, %v2715, %v2712
    %2718 = vst.msk [vmem:[#allocation2] sm:$0xff] %vm153, %v2717
    // Predicated region
    $region34: #{tpu_custom_call.1} parent=1 // pred_check
      _
    $region35: #{tpu_custom_call.1} parent=1 // pred_check_branch
      %2720 = sbr.rel (0) target = $region37
    $region36: #{tpu_custom_call.1} parent=1 // pred_region
      %2722 = vsyncadd [#allocation3], 0
      %s2724 = sshll.u32 [#allocation2], 4
      %s2725 = int_to_ptr.vmem [resolvable:$true] %s2724
      %s2726 = sshll.u32 %s8, 4
      %s2727 = int_to_ptr.hbm [resolvable:$true] %s2726
      %2729 = dma.vmem_to_hbm [thread:$0]  %s2725, 128, %s2727, [#allocation3]
    $region37: #{tpu_custom_call.1} parent=1 // pred_fallthru
      _
    // Predicated region
    $region38: #{tpu_custom_call.1} parent=1 // pred_check
      _
    $region39: #{tpu_custom_call.1} parent=1 // pred_check_branch
      %2731 = sbr.rel (0) target = $region41
    $region40: #{tpu_custom_call.1} parent=1 // pred_region
      %2733 = dma.done [#allocation3], 128
    $region41: #{tpu_custom_call.1} parent=1 // pred_fallthru
      _
    %2734 = vsyncpa [#allocation3], 1

</llo_original>
